<compile_context>
chip_gen: v7x
topology: tpu7x:2x2x1
jax: 0.10.0
libtpu: 0.0.40
codegen_flags: <defaults>
</compile_context>

<pallas_src>
import functools

import jax
import jax.numpy as jnp
from jax import lax
from jax.experimental import pallas as pl
from jax.experimental.pallas import tpu as pltpu

_SUBLANES = 8  # f32 sublane group; the batch dim is padded to a multiple of this


def torque_kernel(x2d_ref,                        # (T*Bp, I)   t-major rows, batch padded
                  wih0_ref, whh0_ref, b0_ref,     # (I,4H), (H,4H), (1,4H)  gates [i,f,o,g]
                  wih1_ref, whh1_ref, b1_ref,     # (H,4H), (H,4H), (1,4H)  gates [i,f,o,g]
                  fw1_ref, fb1_ref, fw2_ref, fb2_ref,
                  out_ref, state_ref,
                  *, Bp, T, H):
    # ---- prologue: layer-0 input projection for ALL timesteps in one matmul,
    #      with b0 folded in so it never reappears inside the recurrence.
    zx0 = (jnp.dot(x2d_ref[...], wih0_ref[...],
                   preferred_element_type=jnp.float32)
           + b0_ref[...])                                     # (T*Bp, 4H)

    whh0 = whh0_ref[...]                                      # (H, 4H)
    wih1 = wih1_ref[...]                                      # (H, 4H)
    whh1 = whh1_ref[...]                                      # (H, 4H)
    b1 = jnp.broadcast_to(b1_ref[...], (Bp, 4 * H))           # hoisted once

    def cell(z, c_prev):
        # gate layout [i, f, o, g]: one contiguous sigmoid (3H) + one tanh (H)
        s = jax.nn.sigmoid(z[:, :3 * H])
        g = jnp.tanh(z[:, 3 * H:])
        i = s[:, :H]
        f = s[:, H:2 * H]
        o = s[:, 2 * H:3 * H]
        c_new = f * c_prev + i * g
        h_new = o * jnp.tanh(c_new)
        return h_new, c_new

    zero = jnp.zeros((Bp, H), jnp.float32)
    h1, c1, h2, c2 = zero, zero, zero, zero

    # ---- recurrence: fully unrolled (T is small & static).  The h2-dependent half
    #      of layer 1 depends only on the previous step, so it is issued first and
    #      can overlap layer 0 of the current step.
    for t in range(T):
        z2_part = b1 if t == 0 else (
            jnp.dot(h2, whh1, preferred_element_type=jnp.float32) + b1)

        zx = zx0[t * Bp:(t + 1) * Bp, :]                      # whole-sublane rows
        z1 = zx if t == 0 else (
            jnp.dot(h1, whh0, preferred_element_type=jnp.float32) + zx)
        h1, c1 = cell(z1, c1)

        z2 = jnp.dot(h1, wih1, preferred_element_type=jnp.float32) + z2_part
        h2, c2 = cell(z2, c2)

    # ---- FC head: Linear -> ReLU -> (Dropout = identity) -> Linear
    hid = jnp.maximum(
        jnp.dot(h2, fw1_ref[...], preferred_element_type=jnp.float32)
        + fb1_ref[...], 0.0)
    out = (jnp.dot(hid, fw2_ref[...], preferred_element_type=jnp.float32)
           + fb2_ref[...])

    out_ref[...] = out
    state_ref[0] = h1      # h_n, layer 0
    state_ref[1] = h2      # h_n, layer 1
    state_ref[2] = c1      # c_n, layer 0
    state_ref[3] = c2      # c_n, layer 1


def _perm_gates(w, H):
    """Reorder last-dim gate blocks from PyTorch [i|f|g|o] to [i|f|o|g]."""
    return jnp.concatenate([w[..., :2 * H], w[..., 3 * H:4 * H],
                            w[..., 2 * H:3 * H]], axis=-1)


def prepare_params(params):
    """One-time weight layout plumbing, hoisted OUT of the per-call path:
    gate permutation for all LSTM weights/biases; FC weights pass through."""
    H = params["whh0"].shape[0]
    return {
        "wih0": _perm_gates(params["wih0"], H),
        "whh0": _perm_gates(params["whh0"], H),
        "b0":   _perm_gates(params["b0"], H),
        "wih1": _perm_gates(params["wih1"], H),
        "whh1": _perm_gates(params["whh1"], H),
        "b1":   _perm_gates(params["b1"], H),
        "fw1": params["fw1"], "fb1": params["fb1"],
        "fw2": params["fw2"], "fb2": params["fb2"],
    }


@jax.jit
def torque_predictor(x, prepped):
    """Returns (output, (h_n, c_n)) matching TorquePredictor.forward with hidden=None."""
    B, T, I = x.shape
    H = prepped["whh0"].shape[0]
    O = prepped["fw2"].shape[1]
    num_layers = 2
    Bp = ((B + _SUBLANES - 1) // _SUBLANES) * _SUBLANES   # pad batch to whole sublane groups

    # Per-call layout plumbing only: pad batch, go t-major, flatten to a 2D slab so
    # each step's rows are a contiguous, sublane-aligned block.
    x_p = jnp.pad(x, ((0, Bp - B), (0, 0), (0, 0)))
    x2d = jnp.swapaxes(x_p, 0, 1).reshape(T * Bp, I)

    vmem = pl.BlockSpec(memory_space=pltpu.MemorySpace.VMEM)
    args = (x2d, prepped["wih0"], prepped["whh0"], prepped["b0"],
            prepped["wih1"], prepped["whh1"], prepped["b1"],
            prepped["fw1"], prepped["fb1"], prepped["fw2"], prepped["fb2"])

    kernel = functools.partial(torque_kernel, Bp=Bp, T=T, H=H)
    out, state = pl.pallas_call(
        kernel,
        out_shape=(
            jax.ShapeDtypeStruct((Bp, O), jnp.float32),
            jax.ShapeDtypeStruct((2 * num_layers, Bp, H), jnp.float32),
        ),
        in_specs=[vmem] * len(args),
        out_specs=(vmem, vmem),
    )(*args)

    # Strip the batch padding on the wrapper side.
    out = out[:B]
    h_n = state[0:num_layers, :B]
    c_n = state[num_layers:2 * num_layers, :B]
    return out, (h_n, c_n)


def init_params(key, input_size=3, hidden_size=64, output_size=3):
    """Deterministic parameter init (PyTorch-style uniform).  Weights stored transposed,
    gate order is PyTorch's [i, f, g, o]; prepare_params permutes them for the kernel."""
    H = hidden_size
    ks = jax.random.split(key, 11)
    k_lstm = 1.0 / jnp.sqrt(H)

    def u(k, shape, bound):
        return jax.random.uniform(k, shape, jnp.float32, -bound, bound)

    params = {
        # layer 0: W_ih (4H, I) -> stored (I, 4H); W_hh (4H, H) -> stored (H, 4H)
        "wih0": u(ks[0], (input_size, 4 * H), k_lstm),
        "whh0": u(ks[1], (H, 4 * H), k_lstm),
        "b0":   u(ks[2], (1, 4 * H), k_lstm) + u(ks[3], (1, 4 * H), k_lstm),  # b_ih + b_hh
        # layer 1: input is previous layer's h (size H)
        "wih1": u(ks[4], (H, 4 * H), k_lstm),
        "whh1": u(ks[5], (H, 4 * H), k_lstm),
        "b1":   u(ks[6], (1, 4 * H), k_lstm) + u(ks[7], (1, 4 * H), k_lstm),
        # FC head: Linear(H, H) then Linear(H, output_size), stored transposed
        "fw1": u(ks[8], (H, H), 1.0 / jnp.sqrt(H)),
        "fb1": u(ks[9], (1, H), 1.0 / jnp.sqrt(H)),
        "fw2": u(ks[10], (H, output_size), 1.0 / jnp.sqrt(H)),
        "fb2": jnp.zeros((1, output_size), jnp.float32),
    }
    return params


def reference_forward(x, params):
    """Pure-JAX reference of the same forward pass (PyTorch gate order) for validation."""
    B, T, I = x.shape
    H = params["whh0"].shape[0]

    def cell(z, c_prev):
        i = jax.nn.sigmoid(z[:, 0:H])
        f = jax.nn.sigmoid(z[:, H:2 * H])
        g = jnp.tanh(z[:, 2 * H:3 * H])
        o = jax.nn.sigmoid(z[:, 3 * H:4 * H])
        c_new = f * c_prev + i * g
        return o * jnp.tanh(c_new), c_new

    def scan_fn(carry, x_t):
        h1, c1, h2, c2 = carry
        z1 = x_t @ params["wih0"] + h1 @ params["whh0"] + params["b0"]
        h1, c1 = cell(z1, c1)
        z2 = h1 @ params["wih1"] + h2 @ params["whh1"] + params["b1"]
        h2, c2 = cell(z2, c2)
        return (h1, c1, h2, c2), None

    zero = jnp.zeros((B, H), jnp.float32)
    (h1, c1, h2, c2), _ = lax.scan(scan_fn, (zero, zero, zero, zero),
                                   jnp.swapaxes(x, 0, 1))
    hid = jnp.maximum(h2 @ params["fw1"] + params["fb1"], 0.0)
    out = hid @ params["fw2"] + params["fb2"]
    h_n = jnp.stack([h1, h2])
    c_n = jnp.stack([c1, c2])
    return out, (h_n, c_n)


if __name__ == "__main__":
    key = jax.random.PRNGKey(0)
    kx, kp = jax.random.split(key)

    batch, seq, input_size, hidden_size, output_size = 2, 8, 3, 64, 3
    x = jax.random.normal(kx, (batch, seq, input_size), jnp.float32)
    params = init_params(kp, input_size, hidden_size, output_size)

    prepped = prepare_params(params)      # one-time layout work, outside the per-call path

    out, (h_n, c_n) = torque_predictor(x, prepped)
    jax.block_until_ready((out, h_n, c_n))

    ref_out, (ref_h, ref_c) = reference_forward(x, params)
    assert out.shape == (batch, output_size)
    assert h_n.shape == (2, batch, hidden_size) and c_n.shape == (2, batch, hidden_size)
    # Both paths use the TPU's default f32 matmul precision (bf16-pass decomposition);
    # op-ordering differences between the fused kernel and the scan reference mean
    # agreement is to ~1e-3 level, so validate with a tolerance that still catches
    # any structural/gate-order bug (those produce O(0.1) errors).
    assert jnp.allclose(out, ref_out, atol=5e-3), "output mismatch"
    assert jnp.allclose(h_n, ref_h, atol=5e-3), "h_n mismatch"
    assert jnp.allclose(c_n, ref_c, atol=5e-3), "c_n mismatch"

    print("KERNEL_OK")
</pallas_src>

<mosaic_0001>
module attributes {stable_mosaic.version = 11 : i64} {
  func.func @torque_kernel(%arg0: memref<64x3xf32, #tpu.memory_space<vmem>>, %arg1: memref<3x256xf32, #tpu.memory_space<vmem>>, %arg2: memref<64x256xf32, #tpu.memory_space<vmem>>, %arg3: memref<1x256xf32, #tpu.memory_space<vmem>>, %arg4: memref<64x256xf32, #tpu.memory_space<vmem>>, %arg5: memref<64x256xf32, #tpu.memory_space<vmem>>, %arg6: memref<1x256xf32, #tpu.memory_space<vmem>>, %arg7: memref<64x64xf32, #tpu.memory_space<vmem>>, %arg8: memref<1x64xf32, #tpu.memory_space<vmem>>, %arg9: memref<64x3xf32, #tpu.memory_space<vmem>>, %arg10: memref<1x3xf32, #tpu.memory_space<vmem>>, %arg11: memref<8x3xf32, #tpu.memory_space<vmem>>, %arg12: memref<4x8x64xf32, #tpu.memory_space<vmem>>) attributes {dimension_semantics = [], scalar_prefetch = 0 : i64, scratch_operands = 0 : i64, tpu.core_type = #tpu.core_type<tc>} {
    %c0 = arith.constant 0 : index
    %c0_0 = arith.constant 0 : index
    %0 = vector.load %arg0[%c0, %c0_0] : memref<64x3xf32, #tpu.memory_space<vmem>>, vector<64x3xf32>
    %c0_1 = arith.constant 0 : index
    %c0_2 = arith.constant 0 : index
    %1 = vector.load %arg1[%c0_1, %c0_2] : memref<3x256xf32, #tpu.memory_space<vmem>>, vector<3x256xf32>
    %cst = arith.constant dense<0.000000e+00> : vector<64x256xf32>
    %2 = tpu.matmul %0, %1, %cst {dimension_numbers = #tpu.dot_dimension_numbers<[1], [0], [0], [1], [0, 0, 1, 1], [], []>} : vector<64x3xf32>, vector<3x256xf32>, vector<64x256xf32> -> vector<64x256xf32>
    %c0_3 = arith.constant 0 : index
    %c0_4 = arith.constant 0 : index
    %3 = vector.load %arg3[%c0_3, %c0_4] : memref<1x256xf32, #tpu.memory_space<vmem>>, vector<1x256xf32>
    %4 = vector.broadcast %3 : vector<1x256xf32> to vector<64x256xf32>
    %5 = arith.addf %2, %4 : vector<64x256xf32>
    %c0_5 = arith.constant 0 : index
    %c0_6 = arith.constant 0 : index
    %6 = vector.load %arg2[%c0_5, %c0_6] : memref<64x256xf32, #tpu.memory_space<vmem>>, vector<64x256xf32>
    %c0_7 = arith.constant 0 : index
    %c0_8 = arith.constant 0 : index
    %7 = vector.load %arg4[%c0_7, %c0_8] : memref<64x256xf32, #tpu.memory_space<vmem>>, vector<64x256xf32>
    %c0_9 = arith.constant 0 : index
    %c0_10 = arith.constant 0 : index
    %8 = vector.load %arg5[%c0_9, %c0_10] : memref<64x256xf32, #tpu.memory_space<vmem>>, vector<64x256xf32>
    %c0_11 = arith.constant 0 : index
    %c0_12 = arith.constant 0 : index
    %9 = vector.load %arg6[%c0_11, %c0_12] : memref<1x256xf32, #tpu.memory_space<vmem>>, vector<1x256xf32>
    %10 = vector.shape_cast %9 : vector<1x256xf32> to vector<1x256xf32>
    %11 = vector.broadcast %10 : vector<1x256xf32> to vector<8x256xf32>
    %cst_13 = arith.constant 0.000000e+00 : f32
    %12 = vector.broadcast %cst_13 : f32 to vector<8x64xf32>
    %13 = vector.extract_strided_slice %5 {offsets = [0, 0], sizes = [8, 256], strides = [1, 1]} : vector<64x256xf32> to vector<8x256xf32>
    %14 = vector.extract_strided_slice %13 {offsets = [0, 0], sizes = [8, 192], strides = [1, 1]} : vector<8x256xf32> to vector<8x192xf32>
    %15 = arith.negf %14 : vector<8x192xf32>
    %16 = math.exp %15 : vector<8x192xf32>
    %cst_14 = arith.constant 1.000000e+00 : f32
    %17 = vector.broadcast %cst_14 : f32 to vector<8x192xf32>
    %18 = arith.addf %17, %16 : vector<8x192xf32>
    %19 = arith.divf %17, %18 : vector<8x192xf32>
    %20 = vector.extract_strided_slice %13 {offsets = [0, 192], sizes = [8, 64], strides = [1, 1]} : vector<8x256xf32> to vector<8x64xf32>
    %21 = math.tanh %20 : vector<8x64xf32>
    %22 = vector.extract_strided_slice %19 {offsets = [0, 0], sizes = [8, 64], strides = [1, 1]} : vector<8x192xf32> to vector<8x64xf32>
    %23 = vector.extract_strided_slice %19 {offsets = [0, 64], sizes = [8, 64], strides = [1, 1]} : vector<8x192xf32> to vector<8x64xf32>
    %24 = vector.extract_strided_slice %19 {offsets = [0, 128], sizes = [8, 64], strides = [1, 1]} : vector<8x192xf32> to vector<8x64xf32>
    %25 = arith.mulf %23, %12 : vector<8x64xf32>
    %26 = arith.mulf %22, %21 : vector<8x64xf32>
    %27 = arith.addf %25, %26 : vector<8x64xf32>
    %28 = math.tanh %27 : vector<8x64xf32>
    %29 = arith.mulf %24, %28 : vector<8x64xf32>
    %cst_15 = arith.constant dense<0.000000e+00> : vector<8x256xf32>
    %30 = tpu.matmul %29, %7, %cst_15 {dimension_numbers = #tpu.dot_dimension_numbers<[1], [0], [0], [1], [0, 0, 1, 1], [], []>} : vector<8x64xf32>, vector<64x256xf32>, vector<8x256xf32> -> vector<8x256xf32>
    %31 = arith.addf %30, %11 : vector<8x256xf32>
    %32 = vector.extract_strided_slice %31 {offsets = [0, 0], sizes = [8, 192], strides = [1, 1]} : vector<8x256xf32> to vector<8x192xf32>
    %33 = arith.negf %32 : vector<8x192xf32>
    %34 = math.exp %33 : vector<8x192xf32>
    %cst_16 = arith.constant 1.000000e+00 : f32
    %35 = vector.broadcast %cst_16 : f32 to vector<8x192xf32>
    %36 = arith.addf %35, %34 : vector<8x192xf32>
    %37 = arith.divf %35, %36 : vector<8x192xf32>
    %38 = vector.extract_strided_slice %31 {offsets = [0, 192], sizes = [8, 64], strides = [1, 1]} : vector<8x256xf32> to vector<8x64xf32>
    %39 = math.tanh %38 : vector<8x64xf32>
    %40 = vector.extract_strided_slice %37 {offsets = [0, 0], sizes = [8, 64], strides = [1, 1]} : vector<8x192xf32> to vector<8x64xf32>
    %41 = vector.extract_strided_slice %37 {offsets = [0, 64], sizes = [8, 64], strides = [1, 1]} : vector<8x192xf32> to vector<8x64xf32>
    %42 = vector.extract_strided_slice %37 {offsets = [0, 128], sizes = [8, 64], strides = [1, 1]} : vector<8x192xf32> to vector<8x64xf32>
    %43 = arith.mulf %41, %12 : vector<8x64xf32>
    %44 = arith.mulf %40, %39 : vector<8x64xf32>
    %45 = arith.addf %43, %44 : vector<8x64xf32>
    %46 = math.tanh %45 : vector<8x64xf32>
    %47 = arith.mulf %42, %46 : vector<8x64xf32>
    %cst_17 = arith.constant dense<0.000000e+00> : vector<8x256xf32>
    %48 = tpu.matmul %47, %8, %cst_17 {dimension_numbers = #tpu.dot_dimension_numbers<[1], [0], [0], [1], [0, 0, 1, 1], [], []>} : vector<8x64xf32>, vector<64x256xf32>, vector<8x256xf32> -> vector<8x256xf32>
    %49 = arith.addf %48, %11 : vector<8x256xf32>
    %50 = vector.extract_strided_slice %5 {offsets = [8, 0], sizes = [8, 256], strides = [1, 1]} : vector<64x256xf32> to vector<8x256xf32>
    %cst_18 = arith.constant dense<0.000000e+00> : vector<8x256xf32>
    %51 = tpu.matmul %29, %6, %cst_18 {dimension_numbers = #tpu.dot_dimension_numbers<[1], [0], [0], [1], [0, 0, 1, 1], [], []>} : vector<8x64xf32>, vector<64x256xf32>, vector<8x256xf32> -> vector<8x256xf32>
    %52 = arith.addf %51, %50 : vector<8x256xf32>
    %53 = vector.extract_strided_slice %52 {offsets = [0, 0], sizes = [8, 192], strides = [1, 1]} : vector<8x256xf32> to vector<8x192xf32>
    %54 = arith.negf %53 : vector<8x192xf32>
    %55 = math.exp %54 : vector<8x192xf32>
    %cst_19 = arith.constant 1.000000e+00 : f32
    %56 = vector.broadcast %cst_19 : f32 to vector<8x192xf32>
    %57 = arith.addf %56, %55 : vector<8x192xf32>
    %58 = arith.divf %56, %57 : vector<8x192xf32>
    %59 = vector.extract_strided_slice %52 {offsets = [0, 192], sizes = [8, 64], strides = [1, 1]} : vector<8x256xf32> to vector<8x64xf32>
    %60 = math.tanh %59 : vector<8x64xf32>
    %61 = vector.extract_strided_slice %58 {offsets = [0, 0], sizes = [8, 64], strides = [1, 1]} : vector<8x192xf32> to vector<8x64xf32>
    %62 = vector.extract_strided_slice %58 {offsets = [0, 64], sizes = [8, 64], strides = [1, 1]} : vector<8x192xf32> to vector<8x64xf32>
    %63 = vector.extract_strided_slice %58 {offsets = [0, 128], sizes = [8, 64], strides = [1, 1]} : vector<8x192xf32> to vector<8x64xf32>
    %64 = arith.mulf %62, %27 : vector<8x64xf32>
    %65 = arith.mulf %61, %60 : vector<8x64xf32>
    %66 = arith.addf %64, %65 : vector<8x64xf32>
    %67 = math.tanh %66 : vector<8x64xf32>
    %68 = arith.mulf %63, %67 : vector<8x64xf32>
    %cst_20 = arith.constant dense<0.000000e+00> : vector<8x256xf32>
    %69 = tpu.matmul %68, %7, %cst_20 {dimension_numbers = #tpu.dot_dimension_numbers<[1], [0], [0], [1], [0, 0, 1, 1], [], []>} : vector<8x64xf32>, vector<64x256xf32>, vector<8x256xf32> -> vector<8x256xf32>
    %70 = arith.addf %69, %49 : vector<8x256xf32>
    %71 = vector.extract_strided_slice %70 {offsets = [0, 0], sizes = [8, 192], strides = [1, 1]} : vector<8x256xf32> to vector<8x192xf32>
    %72 = arith.negf %71 : vector<8x192xf32>
    %73 = math.exp %72 : vector<8x192xf32>
    %cst_21 = arith.constant 1.000000e+00 : f32
    %74 = vector.broadcast %cst_21 : f32 to vector<8x192xf32>
    %75 = arith.addf %74, %73 : vector<8x192xf32>
    %76 = arith.divf %74, %75 : vector<8x192xf32>
    %77 = vector.extract_strided_slice %70 {offsets = [0, 192], sizes = [8, 64], strides = [1, 1]} : vector<8x256xf32> to vector<8x64xf32>
    %78 = math.tanh %77 : vector<8x64xf32>
    %79 = vector.extract_strided_slice %76 {offsets = [0, 0], sizes = [8, 64], strides = [1, 1]} : vector<8x192xf32> to vector<8x64xf32>
    %80 = vector.extract_strided_slice %76 {offsets = [0, 64], sizes = [8, 64], strides = [1, 1]} : vector<8x192xf32> to vector<8x64xf32>
    %81 = vector.extract_strided_slice %76 {offsets = [0, 128], sizes = [8, 64], strides = [1, 1]} : vector<8x192xf32> to vector<8x64xf32>
    %82 = arith.mulf %80, %45 : vector<8x64xf32>
    %83 = arith.mulf %79, %78 : vector<8x64xf32>
    %84 = arith.addf %82, %83 : vector<8x64xf32>
    %85 = math.tanh %84 : vector<8x64xf32>
    %86 = arith.mulf %81, %85 : vector<8x64xf32>
    %cst_22 = arith.constant dense<0.000000e+00> : vector<8x256xf32>
    %87 = tpu.matmul %86, %8, %cst_22 {dimension_numbers = #tpu.dot_dimension_numbers<[1], [0], [0], [1], [0, 0, 1, 1], [], []>} : vector<8x64xf32>, vector<64x256xf32>, vector<8x256xf32> -> vector<8x256xf32>
    %88 = arith.addf %87, %11 : vector<8x256xf32>
    %89 = vector.extract_strided_slice %5 {offsets = [16, 0], sizes = [8, 256], strides = [1, 1]} : vector<64x256xf32> to vector<8x256xf32>
    %cst_23 = arith.constant dense<0.000000e+00> : vector<8x256xf32>
    %90 = tpu.matmul %68, %6, %cst_23 {dimension_numbers = #tpu.dot_dimension_numbers<[1], [0], [0], [1], [0, 0, 1, 1], [], []>} : vector<8x64xf32>, vector<64x256xf32>, vector<8x256xf32> -> vector<8x256xf32>
    %91 = arith.addf %90, %89 : vector<8x256xf32>
    %92 = vector.extract_strided_slice %91 {offsets = [0, 0], sizes = [8, 192], strides = [1, 1]} : vector<8x256xf32> to vector<8x192xf32>
    %93 = arith.negf %92 : vector<8x192xf32>
    %94 = math.exp %93 : vector<8x192xf32>
    %cst_24 = arith.constant 1.000000e+00 : f32
    %95 = vector.broadcast %cst_24 : f32 to vector<8x192xf32>
    %96 = arith.addf %95, %94 : vector<8x192xf32>
    %97 = arith.divf %95, %96 : vector<8x192xf32>
    %98 = vector.extract_strided_slice %91 {offsets = [0, 192], sizes = [8, 64], strides = [1, 1]} : vector<8x256xf32> to vector<8x64xf32>
    %99 = math.tanh %98 : vector<8x64xf32>
    %100 = vector.extract_strided_slice %97 {offsets = [0, 0], sizes = [8, 64], strides = [1, 1]} : vector<8x192xf32> to vector<8x64xf32>
    %101 = vector.extract_strided_slice %97 {offsets = [0, 64], sizes = [8, 64], strides = [1, 1]} : vector<8x192xf32> to vector<8x64xf32>
    %102 = vector.extract_strided_slice %97 {offsets = [0, 128], sizes = [8, 64], strides = [1, 1]} : vector<8x192xf32> to vector<8x64xf32>
    %103 = arith.mulf %101, %66 : vector<8x64xf32>
    %104 = arith.mulf %100, %99 : vector<8x64xf32>
    %105 = arith.addf %103, %104 : vector<8x64xf32>
    %106 = math.tanh %105 : vector<8x64xf32>
    %107 = arith.mulf %102, %106 : vector<8x64xf32>
    %cst_25 = arith.constant dense<0.000000e+00> : vector<8x256xf32>
    %108 = tpu.matmul %107, %7, %cst_25 {dimension_numbers = #tpu.dot_dimension_numbers<[1], [0], [0], [1], [0, 0, 1, 1], [], []>} : vector<8x64xf32>, vector<64x256xf32>, vector<8x256xf32> -> vector<8x256xf32>
    %109 = arith.addf %108, %88 : vector<8x256xf32>
    %110 = vector.extract_strided_slice %109 {offsets = [0, 0], sizes = [8, 192], strides = [1, 1]} : vector<8x256xf32> to vector<8x192xf32>
    %111 = arith.negf %110 : vector<8x192xf32>
    %112 = math.exp %111 : vector<8x192xf32>
    %cst_26 = arith.constant 1.000000e+00 : f32
    %113 = vector.broadcast %cst_26 : f32 to vector<8x192xf32>
    %114 = arith.addf %113, %112 : vector<8x192xf32>
    %115 = arith.divf %113, %114 : vector<8x192xf32>
    %116 = vector.extract_strided_slice %109 {offsets = [0, 192], sizes = [8, 64], strides = [1, 1]} : vector<8x256xf32> to vector<8x64xf32>
    %117 = math.tanh %116 : vector<8x64xf32>
    %118 = vector.extract_strided_slice %115 {offsets = [0, 0], sizes = [8, 64], strides = [1, 1]} : vector<8x192xf32> to vector<8x64xf32>
    %119 = vector.extract_strided_slice %115 {offsets = [0, 64], sizes = [8, 64], strides = [1, 1]} : vector<8x192xf32> to vector<8x64xf32>
    %120 = vector.extract_strided_slice %115 {offsets = [0, 128], sizes = [8, 64], strides = [1, 1]} : vector<8x192xf32> to vector<8x64xf32>
    %121 = arith.mulf %119, %84 : vector<8x64xf32>
    %122 = arith.mulf %118, %117 : vector<8x64xf32>
    %123 = arith.addf %121, %122 : vector<8x64xf32>
    %124 = math.tanh %123 : vector<8x64xf32>
    %125 = arith.mulf %120, %124 : vector<8x64xf32>
    %cst_27 = arith.constant dense<0.000000e+00> : vector<8x256xf32>
    %126 = tpu.matmul %125, %8, %cst_27 {dimension_numbers = #tpu.dot_dimension_numbers<[1], [0], [0], [1], [0, 0, 1, 1], [], []>} : vector<8x64xf32>, vector<64x256xf32>, vector<8x256xf32> -> vector<8x256xf32>
    %127 = arith.addf %126, %11 : vector<8x256xf32>
    %128 = vector.extract_strided_slice %5 {offsets = [24, 0], sizes = [8, 256], strides = [1, 1]} : vector<64x256xf32> to vector<8x256xf32>
    %cst_28 = arith.constant dense<0.000000e+00> : vector<8x256xf32>
    %129 = tpu.matmul %107, %6, %cst_28 {dimension_numbers = #tpu.dot_dimension_numbers<[1], [0], [0], [1], [0, 0, 1, 1], [], []>} : vector<8x64xf32>, vector<64x256xf32>, vector<8x256xf32> -> vector<8x256xf32>
    %130 = arith.addf %129, %128 : vector<8x256xf32>
    %131 = vector.extract_strided_slice %130 {offsets = [0, 0], sizes = [8, 192], strides = [1, 1]} : vector<8x256xf32> to vector<8x192xf32>
    %132 = arith.negf %131 : vector<8x192xf32>
    %133 = math.exp %132 : vector<8x192xf32>
    %cst_29 = arith.constant 1.000000e+00 : f32
    %134 = vector.broadcast %cst_29 : f32 to vector<8x192xf32>
    %135 = arith.addf %134, %133 : vector<8x192xf32>
    %136 = arith.divf %134, %135 : vector<8x192xf32>
    %137 = vector.extract_strided_slice %130 {offsets = [0, 192], sizes = [8, 64], strides = [1, 1]} : vector<8x256xf32> to vector<8x64xf32>
    %138 = math.tanh %137 : vector<8x64xf32>
    %139 = vector.extract_strided_slice %136 {offsets = [0, 0], sizes = [8, 64], strides = [1, 1]} : vector<8x192xf32> to vector<8x64xf32>
    %140 = vector.extract_strided_slice %136 {offsets = [0, 64], sizes = [8, 64], strides = [1, 1]} : vector<8x192xf32> to vector<8x64xf32>
    %141 = vector.extract_strided_slice %136 {offsets = [0, 128], sizes = [8, 64], strides = [1, 1]} : vector<8x192xf32> to vector<8x64xf32>
    %142 = arith.mulf %140, %105 : vector<8x64xf32>
    %143 = arith.mulf %139, %138 : vector<8x64xf32>
    %144 = arith.addf %142, %143 : vector<8x64xf32>
    %145 = math.tanh %144 : vector<8x64xf32>
    %146 = arith.mulf %141, %145 : vector<8x64xf32>
    %cst_30 = arith.constant dense<0.000000e+00> : vector<8x256xf32>
    %147 = tpu.matmul %146, %7, %cst_30 {dimension_numbers = #tpu.dot_dimension_numbers<[1], [0], [0], [1], [0, 0, 1, 1], [], []>} : vector<8x64xf32>, vector<64x256xf32>, vector<8x256xf32> -> vector<8x256xf32>
    %148 = arith.addf %147, %127 : vector<8x256xf32>
    %149 = vector.extract_strided_slice %148 {offsets = [0, 0], sizes = [8, 192], strides = [1, 1]} : vector<8x256xf32> to vector<8x192xf32>
    %150 = arith.negf %149 : vector<8x192xf32>
    %151 = math.exp %150 : vector<8x192xf32>
    %cst_31 = arith.constant 1.000000e+00 : f32
    %152 = vector.broadcast %cst_31 : f32 to vector<8x192xf32>
    %153 = arith.addf %152, %151 : vector<8x192xf32>
    %154 = arith.divf %152, %153 : vector<8x192xf32>
    %155 = vector.extract_strided_slice %148 {offsets = [0, 192], sizes = [8, 64], strides = [1, 1]} : vector<8x256xf32> to vector<8x64xf32>
    %156 = math.tanh %155 : vector<8x64xf32>
    %157 = vector.extract_strided_slice %154 {offsets = [0, 0], sizes = [8, 64], strides = [1, 1]} : vector<8x192xf32> to vector<8x64xf32>
    %158 = vector.extract_strided_slice %154 {offsets = [0, 64], sizes = [8, 64], strides = [1, 1]} : vector<8x192xf32> to vector<8x64xf32>
    %159 = vector.extract_strided_slice %154 {offsets = [0, 128], sizes = [8, 64], strides = [1, 1]} : vector<8x192xf32> to vector<8x64xf32>
    %160 = arith.mulf %158, %123 : vector<8x64xf32>
    %161 = arith.mulf %157, %156 : vector<8x64xf32>
    %162 = arith.addf %160, %161 : vector<8x64xf32>
    %163 = math.tanh %162 : vector<8x64xf32>
    %164 = arith.mulf %159, %163 : vector<8x64xf32>
    %cst_32 = arith.constant dense<0.000000e+00> : vector<8x256xf32>
    %165 = tpu.matmul %164, %8, %cst_32 {dimension_numbers = #tpu.dot_dimension_numbers<[1], [0], [0], [1], [0, 0, 1, 1], [], []>} : vector<8x64xf32>, vector<64x256xf32>, vector<8x256xf32> -> vector<8x256xf32>
    %166 = arith.addf %165, %11 : vector<8x256xf32>
    %167 = vector.extract_strided_slice %5 {offsets = [32, 0], sizes = [8, 256], strides = [1, 1]} : vector<64x256xf32> to vector<8x256xf32>
    %cst_33 = arith.constant dense<0.000000e+00> : vector<8x256xf32>
    %168 = tpu.matmul %146, %6, %cst_33 {dimension_numbers = #tpu.dot_dimension_numbers<[1], [0], [0], [1], [0, 0, 1, 1], [], []>} : vector<8x64xf32>, vector<64x256xf32>, vector<8x256xf32> -> vector<8x256xf32>
    %169 = arith.addf %168, %167 : vector<8x256xf32>
    %170 = vector.extract_strided_slice %169 {offsets = [0, 0], sizes = [8, 192], strides = [1, 1]} : vector<8x256xf32> to vector<8x192xf32>
    %171 = arith.negf %170 : vector<8x192xf32>
    %172 = math.exp %171 : vector<8x192xf32>
    %cst_34 = arith.constant 1.000000e+00 : f32
    %173 = vector.broadcast %cst_34 : f32 to vector<8x192xf32>
    %174 = arith.addf %173, %172 : vector<8x192xf32>
    %175 = arith.divf %173, %174 : vector<8x192xf32>
    %176 = vector.extract_strided_slice %169 {offsets = [0, 192], sizes = [8, 64], strides = [1, 1]} : vector<8x256xf32> to vector<8x64xf32>
    %177 = math.tanh %176 : vector<8x64xf32>
    %178 = vector.extract_strided_slice %175 {offsets = [0, 0], sizes = [8, 64], strides = [1, 1]} : vector<8x192xf32> to vector<8x64xf32>
    %179 = vector.extract_strided_slice %175 {offsets = [0, 64], sizes = [8, 64], strides = [1, 1]} : vector<8x192xf32> to vector<8x64xf32>
    %180 = vector.extract_strided_slice %175 {offsets = [0, 128], sizes = [8, 64], strides = [1, 1]} : vector<8x192xf32> to vector<8x64xf32>
    %181 = arith.mulf %179, %144 : vector<8x64xf32>
    %182 = arith.mulf %178, %177 : vector<8x64xf32>
    %183 = arith.addf %181, %182 : vector<8x64xf32>
    %184 = math.tanh %183 : vector<8x64xf32>
    %185 = arith.mulf %180, %184 : vector<8x64xf32>
    %cst_35 = arith.constant dense<0.000000e+00> : vector<8x256xf32>
    %186 = tpu.matmul %185, %7, %cst_35 {dimension_numbers = #tpu.dot_dimension_numbers<[1], [0], [0], [1], [0, 0, 1, 1], [], []>} : vector<8x64xf32>, vector<64x256xf32>, vector<8x256xf32> -> vector<8x256xf32>
    %187 = arith.addf %186, %166 : vector<8x256xf32>
    %188 = vector.extract_strided_slice %187 {offsets = [0, 0], sizes = [8, 192], strides = [1, 1]} : vector<8x256xf32> to vector<8x192xf32>
    %189 = arith.negf %188 : vector<8x192xf32>
    %190 = math.exp %189 : vector<8x192xf32>
    %cst_36 = arith.constant 1.000000e+00 : f32
    %191 = vector.broadcast %cst_36 : f32 to vector<8x192xf32>
    %192 = arith.addf %191, %190 : vector<8x192xf32>
    %193 = arith.divf %191, %192 : vector<8x192xf32>
    %194 = vector.extract_strided_slice %187 {offsets = [0, 192], sizes = [8, 64], strides = [1, 1]} : vector<8x256xf32> to vector<8x64xf32>
    %195 = math.tanh %194 : vector<8x64xf32>
    %196 = vector.extract_strided_slice %193 {offsets = [0, 0], sizes = [8, 64], strides = [1, 1]} : vector<8x192xf32> to vector<8x64xf32>
    %197 = vector.extract_strided_slice %193 {offsets = [0, 64], sizes = [8, 64], strides = [1, 1]} : vector<8x192xf32> to vector<8x64xf32>
    %198 = vector.extract_strided_slice %193 {offsets = [0, 128], sizes = [8, 64], strides = [1, 1]} : vector<8x192xf32> to vector<8x64xf32>
    %199 = arith.mulf %197, %162 : vector<8x64xf32>
    %200 = arith.mulf %196, %195 : vector<8x64xf32>
    %201 = arith.addf %199, %200 : vector<8x64xf32>
    %202 = math.tanh %201 : vector<8x64xf32>
    %203 = arith.mulf %198, %202 : vector<8x64xf32>
    %cst_37 = arith.constant dense<0.000000e+00> : vector<8x256xf32>
    %204 = tpu.matmul %203, %8, %cst_37 {dimension_numbers = #tpu.dot_dimension_numbers<[1], [0], [0], [1], [0, 0, 1, 1], [], []>} : vector<8x64xf32>, vector<64x256xf32>, vector<8x256xf32> -> vector<8x256xf32>
    %205 = arith.addf %204, %11 : vector<8x256xf32>
    %206 = vector.extract_strided_slice %5 {offsets = [40, 0], sizes = [8, 256], strides = [1, 1]} : vector<64x256xf32> to vector<8x256xf32>
    %cst_38 = arith.constant dense<0.000000e+00> : vector<8x256xf32>
    %207 = tpu.matmul %185, %6, %cst_38 {dimension_numbers = #tpu.dot_dimension_numbers<[1], [0], [0], [1], [0, 0, 1, 1], [], []>} : vector<8x64xf32>, vector<64x256xf32>, vector<8x256xf32> -> vector<8x256xf32>
    %208 = arith.addf %207, %206 : vector<8x256xf32>
    %209 = vector.extract_strided_slice %208 {offsets = [0, 0], sizes = [8, 192], strides = [1, 1]} : vector<8x256xf32> to vector<8x192xf32>
    %210 = arith.negf %209 : vector<8x192xf32>
    %211 = math.exp %210 : vector<8x192xf32>
    %cst_39 = arith.constant 1.000000e+00 : f32
    %212 = vector.broadcast %cst_39 : f32 to vector<8x192xf32>
    %213 = arith.addf %212, %211 : vector<8x192xf32>
    %214 = arith.divf %212, %213 : vector<8x192xf32>
    %215 = vector.extract_strided_slice %208 {offsets = [0, 192], sizes = [8, 64], strides = [1, 1]} : vector<8x256xf32> to vector<8x64xf32>
    %216 = math.tanh %215 : vector<8x64xf32>
    %217 = vector.extract_strided_slice %214 {offsets = [0, 0], sizes = [8, 64], strides = [1, 1]} : vector<8x192xf32> to vector<8x64xf32>
    %218 = vector.extract_strided_slice %214 {offsets = [0, 64], sizes = [8, 64], strides = [1, 1]} : vector<8x192xf32> to vector<8x64xf32>
    %219 = vector.extract_strided_slice %214 {offsets = [0, 128], sizes = [8, 64], strides = [1, 1]} : vector<8x192xf32> to vector<8x64xf32>
    %220 = arith.mulf %218, %183 : vector<8x64xf32>
    %221 = arith.mulf %217, %216 : vector<8x64xf32>
    %222 = arith.addf %220, %221 : vector<8x64xf32>
    %223 = math.tanh %222 : vector<8x64xf32>
    %224 = arith.mulf %219, %223 : vector<8x64xf32>
    %cst_40 = arith.constant dense<0.000000e+00> : vector<8x256xf32>
    %225 = tpu.matmul %224, %7, %cst_40 {dimension_numbers = #tpu.dot_dimension_numbers<[1], [0], [0], [1], [0, 0, 1, 1], [], []>} : vector<8x64xf32>, vector<64x256xf32>, vector<8x256xf32> -> vector<8x256xf32>
    %226 = arith.addf %225, %205 : vector<8x256xf32>
    %227 = vector.extract_strided_slice %226 {offsets = [0, 0], sizes = [8, 192], strides = [1, 1]} : vector<8x256xf32> to vector<8x192xf32>
    %228 = arith.negf %227 : vector<8x192xf32>
    %229 = math.exp %228 : vector<8x192xf32>
    %cst_41 = arith.constant 1.000000e+00 : f32
    %230 = vector.broadcast %cst_41 : f32 to vector<8x192xf32>
    %231 = arith.addf %230, %229 : vector<8x192xf32>
    %232 = arith.divf %230, %231 : vector<8x192xf32>
    %233 = vector.extract_strided_slice %226 {offsets = [0, 192], sizes = [8, 64], strides = [1, 1]} : vector<8x256xf32> to vector<8x64xf32>
    %234 = math.tanh %233 : vector<8x64xf32>
    %235 = vector.extract_strided_slice %232 {offsets = [0, 0], sizes = [8, 64], strides = [1, 1]} : vector<8x192xf32> to vector<8x64xf32>
    %236 = vector.extract_strided_slice %232 {offsets = [0, 64], sizes = [8, 64], strides = [1, 1]} : vector<8x192xf32> to vector<8x64xf32>
    %237 = vector.extract_strided_slice %232 {offsets = [0, 128], sizes = [8, 64], strides = [1, 1]} : vector<8x192xf32> to vector<8x64xf32>
    %238 = arith.mulf %236, %201 : vector<8x64xf32>
    %239 = arith.mulf %235, %234 : vector<8x64xf32>
    %240 = arith.addf %238, %239 : vector<8x64xf32>
    %241 = math.tanh %240 : vector<8x64xf32>
    %242 = arith.mulf %237, %241 : vector<8x64xf32>
    %cst_42 = arith.constant dense<0.000000e+00> : vector<8x256xf32>
    %243 = tpu.matmul %242, %8, %cst_42 {dimension_numbers = #tpu.dot_dimension_numbers<[1], [0], [0], [1], [0, 0, 1, 1], [], []>} : vector<8x64xf32>, vector<64x256xf32>, vector<8x256xf32> -> vector<8x256xf32>
    %244 = arith.addf %243, %11 : vector<8x256xf32>
    %245 = vector.extract_strided_slice %5 {offsets = [48, 0], sizes = [8, 256], strides = [1, 1]} : vector<64x256xf32> to vector<8x256xf32>
    %cst_43 = arith.constant dense<0.000000e+00> : vector<8x256xf32>
    %246 = tpu.matmul %224, %6, %cst_43 {dimension_numbers = #tpu.dot_dimension_numbers<[1], [0], [0], [1], [0, 0, 1, 1], [], []>} : vector<8x64xf32>, vector<64x256xf32>, vector<8x256xf32> -> vector<8x256xf32>
    %247 = arith.addf %246, %245 : vector<8x256xf32>
    %248 = vector.extract_strided_slice %247 {offsets = [0, 0], sizes = [8, 192], strides = [1, 1]} : vector<8x256xf32> to vector<8x192xf32>
    %249 = arith.negf %248 : vector<8x192xf32>
    %250 = math.exp %249 : vector<8x192xf32>
    %cst_44 = arith.constant 1.000000e+00 : f32
    %251 = vector.broadcast %cst_44 : f32 to vector<8x192xf32>
    %252 = arith.addf %251, %250 : vector<8x192xf32>
    %253 = arith.divf %251, %252 : vector<8x192xf32>
    %254 = vector.extract_strided_slice %247 {offsets = [0, 192], sizes = [8, 64], strides = [1, 1]} : vector<8x256xf32> to vector<8x64xf32>
    %255 = math.tanh %254 : vector<8x64xf32>
    %256 = vector.extract_strided_slice %253 {offsets = [0, 0], sizes = [8, 64], strides = [1, 1]} : vector<8x192xf32> to vector<8x64xf32>
    %257 = vector.extract_strided_slice %253 {offsets = [0, 64], sizes = [8, 64], strides = [1, 1]} : vector<8x192xf32> to vector<8x64xf32>
    %258 = vector.extract_strided_slice %253 {offsets = [0, 128], sizes = [8, 64], strides = [1, 1]} : vector<8x192xf32> to vector<8x64xf32>
    %259 = arith.mulf %257, %222 : vector<8x64xf32>
    %260 = arith.mulf %256, %255 : vector<8x64xf32>
    %261 = arith.addf %259, %260 : vector<8x64xf32>
    %262 = math.tanh %261 : vector<8x64xf32>
    %263 = arith.mulf %258, %262 : vector<8x64xf32>
    %cst_45 = arith.constant dense<0.000000e+00> : vector<8x256xf32>
    %264 = tpu.matmul %263, %7, %cst_45 {dimension_numbers = #tpu.dot_dimension_numbers<[1], [0], [0], [1], [0, 0, 1, 1], [], []>} : vector<8x64xf32>, vector<64x256xf32>, vector<8x256xf32> -> vector<8x256xf32>
    %265 = arith.addf %264, %244 : vector<8x256xf32>
    %266 = vector.extract_strided_slice %265 {offsets = [0, 0], sizes = [8, 192], strides = [1, 1]} : vector<8x256xf32> to vector<8x192xf32>
    %267 = arith.negf %266 : vector<8x192xf32>
    %268 = math.exp %267 : vector<8x192xf32>
    %cst_46 = arith.constant 1.000000e+00 : f32
    %269 = vector.broadcast %cst_46 : f32 to vector<8x192xf32>
    %270 = arith.addf %269, %268 : vector<8x192xf32>
    %271 = arith.divf %269, %270 : vector<8x192xf32>
    %272 = vector.extract_strided_slice %265 {offsets = [0, 192], sizes = [8, 64], strides = [1, 1]} : vector<8x256xf32> to vector<8x64xf32>
    %273 = math.tanh %272 : vector<8x64xf32>
    %274 = vector.extract_strided_slice %271 {offsets = [0, 0], sizes = [8, 64], strides = [1, 1]} : vector<8x192xf32> to vector<8x64xf32>
    %275 = vector.extract_strided_slice %271 {offsets = [0, 64], sizes = [8, 64], strides = [1, 1]} : vector<8x192xf32> to vector<8x64xf32>
    %276 = vector.extract_strided_slice %271 {offsets = [0, 128], sizes = [8, 64], strides = [1, 1]} : vector<8x192xf32> to vector<8x64xf32>
    %277 = arith.mulf %275, %240 : vector<8x64xf32>
    %278 = arith.mulf %274, %273 : vector<8x64xf32>
    %279 = arith.addf %277, %278 : vector<8x64xf32>
    %280 = math.tanh %279 : vector<8x64xf32>
    %281 = arith.mulf %276, %280 : vector<8x64xf32>
    %cst_47 = arith.constant dense<0.000000e+00> : vector<8x256xf32>
    %282 = tpu.matmul %281, %8, %cst_47 {dimension_numbers = #tpu.dot_dimension_numbers<[1], [0], [0], [1], [0, 0, 1, 1], [], []>} : vector<8x64xf32>, vector<64x256xf32>, vector<8x256xf32> -> vector<8x256xf32>
    %283 = arith.addf %282, %11 : vector<8x256xf32>
    %284 = vector.extract_strided_slice %5 {offsets = [56, 0], sizes = [8, 256], strides = [1, 1]} : vector<64x256xf32> to vector<8x256xf32>
    %cst_48 = arith.constant dense<0.000000e+00> : vector<8x256xf32>
    %285 = tpu.matmul %263, %6, %cst_48 {dimension_numbers = #tpu.dot_dimension_numbers<[1], [0], [0], [1], [0, 0, 1, 1], [], []>} : vector<8x64xf32>, vector<64x256xf32>, vector<8x256xf32> -> vector<8x256xf32>
    %286 = arith.addf %285, %284 : vector<8x256xf32>
    %287 = vector.extract_strided_slice %286 {offsets = [0, 0], sizes = [8, 192], strides = [1, 1]} : vector<8x256xf32> to vector<8x192xf32>
    %288 = arith.negf %287 : vector<8x192xf32>
    %289 = math.exp %288 : vector<8x192xf32>
    %cst_49 = arith.constant 1.000000e+00 : f32
    %290 = vector.broadcast %cst_49 : f32 to vector<8x192xf32>
    %291 = arith.addf %290, %289 : vector<8x192xf32>
    %292 = arith.divf %290, %291 : vector<8x192xf32>
    %293 = vector.extract_strided_slice %286 {offsets = [0, 192], sizes = [8, 64], strides = [1, 1]} : vector<8x256xf32> to vector<8x64xf32>
    %294 = math.tanh %293 : vector<8x64xf32>
    %295 = vector.extract_strided_slice %292 {offsets = [0, 0], sizes = [8, 64], strides = [1, 1]} : vector<8x192xf32> to vector<8x64xf32>
    %296 = vector.extract_strided_slice %292 {offsets = [0, 64], sizes = [8, 64], strides = [1, 1]} : vector<8x192xf32> to vector<8x64xf32>
    %297 = vector.extract_strided_slice %292 {offsets = [0, 128], sizes = [8, 64], strides = [1, 1]} : vector<8x192xf32> to vector<8x64xf32>
    %298 = arith.mulf %296, %261 : vector<8x64xf32>
    %299 = arith.mulf %295, %294 : vector<8x64xf32>
    %300 = arith.addf %298, %299 : vector<8x64xf32>
    %301 = math.tanh %300 : vector<8x64xf32>
    %302 = arith.mulf %297, %301 : vector<8x64xf32>
    %cst_50 = arith.constant dense<0.000000e+00> : vector<8x256xf32>
    %303 = tpu.matmul %302, %7, %cst_50 {dimension_numbers = #tpu.dot_dimension_numbers<[1], [0], [0], [1], [0, 0, 1, 1], [], []>} : vector<8x64xf32>, vector<64x256xf32>, vector<8x256xf32> -> vector<8x256xf32>
    %304 = arith.addf %303, %283 : vector<8x256xf32>
    %305 = vector.extract_strided_slice %304 {offsets = [0, 0], sizes = [8, 192], strides = [1, 1]} : vector<8x256xf32> to vector<8x192xf32>
    %306 = arith.negf %305 : vector<8x192xf32>
    %307 = math.exp %306 : vector<8x192xf32>
    %cst_51 = arith.constant 1.000000e+00 : f32
    %308 = vector.broadcast %cst_51 : f32 to vector<8x192xf32>
    %309 = arith.addf %308, %307 : vector<8x192xf32>
    %310 = arith.divf %308, %309 : vector<8x192xf32>
    %311 = vector.extract_strided_slice %304 {offsets = [0, 192], sizes = [8, 64], strides = [1, 1]} : vector<8x256xf32> to vector<8x64xf32>
    %312 = math.tanh %311 : vector<8x64xf32>
    %313 = vector.extract_strided_slice %310 {offsets = [0, 0], sizes = [8, 64], strides = [1, 1]} : vector<8x192xf32> to vector<8x64xf32>
    %314 = vector.extract_strided_slice %310 {offsets = [0, 64], sizes = [8, 64], strides = [1, 1]} : vector<8x192xf32> to vector<8x64xf32>
    %315 = vector.extract_strided_slice %310 {offsets = [0, 128], sizes = [8, 64], strides = [1, 1]} : vector<8x192xf32> to vector<8x64xf32>
    %316 = arith.mulf %314, %279 : vector<8x64xf32>
    %317 = arith.mulf %313, %312 : vector<8x64xf32>
    %318 = arith.addf %316, %317 : vector<8x64xf32>
    %319 = math.tanh %318 : vector<8x64xf32>
    %320 = arith.mulf %315, %319 : vector<8x64xf32>
    %c0_52 = arith.constant 0 : index
    %c0_53 = arith.constant 0 : index
    %321 = vector.load %arg7[%c0_52, %c0_53] : memref<64x64xf32, #tpu.memory_space<vmem>>, vector<64x64xf32>
    %cst_54 = arith.constant dense<0.000000e+00> : vector<8x64xf32>
    %322 = tpu.matmul %320, %321, %cst_54 {dimension_numbers = #tpu.dot_dimension_numbers<[1], [0], [0], [1], [0, 0, 1, 1], [], []>} : vector<8x64xf32>, vector<64x64xf32>, vector<8x64xf32> -> vector<8x64xf32>
    %c0_55 = arith.constant 0 : index
    %c0_56 = arith.constant 0 : index
    %323 = vector.load %arg8[%c0_55, %c0_56] : memref<1x64xf32, #tpu.memory_space<vmem>>, vector<1x64xf32>
    %324 = vector.broadcast %323 : vector<1x64xf32> to vector<8x64xf32>
    %325 = arith.addf %322, %324 : vector<8x64xf32>
    %cst_57 = arith.constant 0.000000e+00 : f32
    %326 = vector.broadcast %cst_57 : f32 to vector<8x64xf32>
    %327 = arith.maximumf %325, %326 : vector<8x64xf32>
    %c0_58 = arith.constant 0 : index
    %c0_59 = arith.constant 0 : index
    %328 = vector.load %arg9[%c0_58, %c0_59] : memref<64x3xf32, #tpu.memory_space<vmem>>, vector<64x3xf32>
    %cst_60 = arith.constant dense<0.000000e+00> : vector<8x3xf32>
    %329 = tpu.matmul %327, %328, %cst_60 {dimension_numbers = #tpu.dot_dimension_numbers<[1], [0], [0], [1], [0, 0, 1, 1], [], []>} : vector<8x64xf32>, vector<64x3xf32>, vector<8x3xf32> -> vector<8x3xf32>
    %c0_61 = arith.constant 0 : index
    %c0_62 = arith.constant 0 : index
    %330 = vector.load %arg10[%c0_61, %c0_62] : memref<1x3xf32, #tpu.memory_space<vmem>>, vector<1x3xf32>
    %331 = vector.broadcast %330 : vector<1x3xf32> to vector<8x3xf32>
    %332 = arith.addf %329, %331 : vector<8x3xf32>
    %c0_63 = arith.constant 0 : index
    %c0_64 = arith.constant 0 : index
    %333 = vector.load %arg11[%c0_63, %c0_64] : memref<8x3xf32, #tpu.memory_space<vmem>>, vector<8x3xf32>
    tpu.vector_store %arg11[%c0_63, %c0_64], %332 {strides = array<i32>} : memref<8x3xf32, #tpu.memory_space<vmem>>, vector<8x3xf32>,
    %c0_65 = arith.constant 0 : index
    %c0_66 = arith.constant 0 : index
    %c0_67 = arith.constant 0 : index
    %334 = vector.load %arg12[%c0_65, %c0_66, %c0_67] : memref<4x8x64xf32, #tpu.memory_space<vmem>>, vector<1x8x64xf32>
    %335 = vector.shape_cast %334 : vector<1x8x64xf32> to vector<8x64xf32>
    %336 = vector.shape_cast %302 : vector<8x64xf32> to vector<1x8x64xf32>
    tpu.vector_store %arg12[%c0_65, %c0_66, %c0_67], %336 {strides = array<i32>} : memref<4x8x64xf32, #tpu.memory_space<vmem>>, vector<1x8x64xf32>,
    %c1 = arith.constant 1 : index
    %c0_68 = arith.constant 0 : index
    %c0_69 = arith.constant 0 : index
    %337 = vector.load %arg12[%c1, %c0_68, %c0_69] : memref<4x8x64xf32, #tpu.memory_space<vmem>>, vector<1x8x64xf32>
    %338 = vector.shape_cast %337 : vector<1x8x64xf32> to vector<8x64xf32>
    %339 = vector.shape_cast %320 : vector<8x64xf32> to vector<1x8x64xf32>
    tpu.vector_store %arg12[%c1, %c0_68, %c0_69], %339 {strides = array<i32>} : memref<4x8x64xf32, #tpu.memory_space<vmem>>, vector<1x8x64xf32>,
    %c2 = arith.constant 2 : index
    %c0_70 = arith.constant 0 : index
    %c0_71 = arith.constant 0 : index
    %340 = vector.load %arg12[%c2, %c0_70, %c0_71] : memref<4x8x64xf32, #tpu.memory_space<vmem>>, vector<1x8x64xf32>
    %341 = vector.shape_cast %340 : vector<1x8x64xf32> to vector<8x64xf32>
    %342 = vector.shape_cast %300 : vector<8x64xf32> to vector<1x8x64xf32>
    tpu.vector_store %arg12[%c2, %c0_70, %c0_71], %342 {strides = array<i32>} : memref<4x8x64xf32, #tpu.memory_space<vmem>>, vector<1x8x64xf32>,
    %c3 = arith.constant 3 : index
    %c0_72 = arith.constant 0 : index
    %c0_73 = arith.constant 0 : index
    %343 = vector.load %arg12[%c3, %c0_72, %c0_73] : memref<4x8x64xf32, #tpu.memory_space<vmem>>, vector<1x8x64xf32>
    %344 = vector.shape_cast %343 : vector<1x8x64xf32> to vector<8x64xf32>
    %345 = vector.shape_cast %318 : vector<8x64xf32> to vector<1x8x64xf32>
    tpu.vector_store %arg12[%c3, %c0_72, %c0_73], %345 {strides = array<i32>} : memref<4x8x64xf32, #tpu.memory_space<vmem>>, vector<1x8x64xf32>,
    return
  }
}

</mosaic_0001>

<llo_original>
// kernel: torque_predictor.1
$region0: #{torque_predictor.1}
  #allocation0 [shape = 'u32[]', space=smem, size = 0x4, offset = 0x4, fixed_abs, tag = 'smem constant byte address 0x4 - core index']
  #allocation1 [shape = 'u32[144,128]{1,0:T(1,128)}', space=vmem, size = 0x12000, scoped, tag = 'internal scratch']
  %s0 = inlined_call_operand.vmem [shape: f32[64,3], index: 0, kind: input, shape index: {}]
  %s1 = inlined_call_operand.vmem [shape: f32[3,256], index: 1, kind: input, shape index: {}]
  %s2 = inlined_call_operand.vmem [shape: f32[64,256], index: 2, kind: input, shape index: {}]
  %s3 = inlined_call_operand.vmem [shape: f32[1,256], index: 3, kind: input, shape index: {}]
  %s4 = inlined_call_operand.hbm [shape: f32[64,256], index: 4, kind: input, shape index: {}]
  %s5 = inlined_call_operand.hbm [shape: f32[64,256], index: 5, kind: input, shape index: {}]
  %s6 = inlined_call_operand.vmem [shape: f32[1,256], index: 6, kind: input, shape index: {}]
  %s7 = inlined_call_operand.vmem [shape: f32[64,64], index: 7, kind: input, shape index: {}]
  %s8 = inlined_call_operand.vmem [shape: f32[1,64], index: 8, kind: input, shape index: {}]
  %s9 = inlined_call_operand.vmem [shape: f32[64,3], index: 9, kind: input, shape index: {}]
  %s10 = inlined_call_operand.vmem [shape: f32[1,3], index: 10, kind: input, shape index: {}]
  %s11 = inlined_call_operand.vmem [shape: f32[8,3], index: 11, kind: output, shape index: {0}]
  %s12 = inlined_call_operand.vmem [shape: f32[4,8,64], index: 12, kind: output, shape index: {1}]
  %13 = xla_tuple %s11, %s12
  %s14 = sld [smem:[#allocation0]]
  $region70: #{torque_predictor.1} parent=0
    _
  %s16 = ssub.s32 1, %s14
  %s17 = scalar_select 0, %s16, %s14
  $region1: #{torque_predictor.1} parent=0
    #allocation2 [shape = 'u8[65536]{0}', space=vmem, size = 0x10000, scoped, tag = 'input window, operand 4, single buffered']
    #allocation3 [shape = 's32[1]{0}', space=sflag, size = 0x4, scoped, tag = 'scoped memory for torque_predictor.1']
    #allocation4 [shape = 'u8[65536]{0}', space=vmem, size = 0x10000, scoped, tag = 'input window, operand 5, single buffered']
    #allocation5 [shape = 's32[1]{0}', space=sflag, size = 0x4, scoped, tag = 'scoped memory for torque_predictor.1']
    %18 = vsyncpa [#allocation3], 0
    %19 = vsyncpa [#allocation5], 0
    // Predicated region
    $region2: #{torque_predictor.1} parent=1 // pred_check
      _
    $region3: #{torque_predictor.1} parent=1 // pred_check_branch
      %21 = sbr.rel (0) target = $region5
    $region4: #{torque_predictor.1} parent=1 // pred_region
      _
    $region5: #{torque_predictor.1} parent=1 // pred_fallthru
      _
    // Predicated region
    $region6: #{torque_predictor.1} parent=1 // pred_check
      _
    $region7: #{torque_predictor.1} parent=1 // pred_check_branch
      %23 = sbr.rel (0) target = $region9
    $region8: #{torque_predictor.1} parent=1 // pred_region
      _
    $region9: #{torque_predictor.1} parent=1 // pred_fallthru
      _
    // Predicated region
    $region10: #{torque_predictor.1} parent=1 // pred_check
      _
    $region11: #{torque_predictor.1} parent=1 // pred_check_branch
      %25 = sbr.rel (0) target = $region13
    $region12: #{torque_predictor.1} parent=1 // pred_region
      _
    $region13: #{torque_predictor.1} parent=1 // pred_fallthru
      _
    // Predicated region
    $region14: #{torque_predictor.1} parent=1 // pred_check
      _
    $region15: #{torque_predictor.1} parent=1 // pred_check_branch
      %27 = sbr.rel (0) target = $region17
    $region16: #{torque_predictor.1} parent=1 // pred_region
      _
    $region17: #{torque_predictor.1} parent=1 // pred_fallthru
      _
    // Predicated region
    $region18: #{torque_predictor.1} parent=1 // pred_check
      _
    $region19: #{torque_predictor.1} parent=1 // pred_check_branch
      %29 = sbr.rel (0) target = $region21
    $region20: #{torque_predictor.1} parent=1 // pred_region
      %s31 = ssub.s32 2048, 2048
      %32 = vsyncadd [#allocation3], %s31
      %s33 = sshll.u32 [#allocation2], 4
      %s34 = int_to_ptr.vmem [resolvable:$true] %s33
      %39 = dma.hbm_to_vmem [thread:$0]  %s4, 2048, %s34, [#allocation3], 256, 256, 16
    $region21: #{torque_predictor.1} parent=1 // pred_fallthru
      _
    // Predicated region
    $region22: #{torque_predictor.1} parent=1 // pred_check
      _
    $region23: #{torque_predictor.1} parent=1 // pred_check_branch
      %41 = sbr.rel (0) target = $region25
    $region24: #{torque_predictor.1} parent=1 // pred_region
      %s43 = ssub.s32 2048, 2048
      %44 = vsyncadd [#allocation5], %s43
      %s45 = sshll.u32 [#allocation4], 4
      %s46 = int_to_ptr.vmem [resolvable:$true] %s45
      %51 = dma.hbm_to_vmem [thread:$0]  %s5, 2048, %s46, [#allocation5], 256, 256, 16
    $region25: #{torque_predictor.1} parent=1 // pred_fallthru
      _
    // Predicated region
    $region26: #{torque_predictor.1} parent=1 // pred_check
      _
    $region27: #{torque_predictor.1} parent=1 // pred_check_branch
      %53 = sbr.rel (0) target = $region29
    $region28: #{torque_predictor.1} parent=1 // pred_region
      _
    $region29: #{torque_predictor.1} parent=1 // pred_fallthru
      _
    // Predicated region
    $region30: #{torque_predictor.1} parent=1 // pred_check
      _
    $region31: #{torque_predictor.1} parent=1 // pred_check_branch
      %55 = sbr.rel (0) target = $region33
    $region32: #{torque_predictor.1} parent=1 // pred_region
      _
    $region33: #{torque_predictor.1} parent=1 // pred_fallthru
      _
    // Predicated region
    $region34: #{torque_predictor.1} parent=1 // pred_check
      _
    $region35: #{torque_predictor.1} parent=1 // pred_check_branch
      %57 = sbr.rel (0) target = $region37
    $region36: #{torque_predictor.1} parent=1 // pred_region
      _
    $region37: #{torque_predictor.1} parent=1 // pred_fallthru
      _
    // Predicated region
    $region38: #{torque_predictor.1} parent=1 // pred_check
      _
    $region39: #{torque_predictor.1} parent=1 // pred_check_branch
      %59 = sbr.rel (0) target = $region41
    $region40: #{torque_predictor.1} parent=1 // pred_region
      _
    $region41: #{torque_predictor.1} parent=1 // pred_fallthru
      _
    // Predicated region
    $region42: #{torque_predictor.1} parent=1 // pred_check
      _
    $region43: #{torque_predictor.1} parent=1 // pred_check_branch
      %61 = sbr.rel (0) target = $region45
    $region44: #{torque_predictor.1} parent=1 // pred_region
      _
    $region45: #{torque_predictor.1} parent=1 // pred_fallthru
      _
    // Predicated region
    $region46: #{torque_predictor.1} parent=1 // pred_check
      _
    $region47: #{torque_predictor.1} parent=1 // pred_check_branch
      %63 = sbr.rel (0) target = $region49
    $region48: #{torque_predictor.1} parent=1 // pred_region
      %64 = dma.done [#allocation3], 2048
    $region49: #{torque_predictor.1} parent=1 // pred_fallthru
      _
    // Predicated region
    $region50: #{torque_predictor.1} parent=1 // pred_check
      _
    $region51: #{torque_predictor.1} parent=1 // pred_check_branch
      %66 = sbr.rel (0) target = $region53
    $region52: #{torque_predictor.1} parent=1 // pred_region
      %67 = dma.done [#allocation5], 2048
    $region53: #{torque_predictor.1} parent=1 // pred_fallthru
      _
    %v68 = vld [vmem:[%s0] sm:$0xff]
    %v69 = vld [vmem:[%s0 + $0x8] sm:$0xff]
    %v70 = vld [vmem:[%s0 + $0x10] sm:$0xff]
    %v71 = vld [vmem:[%s0 + $0x18] sm:$0xff]
    %v72 = vld [vmem:[%s0 + $0x20] sm:$0xff]
    %v73 = vld [vmem:[%s0 + $0x28] sm:$0xff]
    %v74 = vld [vmem:[%s0 + $0x30] sm:$0xff]
    %v75 = vld [vmem:[%s0 + $0x38] sm:$0xff]
    %v76 = vld [vmem:[%s1] sm:$0x77]
    %v77 = vld [vmem:[%s3] sm:$0x3]
    %v79 = vlaneseq
    %v80 = vshrl.u32 %v79, 7
    %v81 = vsub.s32 0, %v80
    %v82 = vrot.slane %v77, %v81
    %v83 = vlaneseq
    %v84 = vshrl.u32 %v83, 7
    %v85 = vsub.s32 1, %v84
    %v86 = vrot.slane %v77, %v85
    %v90 = vcombine.high %v76, %v76
    %vm91 = vcmask 23552
    %v93 = vsel %vm91, %v68, 0
    %v96 = vsel %vm91, %v69, 0
    %v99 = vsel %vm91, %v70, 0
    %v102 = vsel %vm91, %v71, 0
    %v105 = vsel %vm91, %v72, 0
    %v108 = vsel %vm91, %v73, 0
    %v111 = vsel %vm91, %v74, 0
    %v114 = vsel %vm91, %v75, 0
    %vm116 = vcmask 1042432
    %v117 = vsel %vm116, %v76, 0
    %v119 = vsel %vm116, %v90, 0
    %121 = vmatprep.subr.mxu0 %v119
    %122 = vmatpush1.msra.mxu0 %v117
    %123 = vmatprep.subr.mxu0 0.0
    %124 = vmatpush1.msra.mxu0 0.0
    %125 = vmatprep.subr.mxu0 0.0
    %126 = vmatpush1.msra.mxu0 0.0
    %127 = vmatprep.subr.mxu0 0.0
    %128 = vmatpush1.msra.mxu0 0.0
    %129 = vmatprep.subr.mxu0 0.0
    %130 = vmatpush1.msra.mxu0 0.0
    %131 = vmatprep.subr.mxu0 0.0
    %132 = vmatpush1.msra.mxu0 0.0
    %133 = vmatprep.subr.mxu0 0.0
    %134 = vmatpush1.msra.mxu0 0.0
    %135 = vmatprep.subr.mxu0 0.0
    %136 = vmatpush1.msra.mxu0 0.0
    %137 = vmatprep.subr.mxu0 0.0
    %138 = vmatpush1.msra.mxu0 0.0
    %139 = vmatprep.subr.mxu0 0.0
    %140 = vmatpush1.msra.mxu0 0.0
    %141 = vmatprep.subr.mxu0 0.0
    %142 = vmatpush1.msra.mxu0 0.0
    %143 = vmatprep.subr.mxu0 0.0
    %144 = vmatpush1.msra.mxu0 0.0
    %145 = vmatprep.subr.mxu0 0.0
    %146 = vmatpush1.msra.mxu0 0.0
    %147 = vmatprep.subr.mxu0 0.0
    %148 = vmatpush1.msra.mxu0 0.0
    %149 = vmatprep.subr.mxu0 0.0
    %150 = vmatpush1.msra.mxu0 0.0
    %151 = vmatprep.subr.mxu0 0.0
    %152 = vmatpush1.msra.mxu0 0.0
    %153 = vmatprep.subr.mxu0 0.0
    %154 = vmatpush1.msra.mxu0 0.0
    %155 = vmatprep.subr.mxu0 0.0
    %156 = vmatpush1.msra.mxu0 0.0
    %157 = vmatprep.subr.mxu0 0.0
    %158 = vmatpush1.msra.mxu0 0.0
    %159 = vmatprep.subr.mxu0 0.0
    %160 = vmatpush1.msra.mxu0 0.0
    %161 = vmatprep.subr.mxu0 0.0
    %162 = vmatpush1.msra.mxu0 0.0
    %163 = vmatprep.subr.mxu0 0.0
    %164 = vmatpush1.msra.mxu0 0.0
    %165 = vmatprep.subr.mxu0 0.0
    %166 = vmatpush1.msra.mxu0 0.0
    %167 = vmatprep.subr.mxu0 0.0
    %168 = vmatpush1.msra.mxu0 0.0
    %169 = vmatprep.subr.mxu0 0.0
    %170 = vmatpush1.msra.mxu0 0.0
    %171 = vmatprep.subr.mxu0 0.0
    %172 = vmatpush1.msra.mxu0 0.0
    %173 = vmatprep.subr.mxu0 0.0
    %174 = vmatpush1.msra.mxu0 0.0
    %175 = vmatprep.subr.mxu0 0.0
    %176 = vmatpush1.msra.mxu0 0.0
    %177 = vmatprep.subr.mxu0 0.0
    %178 = vmatpush1.msra.mxu0 0.0
    %179 = vmatprep.subr.mxu0 0.0
    %180 = vmatpush1.msra.mxu0 0.0
    %181 = vmatprep.subr.mxu0 0.0
    %182 = vmatpush1.msra.mxu0 0.0
    %183 = vmatprep.subr.mxu0 0.0
    %184 = vmatpush1.msra.mxu0 0.0
    %185 = vmatprep.mubr.f32.mxu0 0.0
    %186 = vmatmul.mubr.f32.gmra.mrb[0].mxu0 %v93
    %v187 = vpop.f32.mrb[0].mxu0
    %v188 = vadd.f32 %v82, %v187
    %v189 = vpop.f32.mrb[0].mxu0
    %v190 = vadd.f32 %v86, %v189
    %191 = vmatprep.mubr.f32.mxu0 0.0
    %192 = vmatmul.mubr.f32.gmra.mrb[0].mxu0 %v96
    %v193 = vpop.f32.mrb[0].mxu0
    %v194 = vadd.f32 %v82, %v193
    %v195 = vpop.f32.mrb[0].mxu0
    %v196 = vadd.f32 %v86, %v195
    %197 = vmatprep.mubr.f32.mxu0 0.0
    %198 = vmatmul.mubr.f32.gmra.mrb[0].mxu0 %v99
    %v199 = vpop.f32.mrb[0].mxu0
    %v200 = vadd.f32 %v82, %v199
    %v201 = vpop.f32.mrb[0].mxu0
    %v202 = vadd.f32 %v86, %v201
    %203 = vmatprep.mubr.f32.mxu0 0.0
    %204 = vmatmul.mubr.f32.gmra.mrb[0].mxu0 %v102
    %v205 = vpop.f32.mrb[0].mxu0
    %v206 = vadd.f32 %v82, %v205
    %v207 = vpop.f32.mrb[0].mxu0
    %v208 = vadd.f32 %v86, %v207
    %209 = vmatprep.mubr.f32.mxu0 0.0
    %210 = vmatmul.mubr.f32.gmra.mrb[0].mxu0 %v105
    %v211 = vpop.f32.mrb[0].mxu0
    %v212 = vadd.f32 %v82, %v211
    %v213 = vpop.f32.mrb[0].mxu0
    %v214 = vadd.f32 %v86, %v213
    %215 = vmatprep.mubr.f32.mxu0 0.0
    %216 = vmatmul.mubr.f32.gmra.mrb[0].mxu0 %v108
    %v217 = vpop.f32.mrb[0].mxu0
    %v218 = vadd.f32 %v82, %v217
    %v219 = vpop.f32.mrb[0].mxu0
    %v220 = vadd.f32 %v86, %v219
    %221 = vmatprep.mubr.f32.mxu0 0.0
    %222 = vmatmul.mubr.f32.gmra.mrb[0].mxu0 %v111
    %v223 = vpop.f32.mrb[0].mxu0
    %v224 = vadd.f32 %v82, %v223
    %v225 = vpop.f32.mrb[0].mxu0
    %v226 = vadd.f32 %v86, %v225
    %227 = vmatprep.mubr.f32.mxu0 0.0
    %228 = vmatmul.mubr.f32.gmra.mrb[0].mxu0 %v114
    %v229 = vpop.f32.mrb[0].mxu0
    %v230 = vadd.f32 %v82, %v229
    %v231 = vpop.f32.mrb[0].mxu0
    %v232 = vadd.f32 %v86, %v231
    %233 = vdwg.mxu0
    %v234 = vld [vmem:[%s2] sm:$0xff]
    %v235 = vld [vmem:[%s2 + $0x8] sm:$0xff]
    %v236 = vld [vmem:[%s2 + $0x10] sm:$0xff]
    %v237 = vld [vmem:[%s2 + $0x18] sm:$0xff]
    %v238 = vld [vmem:[%s2 + $0x20] sm:$0xff]
    %v239 = vld [vmem:[%s2 + $0x28] sm:$0xff]
    %v240 = vld [vmem:[%s2 + $0x30] sm:$0xff]
    %v241 = vld [vmem:[%s2 + $0x38] sm:$0xff]
    %v242 = vld [vmem:[%s2 + $0x40] sm:$0xff]
    %v243 = vld [vmem:[%s2 + $0x48] sm:$0xff]
    %v244 = vld [vmem:[%s2 + $0x50] sm:$0xff]
    %v245 = vld [vmem:[%s2 + $0x58] sm:$0xff]
    %v246 = vld [vmem:[%s2 + $0x60] sm:$0xff]
    %v247 = vld [vmem:[%s2 + $0x68] sm:$0xff]
    %v248 = vld [vmem:[%s2 + $0x70] sm:$0xff]
    %v249 = vld [vmem:[%s2 + $0x78] sm:$0xff]
    %v250 = vld [vmem:[#allocation2] sm:$0xff]
    %v251 = vld [vmem:[#allocation2 + $0x8] sm:$0xff]
    %v252 = vld [vmem:[#allocation2 + $0x10] sm:$0xff]
    %v253 = vld [vmem:[#allocation2 + $0x18] sm:$0xff]
    %v254 = vld [vmem:[#allocation2 + $0x20] sm:$0xff]
    %v255 = vld [vmem:[#allocation2 + $0x28] sm:$0xff]
    %v256 = vld [vmem:[#allocation2 + $0x30] sm:$0xff]
    %v257 = vld [vmem:[#allocation2 + $0x38] sm:$0xff]
    %v258 = vld [vmem:[#allocation2 + $0x40] sm:$0xff]
    %v259 = vld [vmem:[#allocation2 + $0x48] sm:$0xff]
    %v260 = vld [vmem:[#allocation2 + $0x50] sm:$0xff]
    %v261 = vld [vmem:[#allocation2 + $0x58] sm:$0xff]
    %v262 = vld [vmem:[#allocation2 + $0x60] sm:$0xff]
    %v263 = vld [vmem:[#allocation2 + $0x68] sm:$0xff]
    %v264 = vld [vmem:[#allocation2 + $0x70] sm:$0xff]
    %v265 = vld [vmem:[#allocation2 + $0x78] sm:$0xff]
    %v266 = vld [vmem:[#allocation4] sm:$0xff]
    %v267 = vld [vmem:[#allocation4 + $0x8] sm:$0xff]
    %v268 = vld [vmem:[#allocation4 + $0x10] sm:$0xff]
    %v269 = vld [vmem:[#allocation4 + $0x18] sm:$0xff]
    %v270 = vld [vmem:[#allocation4 + $0x20] sm:$0xff]
    %v271 = vld [vmem:[#allocation4 + $0x28] sm:$0xff]
    %v272 = vld [vmem:[#allocation4 + $0x30] sm:$0xff]
    %v273 = vld [vmem:[#allocation4 + $0x38] sm:$0xff]
    %v274 = vld [vmem:[#allocation4 + $0x40] sm:$0xff]
    %v275 = vld [vmem:[#allocation4 + $0x48] sm:$0xff]
    %v276 = vld [vmem:[#allocation4 + $0x50] sm:$0xff]
    %v277 = vld [vmem:[#allocation4 + $0x58] sm:$0xff]
    %v278 = vld [vmem:[#allocation4 + $0x60] sm:$0xff]
    %v279 = vld [vmem:[#allocation4 + $0x68] sm:$0xff]
    %v280 = vld [vmem:[#allocation4 + $0x70] sm:$0xff]
    %v281 = vld [vmem:[#allocation4 + $0x78] sm:$0xff]
    %v282 = vld [vmem:[%s6] sm:$0x3]
    %v284 = vlaneseq
    %v285 = vshrl.u32 %v284, 7
    %v286 = vsub.s32 0, %v285
    %v287 = vrot.slane %v282, %v286
    %v288 = vlaneseq
    %v289 = vshrl.u32 %v288, 7
    %v290 = vsub.s32 1, %v289
    %v291 = vrot.slane %v282, %v290
    %v294 = vxor.u32 %v188, 2147483648
    %v295 = vxor.u32 %v190, 2147483648
    %v296 = vmul.f32 %v294, 1.442695
    %v297 = vpow.pop %v296
    %v298 = vmul.f32 %v295, 1.442695
    %v299 = vpow.pop %v298
    %v300 = vadd.f32 %v297, 1.0
    %v301 = vadd.f32 %v299, 1.0
    %v302 = vrcp.pop %v300
    %v303 = vmul.f32 1.0, %v302
    %v304 = vrcp.pop %v301
    %v305 = vmul.f32 1.0, %v304
    %v306 = vtanh.pop %v190
    %v307 = vmul.f32 %v303, 0.0
    %309 = vrot.lane.b32.xlu0 %v306, 64
    %v310 = vpop.permute.xlu0 %309
    %v312 = vmul.f32 %v303, %v310
    %314 = vrot.lane.b32.xlu0 %v312, 64
    %v315 = vpop.permute.xlu0 %314
    %v317 = vadd.f32 %v307, %v315
    %v318 = vtanh.pop %v317
    %320 = vrot.lane.b32.xlu0 %v318, 64
    %v321 = vpop.permute.xlu0 %320
    %v323 = vmul.f32 %v305, %v321
    %vm324 = vcmask 523264
    %v326 = vsel %vm324, %v323, 0
    %328 = vmatprep.subr.mxu0 %v251
    %329 = vmatpush1.msra.mxu0 %v250
    %330 = vmatprep.subr.mxu0 %v253
    %331 = vmatpush1.msra.mxu0 %v252
    %332 = vmatprep.subr.mxu0 %v255
    %333 = vmatpush1.msra.mxu0 %v254
    %334 = vmatprep.subr.mxu0 %v257
    %335 = vmatpush1.msra.mxu0 %v256
    %336 = vmatprep.subr.mxu0 %v259
    %337 = vmatpush1.msra.mxu0 %v258
    %338 = vmatprep.subr.mxu0 %v261
    %339 = vmatpush1.msra.mxu0 %v260
    %340 = vmatprep.subr.mxu0 %v263
    %341 = vmatpush1.msra.mxu0 %v262
    %342 = vmatprep.subr.mxu0 %v265
    %343 = vmatpush1.msra.mxu0 %v264
    %344 = vmatprep.subr.mxu0 0.0
    %345 = vmatpush1.msra.mxu0 0.0
    %346 = vmatprep.subr.mxu0 0.0
    %347 = vmatpush1.msra.mxu0 0.0
    %348 = vmatprep.subr.mxu0 0.0
    %349 = vmatpush1.msra.mxu0 0.0
    %350 = vmatprep.subr.mxu0 0.0
    %351 = vmatpush1.msra.mxu0 0.0
    %352 = vmatprep.subr.mxu0 0.0
    %353 = vmatpush1.msra.mxu0 0.0
    %354 = vmatprep.subr.mxu0 0.0
    %355 = vmatpush1.msra.mxu0 0.0
    %356 = vmatprep.subr.mxu0 0.0
    %357 = vmatpush1.msra.mxu0 0.0
    %358 = vmatprep.subr.mxu0 0.0
    %359 = vmatpush1.msra.mxu0 0.0
    %360 = vmatprep.subr.mxu0 0.0
    %361 = vmatpush1.msra.mxu0 0.0
    %362 = vmatprep.subr.mxu0 0.0
    %363 = vmatpush1.msra.mxu0 0.0
    %364 = vmatprep.subr.mxu0 0.0
    %365 = vmatpush1.msra.mxu0 0.0
    %366 = vmatprep.subr.mxu0 0.0
    %367 = vmatpush1.msra.mxu0 0.0
    %368 = vmatprep.subr.mxu0 0.0
    %369 = vmatpush1.msra.mxu0 0.0
    %370 = vmatprep.subr.mxu0 0.0
    %371 = vmatpush1.msra.mxu0 0.0
    %372 = vmatprep.subr.mxu0 0.0
    %373 = vmatpush1.msra.mxu0 0.0
    %374 = vmatprep.subr.mxu0 0.0
    %375 = vmatpush1.msra.mxu0 0.0
    %376 = vmatprep.subr.mxu0 0.0
    %377 = vmatpush1.msra.mxu0 0.0
    %378 = vmatprep.subr.mxu0 0.0
    %379 = vmatpush1.msra.mxu0 0.0
    %380 = vmatprep.subr.mxu0 0.0
    %381 = vmatpush1.msra.mxu0 0.0
    %382 = vmatprep.subr.mxu0 0.0
    %383 = vmatpush1.msra.mxu0 0.0
    %384 = vmatprep.subr.mxu0 0.0
    %385 = vmatpush1.msra.mxu0 0.0
    %386 = vmatprep.subr.mxu0 0.0
    %387 = vmatpush1.msra.mxu0 0.0
    %388 = vmatprep.subr.mxu0 0.0
    %389 = vmatpush1.msra.mxu0 0.0
    %390 = vmatprep.subr.mxu0 0.0
    %391 = vmatpush1.msra.mxu0 0.0
    %392 = vmatprep.mubr.f32.mxu0 0.0
    %393 = vmatmul.mubr.f32.gmra.mrb[0].mxu0 %v326
    %v394 = vpop.f32.mrb[0].mxu0
    %v395 = vadd.f32 %v287, %v394
    %v396 = vpop.f32.mrb[0].mxu0
    %v397 = vadd.f32 %v291, %v396
    %398 = vdwg.mxu0
    %v399 = vxor.u32 %v395, 2147483648
    %v400 = vxor.u32 %v397, 2147483648
    %v401 = vmul.f32 %v399, 1.442695
    %v402 = vpow.pop %v401
    %v403 = vmul.f32 %v400, 1.442695
    %v404 = vpow.pop %v403
    %v405 = vadd.f32 %v402, 1.0
    %v406 = vadd.f32 %v404, 1.0
    %v407 = vrcp.pop %v405
    %v408 = vmul.f32 1.0, %v407
    %v409 = vrcp.pop %v406
    %v410 = vmul.f32 1.0, %v409
    %v411 = vtanh.pop %v397
    %v412 = vmul.f32 %v408, 0.0
    %414 = vrot.lane.b32.xlu0 %v411, 64
    %v415 = vpop.permute.xlu0 %414
    %v417 = vmul.f32 %v408, %v415
    %419 = vrot.lane.b32.xlu0 %v417, 64
    %v420 = vpop.permute.xlu0 %419
    %v422 = vadd.f32 %v412, %v420
    %v423 = vtanh.pop %v422
    %425 = vrot.lane.b32.xlu0 %v423, 64
    %v426 = vpop.permute.xlu0 %425
    %v428 = vmul.f32 %v410, %v426
    %v430 = vsel %vm324, %v428, 0
    %432 = vmatprep.subr.mxu0 %v267
    %433 = vmatpush1.msra.mxu0 %v266
    %434 = vmatprep.subr.mxu0 %v269
    %435 = vmatpush1.msra.mxu0 %v268
    %436 = vmatprep.subr.mxu0 %v271
    %437 = vmatpush1.msra.mxu0 %v270
    %438 = vmatprep.subr.mxu0 %v273
    %439 = vmatpush1.msra.mxu0 %v272
    %440 = vmatprep.subr.mxu0 %v275
    %441 = vmatpush1.msra.mxu0 %v274
    %442 = vmatprep.subr.mxu0 %v277
    %443 = vmatpush1.msra.mxu0 %v276
    %444 = vmatprep.subr.mxu0 %v279
    %445 = vmatpush1.msra.mxu0 %v278
    %446 = vmatprep.subr.mxu0 %v281
    %447 = vmatpush1.msra.mxu0 %v280
    %448 = vmatprep.subr.mxu0 0.0
    %449 = vmatpush1.msra.mxu0 0.0
    %450 = vmatprep.subr.mxu0 0.0
    %451 = vmatpush1.msra.mxu0 0.0
    %452 = vmatprep.subr.mxu0 0.0
    %453 = vmatpush1.msra.mxu0 0.0
    %454 = vmatprep.subr.mxu0 0.0
    %455 = vmatpush1.msra.mxu0 0.0
    %456 = vmatprep.subr.mxu0 0.0
    %457 = vmatpush1.msra.mxu0 0.0
    %458 = vmatprep.subr.mxu0 0.0
    %459 = vmatpush1.msra.mxu0 0.0
    %460 = vmatprep.subr.mxu0 0.0
    %461 = vmatpush1.msra.mxu0 0.0
    %462 = vmatprep.subr.mxu0 0.0
    %463 = vmatpush1.msra.mxu0 0.0
    %464 = vmatprep.subr.mxu0 0.0
    %465 = vmatpush1.msra.mxu0 0.0
    %466 = vmatprep.subr.mxu0 0.0
    %467 = vmatpush1.msra.mxu0 0.0
    %468 = vmatprep.subr.mxu0 0.0
    %469 = vmatpush1.msra.mxu0 0.0
    %470 = vmatprep.subr.mxu0 0.0
    %471 = vmatpush1.msra.mxu0 0.0
    %472 = vmatprep.subr.mxu0 0.0
    %473 = vmatpush1.msra.mxu0 0.0
    %474 = vmatprep.subr.mxu0 0.0
    %475 = vmatpush1.msra.mxu0 0.0
    %476 = vmatprep.subr.mxu0 0.0
    %477 = vmatpush1.msra.mxu0 0.0
    %478 = vmatprep.subr.mxu0 0.0
    %479 = vmatpush1.msra.mxu0 0.0
    %480 = vmatprep.subr.mxu0 0.0
    %481 = vmatpush1.msra.mxu0 0.0
    %482 = vmatprep.subr.mxu0 0.0
    %483 = vmatpush1.msra.mxu0 0.0
    %484 = vmatprep.subr.mxu0 0.0
    %485 = vmatpush1.msra.mxu0 0.0
    %486 = vmatprep.subr.mxu0 0.0
    %487 = vmatpush1.msra.mxu0 0.0
    %488 = vmatprep.subr.mxu0 0.0
    %489 = vmatpush1.msra.mxu0 0.0
    %490 = vmatprep.subr.mxu0 0.0
    %491 = vmatpush1.msra.mxu0 0.0
    %492 = vmatprep.subr.mxu0 0.0
    %493 = vmatpush1.msra.mxu0 0.0
    %494 = vmatprep.subr.mxu0 0.0
    %495 = vmatpush1.msra.mxu0 0.0
    %496 = vmatprep.mubr.f32.mxu0 0.0
    %497 = vmatmul.mubr.f32.gmra.mrb[0].mxu0 %v430
    %v498 = vpop.f32.mrb[0].mxu0
    %v499 = vadd.f32 %v287, %v498
    %v500 = vpop.f32.mrb[0].mxu0
    %v501 = vadd.f32 %v291, %v500
    %502 = vdwg.mxu0
    %503 = vmatprep.subr.mxu0 %v235
    %504 = vmatpush1.msra.mxu0 %v234
    %505 = vmatprep.subr.mxu0 %v237
    %506 = vmatpush1.msra.mxu0 %v236
    %507 = vmatprep.subr.mxu0 %v239
    %508 = vmatpush1.msra.mxu0 %v238
    %509 = vmatprep.subr.mxu0 %v241
    %510 = vmatpush1.msra.mxu0 %v240
    %511 = vmatprep.subr.mxu0 %v243
    %512 = vmatpush1.msra.mxu0 %v242
    %513 = vmatprep.subr.mxu0 %v245
    %514 = vmatpush1.msra.mxu0 %v244
    %515 = vmatprep.subr.mxu0 %v247
    %516 = vmatpush1.msra.mxu0 %v246
    %517 = vmatprep.subr.mxu0 %v249
    %518 = vmatpush1.msra.mxu0 %v248
    %519 = vmatprep.subr.mxu0 0.0
    %520 = vmatpush1.msra.mxu0 0.0
    %521 = vmatprep.subr.mxu0 0.0
    %522 = vmatpush1.msra.mxu0 0.0
    %523 = vmatprep.subr.mxu0 0.0
    %524 = vmatpush1.msra.mxu0 0.0
    %525 = vmatprep.subr.mxu0 0.0
    %526 = vmatpush1.msra.mxu0 0.0
    %527 = vmatprep.subr.mxu0 0.0
    %528 = vmatpush1.msra.mxu0 0.0
    %529 = vmatprep.subr.mxu0 0.0
    %530 = vmatpush1.msra.mxu0 0.0
    %531 = vmatprep.subr.mxu0 0.0
    %532 = vmatpush1.msra.mxu0 0.0
    %533 = vmatprep.subr.mxu0 0.0
    %534 = vmatpush1.msra.mxu0 0.0
    %535 = vmatprep.subr.mxu0 0.0
    %536 = vmatpush1.msra.mxu0 0.0
    %537 = vmatprep.subr.mxu0 0.0
    %538 = vmatpush1.msra.mxu0 0.0
    %539 = vmatprep.subr.mxu0 0.0
    %540 = vmatpush1.msra.mxu0 0.0
    %541 = vmatprep.subr.mxu0 0.0
    %542 = vmatpush1.msra.mxu0 0.0
    %543 = vmatprep.subr.mxu0 0.0
    %544 = vmatpush1.msra.mxu0 0.0
    %545 = vmatprep.subr.mxu0 0.0
    %546 = vmatpush1.msra.mxu0 0.0
    %547 = vmatprep.subr.mxu0 0.0
    %548 = vmatpush1.msra.mxu0 0.0
    %549 = vmatprep.subr.mxu0 0.0
    %550 = vmatpush1.msra.mxu0 0.0
    %551 = vmatprep.subr.mxu0 0.0
    %552 = vmatpush1.msra.mxu0 0.0
    %553 = vmatprep.subr.mxu0 0.0
    %554 = vmatpush1.msra.mxu0 0.0
    %555 = vmatprep.subr.mxu0 0.0
    %556 = vmatpush1.msra.mxu0 0.0
    %557 = vmatprep.subr.mxu0 0.0
    %558 = vmatpush1.msra.mxu0 0.0
    %559 = vmatprep.subr.mxu0 0.0
    %560 = vmatpush1.msra.mxu0 0.0
    %561 = vmatprep.subr.mxu0 0.0
    %562 = vmatpush1.msra.mxu0 0.0
    %563 = vmatprep.subr.mxu0 0.0
    %564 = vmatpush1.msra.mxu0 0.0
    %565 = vmatprep.subr.mxu0 0.0
    %566 = vmatpush1.msra.mxu0 0.0
    %567 = vmatprep.mubr.f32.mxu0 0.0
    %568 = vmatmul.mubr.f32.gmra.mrb[0].mxu0 %v326
    %v569 = vpop.f32.mrb[0].mxu0
    %v570 = vadd.f32 %v194, %v569
    %v571 = vpop.f32.mrb[0].mxu0
    %v572 = vadd.f32 %v196, %v571
    %573 = vdwg.mxu0
    %v574 = vxor.u32 %v570, 2147483648
    %v575 = vxor.u32 %v572, 2147483648
    %v576 = vmul.f32 %v574, 1.442695
    %v577 = vpow.pop %v576
    %v578 = vmul.f32 %v575, 1.442695
    %v579 = vpow.pop %v578
    %v580 = vadd.f32 %v577, 1.0
    %v581 = vadd.f32 %v579, 1.0
    %v582 = vrcp.pop %v580
    %v583 = vmul.f32 1.0, %v582
    %v584 = vrcp.pop %v581
    %v585 = vmul.f32 1.0, %v584
    %v586 = vtanh.pop %v572
    %v587 = vmul.f32 %v583, %v317
    %589 = vrot.lane.b32.xlu0 %v586, 64
    %v590 = vpop.permute.xlu0 %589
    %v592 = vmul.f32 %v583, %v590
    %594 = vrot.lane.b32.xlu0 %v592, 64
    %v595 = vpop.permute.xlu0 %594
    %v597 = vadd.f32 %v587, %v595
    %v598 = vtanh.pop %v597
    %600 = vrot.lane.b32.xlu0 %v598, 64
    %v601 = vpop.permute.xlu0 %600
    %v603 = vmul.f32 %v585, %v601
    %v605 = vsel %vm324, %v603, 0
    %607 = vmatprep.subr.mxu0 %v251
    %608 = vmatpush1.msra.mxu0 %v250
    %609 = vmatprep.subr.mxu0 %v253
    %610 = vmatpush1.msra.mxu0 %v252
    %611 = vmatprep.subr.mxu0 %v255
    %612 = vmatpush1.msra.mxu0 %v254
    %613 = vmatprep.subr.mxu0 %v257
    %614 = vmatpush1.msra.mxu0 %v256
    %615 = vmatprep.subr.mxu0 %v259
    %616 = vmatpush1.msra.mxu0 %v258
    %617 = vmatprep.subr.mxu0 %v261
    %618 = vmatpush1.msra.mxu0 %v260
    %619 = vmatprep.subr.mxu0 %v263
    %620 = vmatpush1.msra.mxu0 %v262
    %621 = vmatprep.subr.mxu0 %v265
    %622 = vmatpush1.msra.mxu0 %v264
    %623 = vmatprep.subr.mxu0 0.0
    %624 = vmatpush1.msra.mxu0 0.0
    %625 = vmatprep.subr.mxu0 0.0
    %626 = vmatpush1.msra.mxu0 0.0
    %627 = vmatprep.subr.mxu0 0.0
    %628 = vmatpush1.msra.mxu0 0.0
    %629 = vmatprep.subr.mxu0 0.0
    %630 = vmatpush1.msra.mxu0 0.0
    %631 = vmatprep.subr.mxu0 0.0
    %632 = vmatpush1.msra.mxu0 0.0
    %633 = vmatprep.subr.mxu0 0.0
    %634 = vmatpush1.msra.mxu0 0.0
    %635 = vmatprep.subr.mxu0 0.0
    %636 = vmatpush1.msra.mxu0 0.0
    %637 = vmatprep.subr.mxu0 0.0
    %638 = vmatpush1.msra.mxu0 0.0
    %639 = vmatprep.subr.mxu0 0.0
    %640 = vmatpush1.msra.mxu0 0.0
    %641 = vmatprep.subr.mxu0 0.0
    %642 = vmatpush1.msra.mxu0 0.0
    %643 = vmatprep.subr.mxu0 0.0
    %644 = vmatpush1.msra.mxu0 0.0
    %645 = vmatprep.subr.mxu0 0.0
    %646 = vmatpush1.msra.mxu0 0.0
    %647 = vmatprep.subr.mxu0 0.0
    %648 = vmatpush1.msra.mxu0 0.0
    %649 = vmatprep.subr.mxu0 0.0
    %650 = vmatpush1.msra.mxu0 0.0
    %651 = vmatprep.subr.mxu0 0.0
    %652 = vmatpush1.msra.mxu0 0.0
    %653 = vmatprep.subr.mxu0 0.0
    %654 = vmatpush1.msra.mxu0 0.0
    %655 = vmatprep.subr.mxu0 0.0
    %656 = vmatpush1.msra.mxu0 0.0
    %657 = vmatprep.subr.mxu0 0.0
    %658 = vmatpush1.msra.mxu0 0.0
    %659 = vmatprep.subr.mxu0 0.0
    %660 = vmatpush1.msra.mxu0 0.0
    %661 = vmatprep.subr.mxu0 0.0
    %662 = vmatpush1.msra.mxu0 0.0
    %663 = vmatprep.subr.mxu0 0.0
    %664 = vmatpush1.msra.mxu0 0.0
    %665 = vmatprep.subr.mxu0 0.0
    %666 = vmatpush1.msra.mxu0 0.0
    %667 = vmatprep.subr.mxu0 0.0
    %668 = vmatpush1.msra.mxu0 0.0
    %669 = vmatprep.subr.mxu0 0.0
    %670 = vmatpush1.msra.mxu0 0.0
    %671 = vmatprep.mubr.f32.mxu0 0.0
    %672 = vmatmul.mubr.f32.gmra.mrb[0].mxu0 %v605
    %v673 = vpop.f32.mrb[0].mxu0
    %v674 = vadd.f32 %v499, %v673
    %v675 = vpop.f32.mrb[0].mxu0
    %v676 = vadd.f32 %v501, %v675
    %677 = vdwg.mxu0
    %v678 = vxor.u32 %v674, 2147483648
    %v679 = vxor.u32 %v676, 2147483648
    %v680 = vmul.f32 %v678, 1.442695
    %v681 = vpow.pop %v680
    %v682 = vmul.f32 %v679, 1.442695
    %v683 = vpow.pop %v682
    %v684 = vadd.f32 %v681, 1.0
    %v685 = vadd.f32 %v683, 1.0
    %v686 = vrcp.pop %v684
    %v687 = vmul.f32 1.0, %v686
    %v688 = vrcp.pop %v685
    %v689 = vmul.f32 1.0, %v688
    %v690 = vtanh.pop %v676
    %v691 = vmul.f32 %v687, %v422
    %693 = vrot.lane.b32.xlu0 %v690, 64
    %v694 = vpop.permute.xlu0 %693
    %v696 = vmul.f32 %v687, %v694
    %698 = vrot.lane.b32.xlu0 %v696, 64
    %v699 = vpop.permute.xlu0 %698
    %v701 = vadd.f32 %v691, %v699
    %v702 = vtanh.pop %v701
    %704 = vrot.lane.b32.xlu0 %v702, 64
    %v705 = vpop.permute.xlu0 %704
    %v707 = vmul.f32 %v689, %v705
    %v709 = vsel %vm324, %v707, 0
    %711 = vmatprep.subr.mxu0 %v267
    %712 = vmatpush1.msra.mxu0 %v266
    %713 = vmatprep.subr.mxu0 %v269
    %714 = vmatpush1.msra.mxu0 %v268
    %715 = vmatprep.subr.mxu0 %v271
    %716 = vmatpush1.msra.mxu0 %v270
    %717 = vmatprep.subr.mxu0 %v273
    %718 = vmatpush1.msra.mxu0 %v272
    %719 = vmatprep.subr.mxu0 %v275
    %720 = vmatpush1.msra.mxu0 %v274
    %721 = vmatprep.subr.mxu0 %v277
    %722 = vmatpush1.msra.mxu0 %v276
    %723 = vmatprep.subr.mxu0 %v279
    %724 = vmatpush1.msra.mxu0 %v278
    %725 = vmatprep.subr.mxu0 %v281
    %726 = vmatpush1.msra.mxu0 %v280
    %727 = vmatprep.subr.mxu0 0.0
    %728 = vmatpush1.msra.mxu0 0.0
    %729 = vmatprep.subr.mxu0 0.0
    %730 = vmatpush1.msra.mxu0 0.0
    %731 = vmatprep.subr.mxu0 0.0
    %732 = vmatpush1.msra.mxu0 0.0
    %733 = vmatprep.subr.mxu0 0.0
    %734 = vmatpush1.msra.mxu0 0.0
    %735 = vmatprep.subr.mxu0 0.0
    %736 = vmatpush1.msra.mxu0 0.0
    %737 = vmatprep.subr.mxu0 0.0
    %738 = vmatpush1.msra.mxu0 0.0
    %739 = vmatprep.subr.mxu0 0.0
    %740 = vmatpush1.msra.mxu0 0.0
    %741 = vmatprep.subr.mxu0 0.0
    %742 = vmatpush1.msra.mxu0 0.0
    %743 = vmatprep.subr.mxu0 0.0
    %744 = vmatpush1.msra.mxu0 0.0
    %745 = vmatprep.subr.mxu0 0.0
    %746 = vmatpush1.msra.mxu0 0.0
    %747 = vmatprep.subr.mxu0 0.0
    %748 = vmatpush1.msra.mxu0 0.0
    %749 = vmatprep.subr.mxu0 0.0
    %750 = vmatpush1.msra.mxu0 0.0
    %751 = vmatprep.subr.mxu0 0.0
    %752 = vmatpush1.msra.mxu0 0.0
    %753 = vmatprep.subr.mxu0 0.0
    %754 = vmatpush1.msra.mxu0 0.0
    %755 = vmatprep.subr.mxu0 0.0
    %756 = vmatpush1.msra.mxu0 0.0
    %757 = vmatprep.subr.mxu0 0.0
    %758 = vmatpush1.msra.mxu0 0.0
    %759 = vmatprep.subr.mxu0 0.0
    %760 = vmatpush1.msra.mxu0 0.0
    %761 = vmatprep.subr.mxu0 0.0
    %762 = vmatpush1.msra.mxu0 0.0
    %763 = vmatprep.subr.mxu0 0.0
    %764 = vmatpush1.msra.mxu0 0.0
    %765 = vmatprep.subr.mxu0 0.0
    %766 = vmatpush1.msra.mxu0 0.0
    %767 = vmatprep.subr.mxu0 0.0
    %768 = vmatpush1.msra.mxu0 0.0
    %769 = vmatprep.subr.mxu0 0.0
    %770 = vmatpush1.msra.mxu0 0.0
    %771 = vmatprep.subr.mxu0 0.0
    %772 = vmatpush1.msra.mxu0 0.0
    %773 = vmatprep.subr.mxu0 0.0
    %774 = vmatpush1.msra.mxu0 0.0
    %775 = vmatprep.mubr.f32.mxu0 0.0
    %776 = vmatmul.mubr.f32.gmra.mrb[0].mxu0 %v709
    %v777 = vpop.f32.mrb[0].mxu0
    %v778 = vadd.f32 %v287, %v777
    %v779 = vpop.f32.mrb[0].mxu0
    %v780 = vadd.f32 %v291, %v779
    %781 = vdwg.mxu0
    %782 = vmatprep.subr.mxu0 %v235
    %783 = vmatpush1.msra.mxu0 %v234
    %784 = vmatprep.subr.mxu0 %v237
    %785 = vmatpush1.msra.mxu0 %v236
    %786 = vmatprep.subr.mxu0 %v239
    %787 = vmatpush1.msra.mxu0 %v238
    %788 = vmatprep.subr.mxu0 %v241
    %789 = vmatpush1.msra.mxu0 %v240
    %790 = vmatprep.subr.mxu0 %v243
    %791 = vmatpush1.msra.mxu0 %v242
    %792 = vmatprep.subr.mxu0 %v245
    %793 = vmatpush1.msra.mxu0 %v244
    %794 = vmatprep.subr.mxu0 %v247
    %795 = vmatpush1.msra.mxu0 %v246
    %796 = vmatprep.subr.mxu0 %v249
    %797 = vmatpush1.msra.mxu0 %v248
    %798 = vmatprep.subr.mxu0 0.0
    %799 = vmatpush1.msra.mxu0 0.0
    %800 = vmatprep.subr.mxu0 0.0
    %801 = vmatpush1.msra.mxu0 0.0
    %802 = vmatprep.subr.mxu0 0.0
    %803 = vmatpush1.msra.mxu0 0.0
    %804 = vmatprep.subr.mxu0 0.0
    %805 = vmatpush1.msra.mxu0 0.0
    %806 = vmatprep.subr.mxu0 0.0
    %807 = vmatpush1.msra.mxu0 0.0
    %808 = vmatprep.subr.mxu0 0.0
    %809 = vmatpush1.msra.mxu0 0.0
    %810 = vmatprep.subr.mxu0 0.0
    %811 = vmatpush1.msra.mxu0 0.0
    %812 = vmatprep.subr.mxu0 0.0
    %813 = vmatpush1.msra.mxu0 0.0
    %814 = vmatprep.subr.mxu0 0.0
    %815 = vmatpush1.msra.mxu0 0.0
    %816 = vmatprep.subr.mxu0 0.0
    %817 = vmatpush1.msra.mxu0 0.0
    %818 = vmatprep.subr.mxu0 0.0
    %819 = vmatpush1.msra.mxu0 0.0
    %820 = vmatprep.subr.mxu0 0.0
    %821 = vmatpush1.msra.mxu0 0.0
    %822 = vmatprep.subr.mxu0 0.0
    %823 = vmatpush1.msra.mxu0 0.0
    %824 = vmatprep.subr.mxu0 0.0
    %825 = vmatpush1.msra.mxu0 0.0
    %826 = vmatprep.subr.mxu0 0.0
    %827 = vmatpush1.msra.mxu0 0.0
    %828 = vmatprep.subr.mxu0 0.0
    %829 = vmatpush1.msra.mxu0 0.0
    %830 = vmatprep.subr.mxu0 0.0
    %831 = vmatpush1.msra.mxu0 0.0
    %832 = vmatprep.subr.mxu0 0.0
    %833 = vmatpush1.msra.mxu0 0.0
    %834 = vmatprep.subr.mxu0 0.0
    %835 = vmatpush1.msra.mxu0 0.0
    %836 = vmatprep.subr.mxu0 0.0
    %837 = vmatpush1.msra.mxu0 0.0
    %838 = vmatprep.subr.mxu0 0.0
    %839 = vmatpush1.msra.mxu0 0.0
    %840 = vmatprep.subr.mxu0 0.0
    %841 = vmatpush1.msra.mxu0 0.0
    %842 = vmatprep.subr.mxu0 0.0
    %843 = vmatpush1.msra.mxu0 0.0
    %844 = vmatprep.subr.mxu0 0.0
    %845 = vmatpush1.msra.mxu0 0.0
    %846 = vmatprep.mubr.f32.mxu0 0.0
    %847 = vmatmul.mubr.f32.gmra.mrb[0].mxu0 %v605
    %v848 = vpop.f32.mrb[0].mxu0
    %v849 = vadd.f32 %v200, %v848
    %v850 = vpop.f32.mrb[0].mxu0
    %v851 = vadd.f32 %v202, %v850
    %852 = vdwg.mxu0
    %v853 = vxor.u32 %v849, 2147483648
    %v854 = vxor.u32 %v851, 2147483648
    %v855 = vmul.f32 %v853, 1.442695
    %v856 = vpow.pop %v855
    %v857 = vmul.f32 %v854, 1.442695
    %v858 = vpow.pop %v857
    %v859 = vadd.f32 %v856, 1.0
    %v860 = vadd.f32 %v858, 1.0
    %v861 = vrcp.pop %v859
    %v862 = vmul.f32 1.0, %v861
    %v863 = vrcp.pop %v860
    %v864 = vmul.f32 1.0, %v863
    %v865 = vtanh.pop %v851
    %v866 = vmul.f32 %v862, %v597
    %868 = vrot.lane.b32.xlu0 %v865, 64
    %v869 = vpop.permute.xlu0 %868
    %v871 = vmul.f32 %v862, %v869
    %873 = vrot.lane.b32.xlu0 %v871, 64
    %v874 = vpop.permute.xlu0 %873
    %v876 = vadd.f32 %v866, %v874
    %v877 = vtanh.pop %v876
    %879 = vrot.lane.b32.xlu0 %v877, 64
    %v880 = vpop.permute.xlu0 %879
    %v882 = vmul.f32 %v864, %v880
    %v884 = vsel %vm324, %v882, 0
    %886 = vmatprep.subr.mxu0 %v251
    %887 = vmatpush1.msra.mxu0 %v250
    %888 = vmatprep.subr.mxu0 %v253
    %889 = vmatpush1.msra.mxu0 %v252
    %890 = vmatprep.subr.mxu0 %v255
    %891 = vmatpush1.msra.mxu0 %v254
    %892 = vmatprep.subr.mxu0 %v257
    %893 = vmatpush1.msra.mxu0 %v256
    %894 = vmatprep.subr.mxu0 %v259
    %895 = vmatpush1.msra.mxu0 %v258
    %896 = vmatprep.subr.mxu0 %v261
    %897 = vmatpush1.msra.mxu0 %v260
    %898 = vmatprep.subr.mxu0 %v263
    %899 = vmatpush1.msra.mxu0 %v262
    %900 = vmatprep.subr.mxu0 %v265
    %901 = vmatpush1.msra.mxu0 %v264
    %902 = vmatprep.subr.mxu0 0.0
    %903 = vmatpush1.msra.mxu0 0.0
    %904 = vmatprep.subr.mxu0 0.0
    %905 = vmatpush1.msra.mxu0 0.0
    %906 = vmatprep.subr.mxu0 0.0
    %907 = vmatpush1.msra.mxu0 0.0
    %908 = vmatprep.subr.mxu0 0.0
    %909 = vmatpush1.msra.mxu0 0.0
    %910 = vmatprep.subr.mxu0 0.0
    %911 = vmatpush1.msra.mxu0 0.0
    %912 = vmatprep.subr.mxu0 0.0
    %913 = vmatpush1.msra.mxu0 0.0
    %914 = vmatprep.subr.mxu0 0.0
    %915 = vmatpush1.msra.mxu0 0.0
    %916 = vmatprep.subr.mxu0 0.0
    %917 = vmatpush1.msra.mxu0 0.0
    %918 = vmatprep.subr.mxu0 0.0
    %919 = vmatpush1.msra.mxu0 0.0
    %920 = vmatprep.subr.mxu0 0.0
    %921 = vmatpush1.msra.mxu0 0.0
    %922 = vmatprep.subr.mxu0 0.0
    %923 = vmatpush1.msra.mxu0 0.0
    %924 = vmatprep.subr.mxu0 0.0
    %925 = vmatpush1.msra.mxu0 0.0
    %926 = vmatprep.subr.mxu0 0.0
    %927 = vmatpush1.msra.mxu0 0.0
    %928 = vmatprep.subr.mxu0 0.0
    %929 = vmatpush1.msra.mxu0 0.0
    %930 = vmatprep.subr.mxu0 0.0
    %931 = vmatpush1.msra.mxu0 0.0
    %932 = vmatprep.subr.mxu0 0.0
    %933 = vmatpush1.msra.mxu0 0.0
    %934 = vmatprep.subr.mxu0 0.0
    %935 = vmatpush1.msra.mxu0 0.0
    %936 = vmatprep.subr.mxu0 0.0
    %937 = vmatpush1.msra.mxu0 0.0
    %938 = vmatprep.subr.mxu0 0.0
    %939 = vmatpush1.msra.mxu0 0.0
    %940 = vmatprep.subr.mxu0 0.0
    %941 = vmatpush1.msra.mxu0 0.0
    %942 = vmatprep.subr.mxu0 0.0
    %943 = vmatpush1.msra.mxu0 0.0
    %944 = vmatprep.subr.mxu0 0.0
    %945 = vmatpush1.msra.mxu0 0.0
    %946 = vmatprep.subr.mxu0 0.0
    %947 = vmatpush1.msra.mxu0 0.0
    %948 = vmatprep.subr.mxu0 0.0
    %949 = vmatpush1.msra.mxu0 0.0
    %950 = vmatprep.mubr.f32.mxu0 0.0
    %951 = vmatmul.mubr.f32.gmra.mrb[0].mxu0 %v884
    %v952 = vpop.f32.mrb[0].mxu0
    %v953 = vadd.f32 %v778, %v952
    %v954 = vpop.f32.mrb[0].mxu0
    %v955 = vadd.f32 %v780, %v954
    %956 = vdwg.mxu0
    %v957 = vxor.u32 %v953, 2147483648
    %v958 = vxor.u32 %v955, 2147483648
    %v959 = vmul.f32 %v957, 1.442695
    %v960 = vpow.pop %v959
    %v961 = vmul.f32 %v958, 1.442695
    %v962 = vpow.pop %v961
    %v963 = vadd.f32 %v960, 1.0
    %v964 = vadd.f32 %v962, 1.0
    %v965 = vrcp.pop %v963
    %v966 = vmul.f32 1.0, %v965
    %v967 = vrcp.pop %v964
    %v968 = vmul.f32 1.0, %v967
    %v969 = vtanh.pop %v955
    %v970 = vmul.f32 %v966, %v701
    %972 = vrot.lane.b32.xlu0 %v969, 64
    %v973 = vpop.permute.xlu0 %972
    %v975 = vmul.f32 %v966, %v973
    %977 = vrot.lane.b32.xlu0 %v975, 64
    %v978 = vpop.permute.xlu0 %977
    %v980 = vadd.f32 %v970, %v978
    %v981 = vtanh.pop %v980
    %983 = vrot.lane.b32.xlu0 %v981, 64
    %v984 = vpop.permute.xlu0 %983
    %v986 = vmul.f32 %v968, %v984
    %v988 = vsel %vm324, %v986, 0
    %990 = vmatprep.subr.mxu0 %v267
    %991 = vmatpush1.msra.mxu0 %v266
    %992 = vmatprep.subr.mxu0 %v269
    %993 = vmatpush1.msra.mxu0 %v268
    %994 = vmatprep.subr.mxu0 %v271
    %995 = vmatpush1.msra.mxu0 %v270
    %996 = vmatprep.subr.mxu0 %v273
    %997 = vmatpush1.msra.mxu0 %v272
    %998 = vmatprep.subr.mxu0 %v275
    %999 = vmatpush1.msra.mxu0 %v274
    %1000 = vmatprep.subr.mxu0 %v277
    %1001 = vmatpush1.msra.mxu0 %v276
    %1002 = vmatprep.subr.mxu0 %v279
    %1003 = vmatpush1.msra.mxu0 %v278
    %1004 = vmatprep.subr.mxu0 %v281
    %1005 = vmatpush1.msra.mxu0 %v280
    %1006 = vmatprep.subr.mxu0 0.0
    %1007 = vmatpush1.msra.mxu0 0.0
    %1008 = vmatprep.subr.mxu0 0.0
    %1009 = vmatpush1.msra.mxu0 0.0
    %1010 = vmatprep.subr.mxu0 0.0
    %1011 = vmatpush1.msra.mxu0 0.0
    %1012 = vmatprep.subr.mxu0 0.0
    %1013 = vmatpush1.msra.mxu0 0.0
    %1014 = vmatprep.subr.mxu0 0.0
    %1015 = vmatpush1.msra.mxu0 0.0
    %1016 = vmatprep.subr.mxu0 0.0
    %1017 = vmatpush1.msra.mxu0 0.0
    %1018 = vmatprep.subr.mxu0 0.0
    %1019 = vmatpush1.msra.mxu0 0.0
    %1020 = vmatprep.subr.mxu0 0.0
    %1021 = vmatpush1.msra.mxu0 0.0
    %1022 = vmatprep.subr.mxu0 0.0
    %1023 = vmatpush1.msra.mxu0 0.0
    %1024 = vmatprep.subr.mxu0 0.0
    %1025 = vmatpush1.msra.mxu0 0.0
    %1026 = vmatprep.subr.mxu0 0.0
    %1027 = vmatpush1.msra.mxu0 0.0
    %1028 = vmatprep.subr.mxu0 0.0
    %1029 = vmatpush1.msra.mxu0 0.0
    %1030 = vmatprep.subr.mxu0 0.0
    %1031 = vmatpush1.msra.mxu0 0.0
    %1032 = vmatprep.subr.mxu0 0.0
    %1033 = vmatpush1.msra.mxu0 0.0
    %1034 = vmatprep.subr.mxu0 0.0
    %1035 = vmatpush1.msra.mxu0 0.0
    %1036 = vmatprep.subr.mxu0 0.0
    %1037 = vmatpush1.msra.mxu0 0.0
    %1038 = vmatprep.subr.mxu0 0.0
    %1039 = vmatpush1.msra.mxu0 0.0
    %1040 = vmatprep.subr.mxu0 0.0
    %1041 = vmatpush1.msra.mxu0 0.0
    %1042 = vmatprep.subr.mxu0 0.0
    %1043 = vmatpush1.msra.mxu0 0.0
    %1044 = vmatprep.subr.mxu0 0.0
    %1045 = vmatpush1.msra.mxu0 0.0
    %1046 = vmatprep.subr.mxu0 0.0
    %1047 = vmatpush1.msra.mxu0 0.0
    %1048 = vmatprep.subr.mxu0 0.0
    %1049 = vmatpush1.msra.mxu0 0.0
    %1050 = vmatprep.subr.mxu0 0.0
    %1051 = vmatpush1.msra.mxu0 0.0
    %1052 = vmatprep.subr.mxu0 0.0
    %1053 = vmatpush1.msra.mxu0 0.0
    %1054 = vmatprep.mubr.f32.mxu0 0.0
    %1055 = vmatmul.mubr.f32.gmra.mrb[0].mxu0 %v988
    %v1056 = vpop.f32.mrb[0].mxu0
    %v1057 = vadd.f32 %v287, %v1056
    %v1058 = vpop.f32.mrb[0].mxu0
    %v1059 = vadd.f32 %v291, %v1058
    %1060 = vdwg.mxu0
    %1061 = vmatprep.subr.mxu0 %v235
    %1062 = vmatpush1.msra.mxu0 %v234
    %1063 = vmatprep.subr.mxu0 %v237
    %1064 = vmatpush1.msra.mxu0 %v236
    %1065 = vmatprep.subr.mxu0 %v239
    %1066 = vmatpush1.msra.mxu0 %v238
    %1067 = vmatprep.subr.mxu0 %v241
    %1068 = vmatpush1.msra.mxu0 %v240
    %1069 = vmatprep.subr.mxu0 %v243
    %1070 = vmatpush1.msra.mxu0 %v242
    %1071 = vmatprep.subr.mxu0 %v245
    %1072 = vmatpush1.msra.mxu0 %v244
    %1073 = vmatprep.subr.mxu0 %v247
    %1074 = vmatpush1.msra.mxu0 %v246
    %1075 = vmatprep.subr.mxu0 %v249
    %1076 = vmatpush1.msra.mxu0 %v248
    %1077 = vmatprep.subr.mxu0 0.0
    %1078 = vmatpush1.msra.mxu0 0.0
    %1079 = vmatprep.subr.mxu0 0.0
    %1080 = vmatpush1.msra.mxu0 0.0
    %1081 = vmatprep.subr.mxu0 0.0
    %1082 = vmatpush1.msra.mxu0 0.0
    %1083 = vmatprep.subr.mxu0 0.0
    %1084 = vmatpush1.msra.mxu0 0.0
    %1085 = vmatprep.subr.mxu0 0.0
    %1086 = vmatpush1.msra.mxu0 0.0
    %1087 = vmatprep.subr.mxu0 0.0
    %1088 = vmatpush1.msra.mxu0 0.0
    %1089 = vmatprep.subr.mxu0 0.0
    %1090 = vmatpush1.msra.mxu0 0.0
    %1091 = vmatprep.subr.mxu0 0.0
    %1092 = vmatpush1.msra.mxu0 0.0
    %1093 = vmatprep.subr.mxu0 0.0
    %1094 = vmatpush1.msra.mxu0 0.0
    %1095 = vmatprep.subr.mxu0 0.0
    %1096 = vmatpush1.msra.mxu0 0.0
    %1097 = vmatprep.subr.mxu0 0.0
    %1098 = vmatpush1.msra.mxu0 0.0
    %1099 = vmatprep.subr.mxu0 0.0
    %1100 = vmatpush1.msra.mxu0 0.0
    %1101 = vmatprep.subr.mxu0 0.0
    %1102 = vmatpush1.msra.mxu0 0.0
    %1103 = vmatprep.subr.mxu0 0.0
    %1104 = vmatpush1.msra.mxu0 0.0
    %1105 = vmatprep.subr.mxu0 0.0
    %1106 = vmatpush1.msra.mxu0 0.0
    %1107 = vmatprep.subr.mxu0 0.0
    %1108 = vmatpush1.msra.mxu0 0.0
    %1109 = vmatprep.subr.mxu0 0.0
    %1110 = vmatpush1.msra.mxu0 0.0
    %1111 = vmatprep.subr.mxu0 0.0
    %1112 = vmatpush1.msra.mxu0 0.0
    %1113 = vmatprep.subr.mxu0 0.0
    %1114 = vmatpush1.msra.mxu0 0.0
    %1115 = vmatprep.subr.mxu0 0.0
    %1116 = vmatpush1.msra.mxu0 0.0
    %1117 = vmatprep.subr.mxu0 0.0
    %1118 = vmatpush1.msra.mxu0 0.0
    %1119 = vmatprep.subr.mxu0 0.0
    %1120 = vmatpush1.msra.mxu0 0.0
    %1121 = vmatprep.subr.mxu0 0.0
    %1122 = vmatpush1.msra.mxu0 0.0
    %1123 = vmatprep.subr.mxu0 0.0
    %1124 = vmatpush1.msra.mxu0 0.0
    %1125 = vmatprep.mubr.f32.mxu0 0.0
    %1126 = vmatmul.mubr.f32.gmra.mrb[0].mxu0 %v884
    %v1127 = vpop.f32.mrb[0].mxu0
    %v1128 = vadd.f32 %v206, %v1127
    %v1129 = vpop.f32.mrb[0].mxu0
    %v1130 = vadd.f32 %v208, %v1129
    %1131 = vdwg.mxu0
    %v1132 = vxor.u32 %v1128, 2147483648
    %v1133 = vxor.u32 %v1130, 2147483648
    %v1134 = vmul.f32 %v1132, 1.442695
    %v1135 = vpow.pop %v1134
    %v1136 = vmul.f32 %v1133, 1.442695
    %v1137 = vpow.pop %v1136
    %v1138 = vadd.f32 %v1135, 1.0
    %v1139 = vadd.f32 %v1137, 1.0
    %v1140 = vrcp.pop %v1138
    %v1141 = vmul.f32 1.0, %v1140
    %v1142 = vrcp.pop %v1139
    %v1143 = vmul.f32 1.0, %v1142
    %v1144 = vtanh.pop %v1130
    %v1145 = vmul.f32 %v1141, %v876
    %1147 = vrot.lane.b32.xlu0 %v1144, 64
    %v1148 = vpop.permute.xlu0 %1147
    %v1150 = vmul.f32 %v1141, %v1148
    %1152 = vrot.lane.b32.xlu0 %v1150, 64
    %v1153 = vpop.permute.xlu0 %1152
    %v1155 = vadd.f32 %v1145, %v1153
    %v1156 = vtanh.pop %v1155
    %1158 = vrot.lane.b32.xlu0 %v1156, 64
    %v1159 = vpop.permute.xlu0 %1158
    %v1161 = vmul.f32 %v1143, %v1159
    %v1163 = vsel %vm324, %v1161, 0
    %1165 = vmatprep.subr.mxu0 %v251
    %1166 = vmatpush1.msra.mxu0 %v250
    %1167 = vmatprep.subr.mxu0 %v253
    %1168 = vmatpush1.msra.mxu0 %v252
    %1169 = vmatprep.subr.mxu0 %v255
    %1170 = vmatpush1.msra.mxu0 %v254
    %1171 = vmatprep.subr.mxu0 %v257
    %1172 = vmatpush1.msra.mxu0 %v256
    %1173 = vmatprep.subr.mxu0 %v259
    %1174 = vmatpush1.msra.mxu0 %v258
    %1175 = vmatprep.subr.mxu0 %v261
    %1176 = vmatpush1.msra.mxu0 %v260
    %1177 = vmatprep.subr.mxu0 %v263
    %1178 = vmatpush1.msra.mxu0 %v262
    %1179 = vmatprep.subr.mxu0 %v265
    %1180 = vmatpush1.msra.mxu0 %v264
    %1181 = vmatprep.subr.mxu0 0.0
    %1182 = vmatpush1.msra.mxu0 0.0
    %1183 = vmatprep.subr.mxu0 0.0
    %1184 = vmatpush1.msra.mxu0 0.0
    %1185 = vmatprep.subr.mxu0 0.0
    %1186 = vmatpush1.msra.mxu0 0.0
    %1187 = vmatprep.subr.mxu0 0.0
    %1188 = vmatpush1.msra.mxu0 0.0
    %1189 = vmatprep.subr.mxu0 0.0
    %1190 = vmatpush1.msra.mxu0 0.0
    %1191 = vmatprep.subr.mxu0 0.0
    %1192 = vmatpush1.msra.mxu0 0.0
    %1193 = vmatprep.subr.mxu0 0.0
    %1194 = vmatpush1.msra.mxu0 0.0
    %1195 = vmatprep.subr.mxu0 0.0
    %1196 = vmatpush1.msra.mxu0 0.0
    %1197 = vmatprep.subr.mxu0 0.0
    %1198 = vmatpush1.msra.mxu0 0.0
    %1199 = vmatprep.subr.mxu0 0.0
    %1200 = vmatpush1.msra.mxu0 0.0
    %1201 = vmatprep.subr.mxu0 0.0
    %1202 = vmatpush1.msra.mxu0 0.0
    %1203 = vmatprep.subr.mxu0 0.0
    %1204 = vmatpush1.msra.mxu0 0.0
    %1205 = vmatprep.subr.mxu0 0.0
    %1206 = vmatpush1.msra.mxu0 0.0
    %1207 = vmatprep.subr.mxu0 0.0
    %1208 = vmatpush1.msra.mxu0 0.0
    %1209 = vmatprep.subr.mxu0 0.0
    %1210 = vmatpush1.msra.mxu0 0.0
    %1211 = vmatprep.subr.mxu0 0.0
    %1212 = vmatpush1.msra.mxu0 0.0
    %1213 = vmatprep.subr.mxu0 0.0
    %1214 = vmatpush1.msra.mxu0 0.0
    %1215 = vmatprep.subr.mxu0 0.0
    %1216 = vmatpush1.msra.mxu0 0.0
    %1217 = vmatprep.subr.mxu0 0.0
    %1218 = vmatpush1.msra.mxu0 0.0
    %1219 = vmatprep.subr.mxu0 0.0
    %1220 = vmatpush1.msra.mxu0 0.0
    %1221 = vmatprep.subr.mxu0 0.0
    %1222 = vmatpush1.msra.mxu0 0.0
    %1223 = vmatprep.subr.mxu0 0.0
    %1224 = vmatpush1.msra.mxu0 0.0
    %1225 = vmatprep.subr.mxu0 0.0
    %1226 = vmatpush1.msra.mxu0 0.0
    %1227 = vmatprep.subr.mxu0 0.0
    %1228 = vmatpush1.msra.mxu0 0.0
    %1229 = vmatprep.mubr.f32.mxu0 0.0
    %1230 = vmatmul.mubr.f32.gmra.mrb[0].mxu0 %v1163
    %v1231 = vpop.f32.mrb[0].mxu0
    %v1232 = vadd.f32 %v1057, %v1231
    %v1233 = vpop.f32.mrb[0].mxu0
    %v1234 = vadd.f32 %v1059, %v1233
    %1235 = vdwg.mxu0
    %v1236 = vxor.u32 %v1232, 2147483648
    %v1237 = vxor.u32 %v1234, 2147483648
    %v1238 = vmul.f32 %v1236, 1.442695
    %v1239 = vpow.pop %v1238
    %v1240 = vmul.f32 %v1237, 1.442695
    %v1241 = vpow.pop %v1240
    %v1242 = vadd.f32 %v1239, 1.0
    %v1243 = vadd.f32 %v1241, 1.0
    %v1244 = vrcp.pop %v1242
    %v1245 = vmul.f32 1.0, %v1244
    %v1246 = vrcp.pop %v1243
    %v1247 = vmul.f32 1.0, %v1246
    %v1248 = vtanh.pop %v1234
    %v1249 = vmul.f32 %v1245, %v980
    %1251 = vrot.lane.b32.xlu0 %v1248, 64
    %v1252 = vpop.permute.xlu0 %1251
    %v1254 = vmul.f32 %v1245, %v1252
    %1256 = vrot.lane.b32.xlu0 %v1254, 64
    %v1257 = vpop.permute.xlu0 %1256
    %v1259 = vadd.f32 %v1249, %v1257
    %v1260 = vtanh.pop %v1259
    %1262 = vrot.lane.b32.xlu0 %v1260, 64
    %v1263 = vpop.permute.xlu0 %1262
    %v1265 = vmul.f32 %v1247, %v1263
    %v1267 = vsel %vm324, %v1265, 0
    %1269 = vmatprep.subr.mxu0 %v267
    %1270 = vmatpush1.msra.mxu0 %v266
    %1271 = vmatprep.subr.mxu0 %v269
    %1272 = vmatpush1.msra.mxu0 %v268
    %1273 = vmatprep.subr.mxu0 %v271
    %1274 = vmatpush1.msra.mxu0 %v270
    %1275 = vmatprep.subr.mxu0 %v273
    %1276 = vmatpush1.msra.mxu0 %v272
    %1277 = vmatprep.subr.mxu0 %v275
    %1278 = vmatpush1.msra.mxu0 %v274
    %1279 = vmatprep.subr.mxu0 %v277
    %1280 = vmatpush1.msra.mxu0 %v276
    %1281 = vmatprep.subr.mxu0 %v279
    %1282 = vmatpush1.msra.mxu0 %v278
    %1283 = vmatprep.subr.mxu0 %v281
    %1284 = vmatpush1.msra.mxu0 %v280
    %1285 = vmatprep.subr.mxu0 0.0
    %1286 = vmatpush1.msra.mxu0 0.0
    %1287 = vmatprep.subr.mxu0 0.0
    %1288 = vmatpush1.msra.mxu0 0.0
    %1289 = vmatprep.subr.mxu0 0.0
    %1290 = vmatpush1.msra.mxu0 0.0
    %1291 = vmatprep.subr.mxu0 0.0
    %1292 = vmatpush1.msra.mxu0 0.0
    %1293 = vmatprep.subr.mxu0 0.0
    %1294 = vmatpush1.msra.mxu0 0.0
    %1295 = vmatprep.subr.mxu0 0.0
    %1296 = vmatpush1.msra.mxu0 0.0
    %1297 = vmatprep.subr.mxu0 0.0
    %1298 = vmatpush1.msra.mxu0 0.0
    %1299 = vmatprep.subr.mxu0 0.0
    %1300 = vmatpush1.msra.mxu0 0.0
    %1301 = vmatprep.subr.mxu0 0.0
    %1302 = vmatpush1.msra.mxu0 0.0
    %1303 = vmatprep.subr.mxu0 0.0
    %1304 = vmatpush1.msra.mxu0 0.0
    %1305 = vmatprep.subr.mxu0 0.0
    %1306 = vmatpush1.msra.mxu0 0.0
    %1307 = vmatprep.subr.mxu0 0.0
    %1308 = vmatpush1.msra.mxu0 0.0
    %1309 = vmatprep.subr.mxu0 0.0
    %1310 = vmatpush1.msra.mxu0 0.0
    %1311 = vmatprep.subr.mxu0 0.0
    %1312 = vmatpush1.msra.mxu0 0.0
    %1313 = vmatprep.subr.mxu0 0.0
    %1314 = vmatpush1.msra.mxu0 0.0
    %1315 = vmatprep.subr.mxu0 0.0
    %1316 = vmatpush1.msra.mxu0 0.0
    %1317 = vmatprep.subr.mxu0 0.0
    %1318 = vmatpush1.msra.mxu0 0.0
    %1319 = vmatprep.subr.mxu0 0.0
    %1320 = vmatpush1.msra.mxu0 0.0
    %1321 = vmatprep.subr.mxu0 0.0
    %1322 = vmatpush1.msra.mxu0 0.0
    %1323 = vmatprep.subr.mxu0 0.0
    %1324 = vmatpush1.msra.mxu0 0.0
    %1325 = vmatprep.subr.mxu0 0.0
    %1326 = vmatpush1.msra.mxu0 0.0
    %1327 = vmatprep.subr.mxu0 0.0
    %1328 = vmatpush1.msra.mxu0 0.0
    %1329 = vmatprep.subr.mxu0 0.0
    %1330 = vmatpush1.msra.mxu0 0.0
    %1331 = vmatprep.subr.mxu0 0.0
    %1332 = vmatpush1.msra.mxu0 0.0
    %1333 = vmatprep.mubr.f32.mxu0 0.0
    %1334 = vmatmul.mubr.f32.gmra.mrb[0].mxu0 %v1267
    %v1335 = vpop.f32.mrb[0].mxu0
    %v1336 = vadd.f32 %v287, %v1335
    %v1337 = vpop.f32.mrb[0].mxu0
    %v1338 = vadd.f32 %v291, %v1337
    %1339 = vdwg.mxu0
    %1340 = vmatprep.subr.mxu0 %v235
    %1341 = vmatpush1.msra.mxu0 %v234
    %1342 = vmatprep.subr.mxu0 %v237
    %1343 = vmatpush1.msra.mxu0 %v236
    %1344 = vmatprep.subr.mxu0 %v239
    %1345 = vmatpush1.msra.mxu0 %v238
    %1346 = vmatprep.subr.mxu0 %v241
    %1347 = vmatpush1.msra.mxu0 %v240
    %1348 = vmatprep.subr.mxu0 %v243
    %1349 = vmatpush1.msra.mxu0 %v242
    %1350 = vmatprep.subr.mxu0 %v245
    %1351 = vmatpush1.msra.mxu0 %v244
    %1352 = vmatprep.subr.mxu0 %v247
    %1353 = vmatpush1.msra.mxu0 %v246
    %1354 = vmatprep.subr.mxu0 %v249
    %1355 = vmatpush1.msra.mxu0 %v248
    %1356 = vmatprep.subr.mxu0 0.0
    %1357 = vmatpush1.msra.mxu0 0.0
    %1358 = vmatprep.subr.mxu0 0.0
    %1359 = vmatpush1.msra.mxu0 0.0
    %1360 = vmatprep.subr.mxu0 0.0
    %1361 = vmatpush1.msra.mxu0 0.0
    %1362 = vmatprep.subr.mxu0 0.0
    %1363 = vmatpush1.msra.mxu0 0.0
    %1364 = vmatprep.subr.mxu0 0.0
    %1365 = vmatpush1.msra.mxu0 0.0
    %1366 = vmatprep.subr.mxu0 0.0
    %1367 = vmatpush1.msra.mxu0 0.0
    %1368 = vmatprep.subr.mxu0 0.0
    %1369 = vmatpush1.msra.mxu0 0.0
    %1370 = vmatprep.subr.mxu0 0.0
    %1371 = vmatpush1.msra.mxu0 0.0
    %1372 = vmatprep.subr.mxu0 0.0
    %1373 = vmatpush1.msra.mxu0 0.0
    %1374 = vmatprep.subr.mxu0 0.0
    %1375 = vmatpush1.msra.mxu0 0.0
    %1376 = vmatprep.subr.mxu0 0.0
    %1377 = vmatpush1.msra.mxu0 0.0
    %1378 = vmatprep.subr.mxu0 0.0
    %1379 = vmatpush1.msra.mxu0 0.0
    %1380 = vmatprep.subr.mxu0 0.0
    %1381 = vmatpush1.msra.mxu0 0.0
    %1382 = vmatprep.subr.mxu0 0.0
    %1383 = vmatpush1.msra.mxu0 0.0
    %1384 = vmatprep.subr.mxu0 0.0
    %1385 = vmatpush1.msra.mxu0 0.0
    %1386 = vmatprep.subr.mxu0 0.0
    %1387 = vmatpush1.msra.mxu0 0.0
    %1388 = vmatprep.subr.mxu0 0.0
    %1389 = vmatpush1.msra.mxu0 0.0
    %1390 = vmatprep.subr.mxu0 0.0
    %1391 = vmatpush1.msra.mxu0 0.0
    %1392 = vmatprep.subr.mxu0 0.0
    %1393 = vmatpush1.msra.mxu0 0.0
    %1394 = vmatprep.subr.mxu0 0.0
    %1395 = vmatpush1.msra.mxu0 0.0
    %1396 = vmatprep.subr.mxu0 0.0
    %1397 = vmatpush1.msra.mxu0 0.0
    %1398 = vmatprep.subr.mxu0 0.0
    %1399 = vmatpush1.msra.mxu0 0.0
    %1400 = vmatprep.subr.mxu0 0.0
    %1401 = vmatpush1.msra.mxu0 0.0
    %1402 = vmatprep.subr.mxu0 0.0
    %1403 = vmatpush1.msra.mxu0 0.0
    %1404 = vmatprep.mubr.f32.mxu0 0.0
    %1405 = vmatmul.mubr.f32.gmra.mrb[0].mxu0 %v1163
    %v1406 = vpop.f32.mrb[0].mxu0
    %v1407 = vadd.f32 %v212, %v1406
    %v1408 = vpop.f32.mrb[0].mxu0
    %v1409 = vadd.f32 %v214, %v1408
    %1410 = vdwg.mxu0
    %v1411 = vxor.u32 %v1407, 2147483648
    %v1412 = vxor.u32 %v1409, 2147483648
    %v1413 = vmul.f32 %v1411, 1.442695
    %v1414 = vpow.pop %v1413
    %v1415 = vmul.f32 %v1412, 1.442695
    %v1416 = vpow.pop %v1415
    %v1417 = vadd.f32 %v1414, 1.0
    %v1418 = vadd.f32 %v1416, 1.0
    %v1419 = vrcp.pop %v1417
    %v1420 = vmul.f32 1.0, %v1419
    %v1421 = vrcp.pop %v1418
    %v1422 = vmul.f32 1.0, %v1421
    %v1423 = vtanh.pop %v1409
    %v1424 = vmul.f32 %v1420, %v1155
    %1426 = vrot.lane.b32.xlu0 %v1423, 64
    %v1427 = vpop.permute.xlu0 %1426
    %v1429 = vmul.f32 %v1420, %v1427
    %1431 = vrot.lane.b32.xlu0 %v1429, 64
    %v1432 = vpop.permute.xlu0 %1431
    %v1434 = vadd.f32 %v1424, %v1432
    %v1435 = vtanh.pop %v1434
    %1437 = vrot.lane.b32.xlu0 %v1435, 64
    %v1438 = vpop.permute.xlu0 %1437
    %v1440 = vmul.f32 %v1422, %v1438
    %v1442 = vsel %vm324, %v1440, 0
    %1444 = vmatprep.subr.mxu0 %v251
    %1445 = vmatpush1.msra.mxu0 %v250
    %1446 = vmatprep.subr.mxu0 %v253
    %1447 = vmatpush1.msra.mxu0 %v252
    %1448 = vmatprep.subr.mxu0 %v255
    %1449 = vmatpush1.msra.mxu0 %v254
    %1450 = vmatprep.subr.mxu0 %v257
    %1451 = vmatpush1.msra.mxu0 %v256
    %1452 = vmatprep.subr.mxu0 %v259
    %1453 = vmatpush1.msra.mxu0 %v258
    %1454 = vmatprep.subr.mxu0 %v261
    %1455 = vmatpush1.msra.mxu0 %v260
    %1456 = vmatprep.subr.mxu0 %v263
    %1457 = vmatpush1.msra.mxu0 %v262
    %1458 = vmatprep.subr.mxu0 %v265
    %1459 = vmatpush1.msra.mxu0 %v264
    %1460 = vmatprep.subr.mxu0 0.0
    %1461 = vmatpush1.msra.mxu0 0.0
    %1462 = vmatprep.subr.mxu0 0.0
    %1463 = vmatpush1.msra.mxu0 0.0
    %1464 = vmatprep.subr.mxu0 0.0
    %1465 = vmatpush1.msra.mxu0 0.0
    %1466 = vmatprep.subr.mxu0 0.0
    %1467 = vmatpush1.msra.mxu0 0.0
    %1468 = vmatprep.subr.mxu0 0.0
    %1469 = vmatpush1.msra.mxu0 0.0
    %1470 = vmatprep.subr.mxu0 0.0
    %1471 = vmatpush1.msra.mxu0 0.0
    %1472 = vmatprep.subr.mxu0 0.0
    %1473 = vmatpush1.msra.mxu0 0.0
    %1474 = vmatprep.subr.mxu0 0.0
    %1475 = vmatpush1.msra.mxu0 0.0
    %1476 = vmatprep.subr.mxu0 0.0
    %1477 = vmatpush1.msra.mxu0 0.0
    %1478 = vmatprep.subr.mxu0 0.0
    %1479 = vmatpush1.msra.mxu0 0.0
    %1480 = vmatprep.subr.mxu0 0.0
    %1481 = vmatpush1.msra.mxu0 0.0
    %1482 = vmatprep.subr.mxu0 0.0
    %1483 = vmatpush1.msra.mxu0 0.0
    %1484 = vmatprep.subr.mxu0 0.0
    %1485 = vmatpush1.msra.mxu0 0.0
    %1486 = vmatprep.subr.mxu0 0.0
    %1487 = vmatpush1.msra.mxu0 0.0
    %1488 = vmatprep.subr.mxu0 0.0
    %1489 = vmatpush1.msra.mxu0 0.0
    %1490 = vmatprep.subr.mxu0 0.0
    %1491 = vmatpush1.msra.mxu0 0.0
    %1492 = vmatprep.subr.mxu0 0.0
    %1493 = vmatpush1.msra.mxu0 0.0
    %1494 = vmatprep.subr.mxu0 0.0
    %1495 = vmatpush1.msra.mxu0 0.0
    %1496 = vmatprep.subr.mxu0 0.0
    %1497 = vmatpush1.msra.mxu0 0.0
    %1498 = vmatprep.subr.mxu0 0.0
    %1499 = vmatpush1.msra.mxu0 0.0
    %1500 = vmatprep.subr.mxu0 0.0
    %1501 = vmatpush1.msra.mxu0 0.0
    %1502 = vmatprep.subr.mxu0 0.0
    %1503 = vmatpush1.msra.mxu0 0.0
    %1504 = vmatprep.subr.mxu0 0.0
    %1505 = vmatpush1.msra.mxu0 0.0
    %1506 = vmatprep.subr.mxu0 0.0
    %1507 = vmatpush1.msra.mxu0 0.0
    %1508 = vmatprep.mubr.f32.mxu0 0.0
    %1509 = vmatmul.mubr.f32.gmra.mrb[0].mxu0 %v1442
    %v1510 = vpop.f32.mrb[0].mxu0
    %v1511 = vadd.f32 %v1336, %v1510
    %v1512 = vpop.f32.mrb[0].mxu0
    %v1513 = vadd.f32 %v1338, %v1512
    %1514 = vdwg.mxu0
    %v1515 = vxor.u32 %v1511, 2147483648
    %v1516 = vxor.u32 %v1513, 2147483648
    %v1517 = vmul.f32 %v1515, 1.442695
    %v1518 = vpow.pop %v1517
    %v1519 = vmul.f32 %v1516, 1.442695
    %v1520 = vpow.pop %v1519
    %v1521 = vadd.f32 %v1518, 1.0
    %v1522 = vadd.f32 %v1520, 1.0
    %v1523 = vrcp.pop %v1521
    %v1524 = vmul.f32 1.0, %v1523
    %v1525 = vrcp.pop %v1522
    %v1526 = vmul.f32 1.0, %v1525
    %v1527 = vtanh.pop %v1513
    %v1528 = vmul.f32 %v1524, %v1259
    %1530 = vrot.lane.b32.xlu0 %v1527, 64
    %v1531 = vpop.permute.xlu0 %1530
    %v1533 = vmul.f32 %v1524, %v1531
    %1535 = vrot.lane.b32.xlu0 %v1533, 64
    %v1536 = vpop.permute.xlu0 %1535
    %v1538 = vadd.f32 %v1528, %v1536
    %v1539 = vtanh.pop %v1538
    %1541 = vrot.lane.b32.xlu0 %v1539, 64
    %v1542 = vpop.permute.xlu0 %1541
    %v1544 = vmul.f32 %v1526, %v1542
    %v1546 = vsel %vm324, %v1544, 0
    %1548 = vmatprep.subr.mxu0 %v267
    %1549 = vmatpush1.msra.mxu0 %v266
    %1550 = vmatprep.subr.mxu0 %v269
    %1551 = vmatpush1.msra.mxu0 %v268
    %1552 = vmatprep.subr.mxu0 %v271
    %1553 = vmatpush1.msra.mxu0 %v270
    %1554 = vmatprep.subr.mxu0 %v273
    %1555 = vmatpush1.msra.mxu0 %v272
    %1556 = vmatprep.subr.mxu0 %v275
    %1557 = vmatpush1.msra.mxu0 %v274
    %1558 = vmatprep.subr.mxu0 %v277
    %1559 = vmatpush1.msra.mxu0 %v276
    %1560 = vmatprep.subr.mxu0 %v279
    %1561 = vmatpush1.msra.mxu0 %v278
    %1562 = vmatprep.subr.mxu0 %v281
    %1563 = vmatpush1.msra.mxu0 %v280
    %1564 = vmatprep.subr.mxu0 0.0
    %1565 = vmatpush1.msra.mxu0 0.0
    %1566 = vmatprep.subr.mxu0 0.0
    %1567 = vmatpush1.msra.mxu0 0.0
    %1568 = vmatprep.subr.mxu0 0.0
    %1569 = vmatpush1.msra.mxu0 0.0
    %1570 = vmatprep.subr.mxu0 0.0
    %1571 = vmatpush1.msra.mxu0 0.0
    %1572 = vmatprep.subr.mxu0 0.0
    %1573 = vmatpush1.msra.mxu0 0.0
    %1574 = vmatprep.subr.mxu0 0.0
    %1575 = vmatpush1.msra.mxu0 0.0
    %1576 = vmatprep.subr.mxu0 0.0
    %1577 = vmatpush1.msra.mxu0 0.0
    %1578 = vmatprep.subr.mxu0 0.0
    %1579 = vmatpush1.msra.mxu0 0.0
    %1580 = vmatprep.subr.mxu0 0.0
    %1581 = vmatpush1.msra.mxu0 0.0
    %1582 = vmatprep.subr.mxu0 0.0
    %1583 = vmatpush1.msra.mxu0 0.0
    %1584 = vmatprep.subr.mxu0 0.0
    %1585 = vmatpush1.msra.mxu0 0.0
    %1586 = vmatprep.subr.mxu0 0.0
    %1587 = vmatpush1.msra.mxu0 0.0
    %1588 = vmatprep.subr.mxu0 0.0
    %1589 = vmatpush1.msra.mxu0 0.0
    %1590 = vmatprep.subr.mxu0 0.0
    %1591 = vmatpush1.msra.mxu0 0.0
    %1592 = vmatprep.subr.mxu0 0.0
    %1593 = vmatpush1.msra.mxu0 0.0
    %1594 = vmatprep.subr.mxu0 0.0
    %1595 = vmatpush1.msra.mxu0 0.0
    %1596 = vmatprep.subr.mxu0 0.0
    %1597 = vmatpush1.msra.mxu0 0.0
    %1598 = vmatprep.subr.mxu0 0.0
    %1599 = vmatpush1.msra.mxu0 0.0
    %1600 = vmatprep.subr.mxu0 0.0
    %1601 = vmatpush1.msra.mxu0 0.0
    %1602 = vmatprep.subr.mxu0 0.0
    %1603 = vmatpush1.msra.mxu0 0.0
    %1604 = vmatprep.subr.mxu0 0.0
    %1605 = vmatpush1.msra.mxu0 0.0
    %1606 = vmatprep.subr.mxu0 0.0
    %1607 = vmatpush1.msra.mxu0 0.0
    %1608 = vmatprep.subr.mxu0 0.0
    %1609 = vmatpush1.msra.mxu0 0.0
    %1610 = vmatprep.subr.mxu0 0.0
    %1611 = vmatpush1.msra.mxu0 0.0
    %1612 = vmatprep.mubr.f32.mxu0 0.0
    %1613 = vmatmul.mubr.f32.gmra.mrb[0].mxu0 %v1546
    %v1614 = vpop.f32.mrb[0].mxu0
    %v1615 = vadd.f32 %v287, %v1614
    %v1616 = vpop.f32.mrb[0].mxu0
    %v1617 = vadd.f32 %v291, %v1616
    %1618 = vdwg.mxu0
    %1619 = vmatprep.subr.mxu0 %v235
    %1620 = vmatpush1.msra.mxu0 %v234
    %1621 = vmatprep.subr.mxu0 %v237
    %1622 = vmatpush1.msra.mxu0 %v236
    %1623 = vmatprep.subr.mxu0 %v239
    %1624 = vmatpush1.msra.mxu0 %v238
    %1625 = vmatprep.subr.mxu0 %v241
    %1626 = vmatpush1.msra.mxu0 %v240
    %1627 = vmatprep.subr.mxu0 %v243
    %1628 = vmatpush1.msra.mxu0 %v242
    %1629 = vmatprep.subr.mxu0 %v245
    %1630 = vmatpush1.msra.mxu0 %v244
    %1631 = vmatprep.subr.mxu0 %v247
    %1632 = vmatpush1.msra.mxu0 %v246
    %1633 = vmatprep.subr.mxu0 %v249
    %1634 = vmatpush1.msra.mxu0 %v248
    %1635 = vmatprep.subr.mxu0 0.0
    %1636 = vmatpush1.msra.mxu0 0.0
    %1637 = vmatprep.subr.mxu0 0.0
    %1638 = vmatpush1.msra.mxu0 0.0
    %1639 = vmatprep.subr.mxu0 0.0
    %1640 = vmatpush1.msra.mxu0 0.0
    %1641 = vmatprep.subr.mxu0 0.0
    %1642 = vmatpush1.msra.mxu0 0.0
    %1643 = vmatprep.subr.mxu0 0.0
    %1644 = vmatpush1.msra.mxu0 0.0
    %1645 = vmatprep.subr.mxu0 0.0
    %1646 = vmatpush1.msra.mxu0 0.0
    %1647 = vmatprep.subr.mxu0 0.0
    %1648 = vmatpush1.msra.mxu0 0.0
    %1649 = vmatprep.subr.mxu0 0.0
    %1650 = vmatpush1.msra.mxu0 0.0
    %1651 = vmatprep.subr.mxu0 0.0
    %1652 = vmatpush1.msra.mxu0 0.0
    %1653 = vmatprep.subr.mxu0 0.0
    %1654 = vmatpush1.msra.mxu0 0.0
    %1655 = vmatprep.subr.mxu0 0.0
    %1656 = vmatpush1.msra.mxu0 0.0
    %1657 = vmatprep.subr.mxu0 0.0
    %1658 = vmatpush1.msra.mxu0 0.0
    %1659 = vmatprep.subr.mxu0 0.0
    %1660 = vmatpush1.msra.mxu0 0.0
    %1661 = vmatprep.subr.mxu0 0.0
    %1662 = vmatpush1.msra.mxu0 0.0
    %1663 = vmatprep.subr.mxu0 0.0
    %1664 = vmatpush1.msra.mxu0 0.0
    %1665 = vmatprep.subr.mxu0 0.0
    %1666 = vmatpush1.msra.mxu0 0.0
    %1667 = vmatprep.subr.mxu0 0.0
    %1668 = vmatpush1.msra.mxu0 0.0
    %1669 = vmatprep.subr.mxu0 0.0
    %1670 = vmatpush1.msra.mxu0 0.0
    %1671 = vmatprep.subr.mxu0 0.0
    %1672 = vmatpush1.msra.mxu0 0.0
    %1673 = vmatprep.subr.mxu0 0.0
    %1674 = vmatpush1.msra.mxu0 0.0
    %1675 = vmatprep.subr.mxu0 0.0
    %1676 = vmatpush1.msra.mxu0 0.0
    %1677 = vmatprep.subr.mxu0 0.0
    %1678 = vmatpush1.msra.mxu0 0.0
    %1679 = vmatprep.subr.mxu0 0.0
    %1680 = vmatpush1.msra.mxu0 0.0
    %1681 = vmatprep.subr.mxu0 0.0
    %1682 = vmatpush1.msra.mxu0 0.0
    %1683 = vmatprep.mubr.f32.mxu0 0.0
    %1684 = vmatmul.mubr.f32.gmra.mrb[0].mxu0 %v1442
    %v1685 = vpop.f32.mrb[0].mxu0
    %v1686 = vadd.f32 %v218, %v1685
    %v1687 = vpop.f32.mrb[0].mxu0
    %v1688 = vadd.f32 %v220, %v1687
    %1689 = vdwg.mxu0
    %v1690 = vxor.u32 %v1686, 2147483648
    %v1691 = vxor.u32 %v1688, 2147483648
    %v1692 = vmul.f32 %v1690, 1.442695
    %v1693 = vpow.pop %v1692
    %v1694 = vmul.f32 %v1691, 1.442695
    %v1695 = vpow.pop %v1694
    %v1696 = vadd.f32 %v1693, 1.0
    %v1697 = vadd.f32 %v1695, 1.0
    %v1698 = vrcp.pop %v1696
    %v1699 = vmul.f32 1.0, %v1698
    %v1700 = vrcp.pop %v1697
    %v1701 = vmul.f32 1.0, %v1700
    %v1702 = vtanh.pop %v1688
    %v1703 = vmul.f32 %v1699, %v1434
    %1705 = vrot.lane.b32.xlu0 %v1702, 64
    %v1706 = vpop.permute.xlu0 %1705
    %v1708 = vmul.f32 %v1699, %v1706
    %1710 = vrot.lane.b32.xlu0 %v1708, 64
    %v1711 = vpop.permute.xlu0 %1710
    %v1713 = vadd.f32 %v1703, %v1711
    %v1714 = vtanh.pop %v1713
    %1716 = vrot.lane.b32.xlu0 %v1714, 64
    %v1717 = vpop.permute.xlu0 %1716
    %v1719 = vmul.f32 %v1701, %v1717
    %v1721 = vsel %vm324, %v1719, 0
    %1723 = vmatprep.subr.mxu0 %v251
    %1724 = vmatpush1.msra.mxu0 %v250
    %1725 = vmatprep.subr.mxu0 %v253
    %1726 = vmatpush1.msra.mxu0 %v252
    %1727 = vmatprep.subr.mxu0 %v255
    %1728 = vmatpush1.msra.mxu0 %v254
    %1729 = vmatprep.subr.mxu0 %v257
    %1730 = vmatpush1.msra.mxu0 %v256
    %1731 = vmatprep.subr.mxu0 %v259
    %1732 = vmatpush1.msra.mxu0 %v258
    %1733 = vmatprep.subr.mxu0 %v261
    %1734 = vmatpush1.msra.mxu0 %v260
    %1735 = vmatprep.subr.mxu0 %v263
    %1736 = vmatpush1.msra.mxu0 %v262
    %1737 = vmatprep.subr.mxu0 %v265
    %1738 = vmatpush1.msra.mxu0 %v264
    %1739 = vmatprep.subr.mxu0 0.0
    %1740 = vmatpush1.msra.mxu0 0.0
    %1741 = vmatprep.subr.mxu0 0.0
    %1742 = vmatpush1.msra.mxu0 0.0
    %1743 = vmatprep.subr.mxu0 0.0
    %1744 = vmatpush1.msra.mxu0 0.0
    %1745 = vmatprep.subr.mxu0 0.0
    %1746 = vmatpush1.msra.mxu0 0.0
    %1747 = vmatprep.subr.mxu0 0.0
    %1748 = vmatpush1.msra.mxu0 0.0
    %1749 = vmatprep.subr.mxu0 0.0
    %1750 = vmatpush1.msra.mxu0 0.0
    %1751 = vmatprep.subr.mxu0 0.0
    %1752 = vmatpush1.msra.mxu0 0.0
    %1753 = vmatprep.subr.mxu0 0.0
    %1754 = vmatpush1.msra.mxu0 0.0
    %1755 = vmatprep.subr.mxu0 0.0
    %1756 = vmatpush1.msra.mxu0 0.0
    %1757 = vmatprep.subr.mxu0 0.0
    %1758 = vmatpush1.msra.mxu0 0.0
    %1759 = vmatprep.subr.mxu0 0.0
    %1760 = vmatpush1.msra.mxu0 0.0
    %1761 = vmatprep.subr.mxu0 0.0
    %1762 = vmatpush1.msra.mxu0 0.0
    %1763 = vmatprep.subr.mxu0 0.0
    %1764 = vmatpush1.msra.mxu0 0.0
    %1765 = vmatprep.subr.mxu0 0.0
    %1766 = vmatpush1.msra.mxu0 0.0
    %1767 = vmatprep.subr.mxu0 0.0
    %1768 = vmatpush1.msra.mxu0 0.0
    %1769 = vmatprep.subr.mxu0 0.0
    %1770 = vmatpush1.msra.mxu0 0.0
    %1771 = vmatprep.subr.mxu0 0.0
    %1772 = vmatpush1.msra.mxu0 0.0
    %1773 = vmatprep.subr.mxu0 0.0
    %1774 = vmatpush1.msra.mxu0 0.0
    %1775 = vmatprep.subr.mxu0 0.0
    %1776 = vmatpush1.msra.mxu0 0.0
    %1777 = vmatprep.subr.mxu0 0.0
    %1778 = vmatpush1.msra.mxu0 0.0
    %1779 = vmatprep.subr.mxu0 0.0
    %1780 = vmatpush1.msra.mxu0 0.0
    %1781 = vmatprep.subr.mxu0 0.0
    %1782 = vmatpush1.msra.mxu0 0.0
    %1783 = vmatprep.subr.mxu0 0.0
    %1784 = vmatpush1.msra.mxu0 0.0
    %1785 = vmatprep.subr.mxu0 0.0
    %1786 = vmatpush1.msra.mxu0 0.0
    %1787 = vmatprep.mubr.f32.mxu0 0.0
    %1788 = vmatmul.mubr.f32.gmra.mrb[0].mxu0 %v1721
    %v1789 = vpop.f32.mrb[0].mxu0
    %v1790 = vadd.f32 %v1615, %v1789
    %v1791 = vpop.f32.mrb[0].mxu0
    %v1792 = vadd.f32 %v1617, %v1791
    %1793 = vdwg.mxu0
    %v1794 = vxor.u32 %v1790, 2147483648
    %v1795 = vxor.u32 %v1792, 2147483648
    %v1796 = vmul.f32 %v1794, 1.442695
    %v1797 = vpow.pop %v1796
    %v1798 = vmul.f32 %v1795, 1.442695
    %v1799 = vpow.pop %v1798
    %v1800 = vadd.f32 %v1797, 1.0
    %v1801 = vadd.f32 %v1799, 1.0
    %v1802 = vrcp.pop %v1800
    %v1803 = vmul.f32 1.0, %v1802
    %v1804 = vrcp.pop %v1801
    %v1805 = vmul.f32 1.0, %v1804
    %v1806 = vtanh.pop %v1792
    %v1807 = vmul.f32 %v1803, %v1538
    %1809 = vrot.lane.b32.xlu0 %v1806, 64
    %v1810 = vpop.permute.xlu0 %1809
    %v1812 = vmul.f32 %v1803, %v1810
    %1814 = vrot.lane.b32.xlu0 %v1812, 64
    %v1815 = vpop.permute.xlu0 %1814
    %v1817 = vadd.f32 %v1807, %v1815
    %v1818 = vtanh.pop %v1817
    %1820 = vrot.lane.b32.xlu0 %v1818, 64
    %v1821 = vpop.permute.xlu0 %1820
    %v1823 = vmul.f32 %v1805, %v1821
    %v1825 = vsel %vm324, %v1823, 0
    %1827 = vmatprep.subr.mxu0 %v267
    %1828 = vmatpush1.msra.mxu0 %v266
    %1829 = vmatprep.subr.mxu0 %v269
    %1830 = vmatpush1.msra.mxu0 %v268
    %1831 = vmatprep.subr.mxu0 %v271
    %1832 = vmatpush1.msra.mxu0 %v270
    %1833 = vmatprep.subr.mxu0 %v273
    %1834 = vmatpush1.msra.mxu0 %v272
    %1835 = vmatprep.subr.mxu0 %v275
    %1836 = vmatpush1.msra.mxu0 %v274
    %1837 = vmatprep.subr.mxu0 %v277
    %1838 = vmatpush1.msra.mxu0 %v276
    %1839 = vmatprep.subr.mxu0 %v279
    %1840 = vmatpush1.msra.mxu0 %v278
    %1841 = vmatprep.subr.mxu0 %v281
    %1842 = vmatpush1.msra.mxu0 %v280
    %1843 = vmatprep.subr.mxu0 0.0
    %1844 = vmatpush1.msra.mxu0 0.0
    %1845 = vmatprep.subr.mxu0 0.0
    %1846 = vmatpush1.msra.mxu0 0.0
    %1847 = vmatprep.subr.mxu0 0.0
    %1848 = vmatpush1.msra.mxu0 0.0
    %1849 = vmatprep.subr.mxu0 0.0
    %1850 = vmatpush1.msra.mxu0 0.0
    %1851 = vmatprep.subr.mxu0 0.0
    %1852 = vmatpush1.msra.mxu0 0.0
    %1853 = vmatprep.subr.mxu0 0.0
    %1854 = vmatpush1.msra.mxu0 0.0
    %1855 = vmatprep.subr.mxu0 0.0
    %1856 = vmatpush1.msra.mxu0 0.0
    %1857 = vmatprep.subr.mxu0 0.0
    %1858 = vmatpush1.msra.mxu0 0.0
    %1859 = vmatprep.subr.mxu0 0.0
    %1860 = vmatpush1.msra.mxu0 0.0
    %1861 = vmatprep.subr.mxu0 0.0
    %1862 = vmatpush1.msra.mxu0 0.0
    %1863 = vmatprep.subr.mxu0 0.0
    %1864 = vmatpush1.msra.mxu0 0.0
    %1865 = vmatprep.subr.mxu0 0.0
    %1866 = vmatpush1.msra.mxu0 0.0
    %1867 = vmatprep.subr.mxu0 0.0
    %1868 = vmatpush1.msra.mxu0 0.0
    %1869 = vmatprep.subr.mxu0 0.0
    %1870 = vmatpush1.msra.mxu0 0.0
    %1871 = vmatprep.subr.mxu0 0.0
    %1872 = vmatpush1.msra.mxu0 0.0
    %1873 = vmatprep.subr.mxu0 0.0
    %1874 = vmatpush1.msra.mxu0 0.0
    %1875 = vmatprep.subr.mxu0 0.0
    %1876 = vmatpush1.msra.mxu0 0.0
    %1877 = vmatprep.subr.mxu0 0.0
    %1878 = vmatpush1.msra.mxu0 0.0
    %1879 = vmatprep.subr.mxu0 0.0
    %1880 = vmatpush1.msra.mxu0 0.0
    %1881 = vmatprep.subr.mxu0 0.0
    %1882 = vmatpush1.msra.mxu0 0.0
    %1883 = vmatprep.subr.mxu0 0.0
    %1884 = vmatpush1.msra.mxu0 0.0
    %1885 = vmatprep.subr.mxu0 0.0
    %1886 = vmatpush1.msra.mxu0 0.0
    %1887 = vmatprep.subr.mxu0 0.0
    %1888 = vmatpush1.msra.mxu0 0.0
    %1889 = vmatprep.subr.mxu0 0.0
    %1890 = vmatpush1.msra.mxu0 0.0
    %1891 = vmatprep.mubr.f32.mxu0 0.0
    %1892 = vmatmul.mubr.f32.gmra.mrb[0].mxu0 %v1825
    %v1893 = vpop.f32.mrb[0].mxu0
    %v1894 = vadd.f32 %v287, %v1893
    %v1895 = vpop.f32.mrb[0].mxu0
    %v1896 = vadd.f32 %v291, %v1895
    %1897 = vdwg.mxu0
    %1898 = vmatprep.subr.mxu0 %v235
    %1899 = vmatpush1.msra.mxu0 %v234
    %1900 = vmatprep.subr.mxu0 %v237
    %1901 = vmatpush1.msra.mxu0 %v236
    %1902 = vmatprep.subr.mxu0 %v239
    %1903 = vmatpush1.msra.mxu0 %v238
    %1904 = vmatprep.subr.mxu0 %v241
    %1905 = vmatpush1.msra.mxu0 %v240
    %1906 = vmatprep.subr.mxu0 %v243
    %1907 = vmatpush1.msra.mxu0 %v242
    %1908 = vmatprep.subr.mxu0 %v245
    %1909 = vmatpush1.msra.mxu0 %v244
    %1910 = vmatprep.subr.mxu0 %v247
    %1911 = vmatpush1.msra.mxu0 %v246
    %1912 = vmatprep.subr.mxu0 %v249
    %1913 = vmatpush1.msra.mxu0 %v248
    %1914 = vmatprep.subr.mxu0 0.0
    %1915 = vmatpush1.msra.mxu0 0.0
    %1916 = vmatprep.subr.mxu0 0.0
    %1917 = vmatpush1.msra.mxu0 0.0
    %1918 = vmatprep.subr.mxu0 0.0
    %1919 = vmatpush1.msra.mxu0 0.0
    %1920 = vmatprep.subr.mxu0 0.0
    %1921 = vmatpush1.msra.mxu0 0.0
    %1922 = vmatprep.subr.mxu0 0.0
    %1923 = vmatpush1.msra.mxu0 0.0
    %1924 = vmatprep.subr.mxu0 0.0
    %1925 = vmatpush1.msra.mxu0 0.0
    %1926 = vmatprep.subr.mxu0 0.0
    %1927 = vmatpush1.msra.mxu0 0.0
    %1928 = vmatprep.subr.mxu0 0.0
    %1929 = vmatpush1.msra.mxu0 0.0
    %1930 = vmatprep.subr.mxu0 0.0
    %1931 = vmatpush1.msra.mxu0 0.0
    %1932 = vmatprep.subr.mxu0 0.0
    %1933 = vmatpush1.msra.mxu0 0.0
    %1934 = vmatprep.subr.mxu0 0.0
    %1935 = vmatpush1.msra.mxu0 0.0
    %1936 = vmatprep.subr.mxu0 0.0
    %1937 = vmatpush1.msra.mxu0 0.0
    %1938 = vmatprep.subr.mxu0 0.0
    %1939 = vmatpush1.msra.mxu0 0.0
    %1940 = vmatprep.subr.mxu0 0.0
    %1941 = vmatpush1.msra.mxu0 0.0
    %1942 = vmatprep.subr.mxu0 0.0
    %1943 = vmatpush1.msra.mxu0 0.0
    %1944 = vmatprep.subr.mxu0 0.0
    %1945 = vmatpush1.msra.mxu0 0.0
    %1946 = vmatprep.subr.mxu0 0.0
    %1947 = vmatpush1.msra.mxu0 0.0
    %1948 = vmatprep.subr.mxu0 0.0
    %1949 = vmatpush1.msra.mxu0 0.0
    %1950 = vmatprep.subr.mxu0 0.0
    %1951 = vmatpush1.msra.mxu0 0.0
    %1952 = vmatprep.subr.mxu0 0.0
    %1953 = vmatpush1.msra.mxu0 0.0
    %1954 = vmatprep.subr.mxu0 0.0
    %1955 = vmatpush1.msra.mxu0 0.0
    %1956 = vmatprep.subr.mxu0 0.0
    %1957 = vmatpush1.msra.mxu0 0.0
    %1958 = vmatprep.subr.mxu0 0.0
    %1959 = vmatpush1.msra.mxu0 0.0
    %1960 = vmatprep.subr.mxu0 0.0
    %1961 = vmatpush1.msra.mxu0 0.0
    %1962 = vmatprep.mubr.f32.mxu0 0.0
    %1963 = vmatmul.mubr.f32.gmra.mrb[0].mxu0 %v1721
    %v1964 = vpop.f32.mrb[0].mxu0
    %v1965 = vadd.f32 %v224, %v1964
    %v1966 = vpop.f32.mrb[0].mxu0
    %v1967 = vadd.f32 %v226, %v1966
    %1968 = vdwg.mxu0
    %v1969 = vxor.u32 %v1965, 2147483648
    %v1970 = vxor.u32 %v1967, 2147483648
    %v1971 = vmul.f32 %v1969, 1.442695
    %v1972 = vpow.pop %v1971
    %v1973 = vmul.f32 %v1970, 1.442695
    %v1974 = vpow.pop %v1973
    %v1975 = vadd.f32 %v1972, 1.0
    %v1976 = vadd.f32 %v1974, 1.0
    %v1977 = vrcp.pop %v1975
    %v1978 = vmul.f32 1.0, %v1977
    %v1979 = vrcp.pop %v1976
    %v1980 = vmul.f32 1.0, %v1979
    %v1981 = vtanh.pop %v1967
    %v1982 = vmul.f32 %v1978, %v1713
    %1984 = vrot.lane.b32.xlu0 %v1981, 64
    %v1985 = vpop.permute.xlu0 %1984
    %v1987 = vmul.f32 %v1978, %v1985
    %1989 = vrot.lane.b32.xlu0 %v1987, 64
    %v1990 = vpop.permute.xlu0 %1989
    %v1992 = vadd.f32 %v1982, %v1990
    %v1993 = vtanh.pop %v1992
    %1995 = vrot.lane.b32.xlu0 %v1993, 64
    %v1996 = vpop.permute.xlu0 %1995
    %v1998 = vmul.f32 %v1980, %v1996
    %v2000 = vsel %vm324, %v1998, 0
    %2002 = vmatprep.subr.mxu0 %v251
    %2003 = vmatpush1.msra.mxu0 %v250
    %2004 = vmatprep.subr.mxu0 %v253
    %2005 = vmatpush1.msra.mxu0 %v252
    %2006 = vmatprep.subr.mxu0 %v255
    %2007 = vmatpush1.msra.mxu0 %v254
    %2008 = vmatprep.subr.mxu0 %v257
    %2009 = vmatpush1.msra.mxu0 %v256
    %2010 = vmatprep.subr.mxu0 %v259
    %2011 = vmatpush1.msra.mxu0 %v258
    %2012 = vmatprep.subr.mxu0 %v261
    %2013 = vmatpush1.msra.mxu0 %v260
    %2014 = vmatprep.subr.mxu0 %v263
    %2015 = vmatpush1.msra.mxu0 %v262
    %2016 = vmatprep.subr.mxu0 %v265
    %2017 = vmatpush1.msra.mxu0 %v264
    %2018 = vmatprep.subr.mxu0 0.0
    %2019 = vmatpush1.msra.mxu0 0.0
    %2020 = vmatprep.subr.mxu0 0.0
    %2021 = vmatpush1.msra.mxu0 0.0
    %2022 = vmatprep.subr.mxu0 0.0
    %2023 = vmatpush1.msra.mxu0 0.0
    %2024 = vmatprep.subr.mxu0 0.0
    %2025 = vmatpush1.msra.mxu0 0.0
    %2026 = vmatprep.subr.mxu0 0.0
    %2027 = vmatpush1.msra.mxu0 0.0
    %2028 = vmatprep.subr.mxu0 0.0
    %2029 = vmatpush1.msra.mxu0 0.0
    %2030 = vmatprep.subr.mxu0 0.0
    %2031 = vmatpush1.msra.mxu0 0.0
    %2032 = vmatprep.subr.mxu0 0.0
    %2033 = vmatpush1.msra.mxu0 0.0
    %2034 = vmatprep.subr.mxu0 0.0
    %2035 = vmatpush1.msra.mxu0 0.0
    %2036 = vmatprep.subr.mxu0 0.0
    %2037 = vmatpush1.msra.mxu0 0.0
    %2038 = vmatprep.subr.mxu0 0.0
    %2039 = vmatpush1.msra.mxu0 0.0
    %2040 = vmatprep.subr.mxu0 0.0
    %2041 = vmatpush1.msra.mxu0 0.0
    %2042 = vmatprep.subr.mxu0 0.0
    %2043 = vmatpush1.msra.mxu0 0.0
    %2044 = vmatprep.subr.mxu0 0.0
    %2045 = vmatpush1.msra.mxu0 0.0
    %2046 = vmatprep.subr.mxu0 0.0
    %2047 = vmatpush1.msra.mxu0 0.0
    %2048 = vmatprep.subr.mxu0 0.0
    %2049 = vmatpush1.msra.mxu0 0.0
    %2050 = vmatprep.subr.mxu0 0.0
    %2051 = vmatpush1.msra.mxu0 0.0
    %2052 = vmatprep.subr.mxu0 0.0
    %2053 = vmatpush1.msra.mxu0 0.0
    %2054 = vmatprep.subr.mxu0 0.0
    %2055 = vmatpush1.msra.mxu0 0.0
    %2056 = vmatprep.subr.mxu0 0.0
    %2057 = vmatpush1.msra.mxu0 0.0
    %2058 = vmatprep.subr.mxu0 0.0
    %2059 = vmatpush1.msra.mxu0 0.0
    %2060 = vmatprep.subr.mxu0 0.0
    %2061 = vmatpush1.msra.mxu0 0.0
    %2062 = vmatprep.subr.mxu0 0.0
    %2063 = vmatpush1.msra.mxu0 0.0
    %2064 = vmatprep.subr.mxu0 0.0
    %2065 = vmatpush1.msra.mxu0 0.0
    %2066 = vmatprep.mubr.f32.mxu0 0.0
    %2067 = vmatmul.mubr.f32.gmra.mrb[0].mxu0 %v2000
    %v2068 = vpop.f32.mrb[0].mxu0
    %v2069 = vadd.f32 %v1894, %v2068
    %v2070 = vpop.f32.mrb[0].mxu0
    %v2071 = vadd.f32 %v1896, %v2070
    %2072 = vdwg.mxu0
    %v2073 = vxor.u32 %v2069, 2147483648
    %v2074 = vxor.u32 %v2071, 2147483648
    %v2075 = vmul.f32 %v2073, 1.442695
    %v2076 = vpow.pop %v2075
    %v2077 = vmul.f32 %v2074, 1.442695
    %v2078 = vpow.pop %v2077
    %v2079 = vadd.f32 %v2076, 1.0
    %v2080 = vadd.f32 %v2078, 1.0
    %v2081 = vrcp.pop %v2079
    %v2082 = vmul.f32 1.0, %v2081
    %v2083 = vrcp.pop %v2080
    %v2084 = vmul.f32 1.0, %v2083
    %v2085 = vtanh.pop %v2071
    %v2086 = vmul.f32 %v2082, %v1817
    %2088 = vrot.lane.b32.xlu0 %v2085, 64
    %v2089 = vpop.permute.xlu0 %2088
    %v2091 = vmul.f32 %v2082, %v2089
    %2093 = vrot.lane.b32.xlu0 %v2091, 64
    %v2094 = vpop.permute.xlu0 %2093
    %v2096 = vadd.f32 %v2086, %v2094
    %v2097 = vtanh.pop %v2096
    %2099 = vrot.lane.b32.xlu0 %v2097, 64
    %v2100 = vpop.permute.xlu0 %2099
    %v2102 = vmul.f32 %v2084, %v2100
    %v2104 = vsel %vm324, %v2102, 0
    %2106 = vmatprep.subr.mxu0 %v267
    %2107 = vmatpush1.msra.mxu0 %v266
    %2108 = vmatprep.subr.mxu0 %v269
    %2109 = vmatpush1.msra.mxu0 %v268
    %2110 = vmatprep.subr.mxu0 %v271
    %2111 = vmatpush1.msra.mxu0 %v270
    %2112 = vmatprep.subr.mxu0 %v273
    %2113 = vmatpush1.msra.mxu0 %v272
    %2114 = vmatprep.subr.mxu0 %v275
    %2115 = vmatpush1.msra.mxu0 %v274
    %2116 = vmatprep.subr.mxu0 %v277
    %2117 = vmatpush1.msra.mxu0 %v276
    %2118 = vmatprep.subr.mxu0 %v279
    %2119 = vmatpush1.msra.mxu0 %v278
    %2120 = vmatprep.subr.mxu0 %v281
    %2121 = vmatpush1.msra.mxu0 %v280
    %2122 = vmatprep.subr.mxu0 0.0
    %2123 = vmatpush1.msra.mxu0 0.0
    %2124 = vmatprep.subr.mxu0 0.0
    %2125 = vmatpush1.msra.mxu0 0.0
    %2126 = vmatprep.subr.mxu0 0.0
    %2127 = vmatpush1.msra.mxu0 0.0
    %2128 = vmatprep.subr.mxu0 0.0
    %2129 = vmatpush1.msra.mxu0 0.0
    %2130 = vmatprep.subr.mxu0 0.0
    %2131 = vmatpush1.msra.mxu0 0.0
    %2132 = vmatprep.subr.mxu0 0.0
    %2133 = vmatpush1.msra.mxu0 0.0
    %2134 = vmatprep.subr.mxu0 0.0
    %2135 = vmatpush1.msra.mxu0 0.0
    %2136 = vmatprep.subr.mxu0 0.0
    %2137 = vmatpush1.msra.mxu0 0.0
    %2138 = vmatprep.subr.mxu0 0.0
    %2139 = vmatpush1.msra.mxu0 0.0
    %2140 = vmatprep.subr.mxu0 0.0
    %2141 = vmatpush1.msra.mxu0 0.0
    %2142 = vmatprep.subr.mxu0 0.0
    %2143 = vmatpush1.msra.mxu0 0.0
    %2144 = vmatprep.subr.mxu0 0.0
    %2145 = vmatpush1.msra.mxu0 0.0
    %2146 = vmatprep.subr.mxu0 0.0
    %2147 = vmatpush1.msra.mxu0 0.0
    %2148 = vmatprep.subr.mxu0 0.0
    %2149 = vmatpush1.msra.mxu0 0.0
    %2150 = vmatprep.subr.mxu0 0.0
    %2151 = vmatpush1.msra.mxu0 0.0
    %2152 = vmatprep.subr.mxu0 0.0
    %2153 = vmatpush1.msra.mxu0 0.0
    %2154 = vmatprep.subr.mxu0 0.0
    %2155 = vmatpush1.msra.mxu0 0.0
    %2156 = vmatprep.subr.mxu0 0.0
    %2157 = vmatpush1.msra.mxu0 0.0
    %2158 = vmatprep.subr.mxu0 0.0
    %2159 = vmatpush1.msra.mxu0 0.0
    %2160 = vmatprep.subr.mxu0 0.0
    %2161 = vmatpush1.msra.mxu0 0.0
    %2162 = vmatprep.subr.mxu0 0.0
    %2163 = vmatpush1.msra.mxu0 0.0
    %2164 = vmatprep.subr.mxu0 0.0
    %2165 = vmatpush1.msra.mxu0 0.0
    %2166 = vmatprep.subr.mxu0 0.0
    %2167 = vmatpush1.msra.mxu0 0.0
    %2168 = vmatprep.subr.mxu0 0.0
    %2169 = vmatpush1.msra.mxu0 0.0
    %2170 = vmatprep.mubr.f32.mxu0 0.0
    %2171 = vmatmul.mubr.f32.gmra.mrb[0].mxu0 %v2104
    %v2172 = vpop.f32.mrb[0].mxu0
    %v2173 = vadd.f32 %v287, %v2172
    %v2174 = vpop.f32.mrb[0].mxu0
    %v2175 = vadd.f32 %v291, %v2174
    %2176 = vdwg.mxu0
    %2177 = vmatprep.subr.mxu0 %v235
    %2178 = vmatpush1.msra.mxu0 %v234
    %2179 = vmatprep.subr.mxu0 %v237
    %2180 = vmatpush1.msra.mxu0 %v236
    %2181 = vmatprep.subr.mxu0 %v239
    %2182 = vmatpush1.msra.mxu0 %v238
    %2183 = vmatprep.subr.mxu0 %v241
    %2184 = vmatpush1.msra.mxu0 %v240
    %2185 = vmatprep.subr.mxu0 %v243
    %2186 = vmatpush1.msra.mxu0 %v242
    %2187 = vmatprep.subr.mxu0 %v245
    %2188 = vmatpush1.msra.mxu0 %v244
    %2189 = vmatprep.subr.mxu0 %v247
    %2190 = vmatpush1.msra.mxu0 %v246
    %2191 = vmatprep.subr.mxu0 %v249
    %2192 = vmatpush1.msra.mxu0 %v248
    %2193 = vmatprep.subr.mxu0 0.0
    %2194 = vmatpush1.msra.mxu0 0.0
    %2195 = vmatprep.subr.mxu0 0.0
    %2196 = vmatpush1.msra.mxu0 0.0
    %2197 = vmatprep.subr.mxu0 0.0
    %2198 = vmatpush1.msra.mxu0 0.0
    %2199 = vmatprep.subr.mxu0 0.0
    %2200 = vmatpush1.msra.mxu0 0.0
    %2201 = vmatprep.subr.mxu0 0.0
    %2202 = vmatpush1.msra.mxu0 0.0
    %2203 = vmatprep.subr.mxu0 0.0
    %2204 = vmatpush1.msra.mxu0 0.0
    %2205 = vmatprep.subr.mxu0 0.0
    %2206 = vmatpush1.msra.mxu0 0.0
    %2207 = vmatprep.subr.mxu0 0.0
    %2208 = vmatpush1.msra.mxu0 0.0
    %2209 = vmatprep.subr.mxu0 0.0
    %2210 = vmatpush1.msra.mxu0 0.0
    %2211 = vmatprep.subr.mxu0 0.0
    %2212 = vmatpush1.msra.mxu0 0.0
    %2213 = vmatprep.subr.mxu0 0.0
    %2214 = vmatpush1.msra.mxu0 0.0
    %2215 = vmatprep.subr.mxu0 0.0
    %2216 = vmatpush1.msra.mxu0 0.0
    %2217 = vmatprep.subr.mxu0 0.0
    %2218 = vmatpush1.msra.mxu0 0.0
    %2219 = vmatprep.subr.mxu0 0.0
    %2220 = vmatpush1.msra.mxu0 0.0
    %2221 = vmatprep.subr.mxu0 0.0
    %2222 = vmatpush1.msra.mxu0 0.0
    %2223 = vmatprep.subr.mxu0 0.0
    %2224 = vmatpush1.msra.mxu0 0.0
    %2225 = vmatprep.subr.mxu0 0.0
    %2226 = vmatpush1.msra.mxu0 0.0
    %2227 = vmatprep.subr.mxu0 0.0
    %2228 = vmatpush1.msra.mxu0 0.0
    %2229 = vmatprep.subr.mxu0 0.0
    %2230 = vmatpush1.msra.mxu0 0.0
    %2231 = vmatprep.subr.mxu0 0.0
    %2232 = vmatpush1.msra.mxu0 0.0
    %2233 = vmatprep.subr.mxu0 0.0
    %2234 = vmatpush1.msra.mxu0 0.0
    %2235 = vmatprep.subr.mxu0 0.0
    %2236 = vmatpush1.msra.mxu0 0.0
    %2237 = vmatprep.subr.mxu0 0.0
    %2238 = vmatpush1.msra.mxu0 0.0
    %2239 = vmatprep.subr.mxu0 0.0
    %2240 = vmatpush1.msra.mxu0 0.0
    %2241 = vmatprep.mubr.f32.mxu0 0.0
    %2242 = vmatmul.mubr.f32.gmra.mrb[0].mxu0 %v2000
    %v2243 = vpop.f32.mrb[0].mxu0
    %v2244 = vadd.f32 %v230, %v2243
    %v2245 = vpop.f32.mrb[0].mxu0
    %v2246 = vadd.f32 %v232, %v2245
    %2247 = vdwg.mxu0
    %v2248 = vxor.u32 %v2244, 2147483648
    %v2249 = vxor.u32 %v2246, 2147483648
    %v2250 = vmul.f32 %v2248, 1.442695
    %v2251 = vpow.pop %v2250
    %v2252 = vmul.f32 %v2249, 1.442695
    %v2253 = vpow.pop %v2252
    %v2254 = vadd.f32 %v2251, 1.0
    %v2255 = vadd.f32 %v2253, 1.0
    %v2256 = vrcp.pop %v2254
    %v2257 = vmul.f32 1.0, %v2256
    %v2258 = vrcp.pop %v2255
    %v2259 = vmul.f32 1.0, %v2258
    %v2260 = vtanh.pop %v2246
    %v2261 = vmul.f32 %v2257, %v1992
    %2263 = vrot.lane.b32.xlu0 %v2260, 64
    %v2264 = vpop.permute.xlu0 %2263
    %v2266 = vmul.f32 %v2257, %v2264
    %2268 = vrot.lane.b32.xlu0 %v2266, 64
    %v2269 = vpop.permute.xlu0 %2268
    %v2271 = vadd.f32 %v2261, %v2269
    %v2272 = vtanh.pop %v2271
    %2274 = vrot.lane.b32.xlu0 %v2272, 64
    %v2275 = vpop.permute.xlu0 %2274
    %v2277 = vmul.f32 %v2259, %v2275
    %v2279 = vsel %vm324, %v2277, 0
    %2281 = vmatprep.subr.mxu0 %v251
    %2282 = vmatpush1.msra.mxu0 %v250
    %2283 = vmatprep.subr.mxu0 %v253
    %2284 = vmatpush1.msra.mxu0 %v252
    %2285 = vmatprep.subr.mxu0 %v255
    %2286 = vmatpush1.msra.mxu0 %v254
    %2287 = vmatprep.subr.mxu0 %v257
    %2288 = vmatpush1.msra.mxu0 %v256
    %2289 = vmatprep.subr.mxu0 %v259
    %2290 = vmatpush1.msra.mxu0 %v258
    %2291 = vmatprep.subr.mxu0 %v261
    %2292 = vmatpush1.msra.mxu0 %v260
    %2293 = vmatprep.subr.mxu0 %v263
    %2294 = vmatpush1.msra.mxu0 %v262
    %2295 = vmatprep.subr.mxu0 %v265
    %2296 = vmatpush1.msra.mxu0 %v264
    %2297 = vmatprep.subr.mxu0 0.0
    %2298 = vmatpush1.msra.mxu0 0.0
    %2299 = vmatprep.subr.mxu0 0.0
    %2300 = vmatpush1.msra.mxu0 0.0
    %2301 = vmatprep.subr.mxu0 0.0
    %2302 = vmatpush1.msra.mxu0 0.0
    %2303 = vmatprep.subr.mxu0 0.0
    %2304 = vmatpush1.msra.mxu0 0.0
    %2305 = vmatprep.subr.mxu0 0.0
    %2306 = vmatpush1.msra.mxu0 0.0
    %2307 = vmatprep.subr.mxu0 0.0
    %2308 = vmatpush1.msra.mxu0 0.0
    %2309 = vmatprep.subr.mxu0 0.0
    %2310 = vmatpush1.msra.mxu0 0.0
    %2311 = vmatprep.subr.mxu0 0.0
    %2312 = vmatpush1.msra.mxu0 0.0
    %2313 = vmatprep.subr.mxu0 0.0
    %2314 = vmatpush1.msra.mxu0 0.0
    %2315 = vmatprep.subr.mxu0 0.0
    %2316 = vmatpush1.msra.mxu0 0.0
    %2317 = vmatprep.subr.mxu0 0.0
    %2318 = vmatpush1.msra.mxu0 0.0
    %2319 = vmatprep.subr.mxu0 0.0
    %2320 = vmatpush1.msra.mxu0 0.0
    %2321 = vmatprep.subr.mxu0 0.0
    %2322 = vmatpush1.msra.mxu0 0.0
    %2323 = vmatprep.subr.mxu0 0.0
    %2324 = vmatpush1.msra.mxu0 0.0
    %2325 = vmatprep.subr.mxu0 0.0
    %2326 = vmatpush1.msra.mxu0 0.0
    %2327 = vmatprep.subr.mxu0 0.0
    %2328 = vmatpush1.msra.mxu0 0.0
    %2329 = vmatprep.subr.mxu0 0.0
    %2330 = vmatpush1.msra.mxu0 0.0
    %2331 = vmatprep.subr.mxu0 0.0
    %2332 = vmatpush1.msra.mxu0 0.0
    %2333 = vmatprep.subr.mxu0 0.0
    %2334 = vmatpush1.msra.mxu0 0.0
    %2335 = vmatprep.subr.mxu0 0.0
    %2336 = vmatpush1.msra.mxu0 0.0
    %2337 = vmatprep.subr.mxu0 0.0
    %2338 = vmatpush1.msra.mxu0 0.0
    %2339 = vmatprep.subr.mxu0 0.0
    %2340 = vmatpush1.msra.mxu0 0.0
    %2341 = vmatprep.subr.mxu0 0.0
    %2342 = vmatpush1.msra.mxu0 0.0
    %2343 = vmatprep.subr.mxu0 0.0
    %2344 = vmatpush1.msra.mxu0 0.0
    %2345 = vmatprep.mubr.f32.mxu0 0.0
    %2346 = vmatmul.mubr.f32.gmra.mrb[0].mxu0 %v2279
    %v2347 = vpop.f32.mrb[0].mxu0
    %v2348 = vadd.f32 %v2173, %v2347
    %v2349 = vpop.f32.mrb[0].mxu0
    %v2350 = vadd.f32 %v2175, %v2349
    %2351 = vdwg.mxu0
    %v2352 = vxor.u32 %v2348, 2147483648
    %v2353 = vxor.u32 %v2350, 2147483648
    %v2354 = vmul.f32 %v2352, 1.442695
    %v2355 = vpow.pop %v2354
    %v2356 = vmul.f32 %v2353, 1.442695
    %v2357 = vpow.pop %v2356
    %v2358 = vadd.f32 %v2355, 1.0
    %v2359 = vadd.f32 %v2357, 1.0
    %v2360 = vrcp.pop %v2358
    %v2361 = vmul.f32 1.0, %v2360
    %v2362 = vrcp.pop %v2359
    %v2363 = vmul.f32 1.0, %v2362
    %v2364 = vtanh.pop %v2350
    %v2365 = vmul.f32 %v2361, %v2096
    %2367 = vrot.lane.b32.xlu0 %v2364, 64
    %v2368 = vpop.permute.xlu0 %2367
    %v2370 = vmul.f32 %v2361, %v2368
    %2372 = vrot.lane.b32.xlu0 %v2370, 64
    %v2373 = vpop.permute.xlu0 %2372
    %v2375 = vadd.f32 %v2365, %v2373
    %v2376 = vtanh.pop %v2375
    %2378 = vrot.lane.b32.xlu0 %v2376, 64
    %v2379 = vpop.permute.xlu0 %2378
    %v2381 = vmul.f32 %v2363, %v2379
    %v2382 = vld [vmem:[%s7] sm:$0xff]
    %v2383 = vld [vmem:[%s7 + $0x8] sm:$0xff]
    %v2384 = vld [vmem:[%s7 + $0x10] sm:$0xff]
    %v2385 = vld [vmem:[%s7 + $0x18] sm:$0xff]
    %v2386 = vld [vmem:[%s7 + $0x20] sm:$0xff]
    %v2387 = vld [vmem:[%s7 + $0x28] sm:$0xff]
    %v2388 = vld [vmem:[%s7 + $0x30] sm:$0xff]
    %v2389 = vld [vmem:[%s7 + $0x38] sm:$0xff]
    %v2390 = vld [vmem:[%s8] sm:$0x1]
    %v2392 = vlaneseq
    %v2393 = vshrl.u32 %v2392, 7
    %v2394 = vsub.s32 0, %v2393
    %v2395 = vrot.slane %v2390, %v2394
    %v2398 = vsel %vm324, %v2381, 0
    %2400 = vmatprep.subr.mxu0 0.0
    %2401 = vmatpush1.msra.mxu0 %v2382
    %2402 = vmatprep.subr.mxu0 0.0
    %2403 = vmatpush1.msra.mxu0 %v2383
    %2404 = vmatprep.subr.mxu0 0.0
    %2405 = vmatpush1.msra.mxu0 %v2384
    %2406 = vmatprep.subr.mxu0 0.0
    %2407 = vmatpush1.msra.mxu0 %v2385
    %2408 = vmatprep.subr.mxu0 0.0
    %2409 = vmatpush1.msra.mxu0 %v2386
    %2410 = vmatprep.subr.mxu0 0.0
    %2411 = vmatpush1.msra.mxu0 %v2387
    %2412 = vmatprep.subr.mxu0 0.0
    %2413 = vmatpush1.msra.mxu0 %v2388
    %2414 = vmatprep.subr.mxu0 0.0
    %2415 = vmatpush1.msra.mxu0 %v2389
    %2416 = vmatprep.subr.mxu0 0.0
    %2417 = vmatpush1.msra.mxu0 0.0
    %2418 = vmatprep.subr.mxu0 0.0
    %2419 = vmatpush1.msra.mxu0 0.0
    %2420 = vmatprep.subr.mxu0 0.0
    %2421 = vmatpush1.msra.mxu0 0.0
    %2422 = vmatprep.subr.mxu0 0.0
    %2423 = vmatpush1.msra.mxu0 0.0
    %2424 = vmatprep.subr.mxu0 0.0
    %2425 = vmatpush1.msra.mxu0 0.0
    %2426 = vmatprep.subr.mxu0 0.0
    %2427 = vmatpush1.msra.mxu0 0.0
    %2428 = vmatprep.subr.mxu0 0.0
    %2429 = vmatpush1.msra.mxu0 0.0
    %2430 = vmatprep.subr.mxu0 0.0
    %2431 = vmatpush1.msra.mxu0 0.0
    %2432 = vmatprep.subr.mxu0 0.0
    %2433 = vmatpush1.msra.mxu0 0.0
    %2434 = vmatprep.subr.mxu0 0.0
    %2435 = vmatpush1.msra.mxu0 0.0
    %2436 = vmatprep.subr.mxu0 0.0
    %2437 = vmatpush1.msra.mxu0 0.0
    %2438 = vmatprep.subr.mxu0 0.0
    %2439 = vmatpush1.msra.mxu0 0.0
    %2440 = vmatprep.subr.mxu0 0.0
    %2441 = vmatpush1.msra.mxu0 0.0
    %2442 = vmatprep.subr.mxu0 0.0
    %2443 = vmatpush1.msra.mxu0 0.0
    %2444 = vmatprep.subr.mxu0 0.0
    %2445 = vmatpush1.msra.mxu0 0.0
    %2446 = vmatprep.subr.mxu0 0.0
    %2447 = vmatpush1.msra.mxu0 0.0
    %2448 = vmatprep.subr.mxu0 0.0
    %2449 = vmatpush1.msra.mxu0 0.0
    %2450 = vmatprep.subr.mxu0 0.0
    %2451 = vmatpush1.msra.mxu0 0.0
    %2452 = vmatprep.subr.mxu0 0.0
    %2453 = vmatpush1.msra.mxu0 0.0
    %2454 = vmatprep.subr.mxu0 0.0
    %2455 = vmatpush1.msra.mxu0 0.0
    %2456 = vmatprep.subr.mxu0 0.0
    %2457 = vmatpush1.msra.mxu0 0.0
    %2458 = vmatprep.subr.mxu0 0.0
    %2459 = vmatpush1.msra.mxu0 0.0
    %2460 = vmatprep.subr.mxu0 0.0
    %2461 = vmatpush1.msra.mxu0 0.0
    %2462 = vmatprep.subr.mxu0 0.0
    %2463 = vmatpush1.msra.mxu0 0.0
    %2464 = vmatprep.mubr.f32.mxu0 0.0
    %2465 = vmatmul.mubr.f32.gmra.mrb[0].mxu0 %v2398
    %v2466 = vpop.f32.mrb[0].mxu0
    %v2467 = vadd.f32 %v2395, %v2466
    %v2468 = vpop.f32.mrb[0].mxu0
    %2469 = vdwg.mxu0
    %v2470 = vmax.f32 %v2467, 0.0
    %v2471 = vld [vmem:[%s9] sm:$0xff]
    %v2472 = vld [vmem:[%s9 + $0x8] sm:$0xff]
    %v2473 = vld [vmem:[%s9 + $0x10] sm:$0xff]
    %v2474 = vld [vmem:[%s9 + $0x18] sm:$0xff]
    %v2475 = vld [vmem:[%s9 + $0x20] sm:$0xff]
    %v2476 = vld [vmem:[%s9 + $0x28] sm:$0xff]
    %v2477 = vld [vmem:[%s9 + $0x30] sm:$0xff]
    %v2478 = vld [vmem:[%s9 + $0x38] sm:$0xff]
    %v2479 = vld [vmem:[%s10] sm:$0x1]
    %v2481 = vlaneseq
    %v2482 = vshrl.u32 %v2481, 7
    %v2483 = vsub.s32 0, %v2482
    %v2484 = vrot.slane %v2479, %v2483
    %v2487 = vsel %vm324, %v2470, 0
    %2489 = vmatprep.subr.mxu0 0.0
    %2490 = vmatpush1.msra.mxu0 %v2471
    %2491 = vmatprep.subr.mxu0 0.0
    %2492 = vmatpush1.msra.mxu0 %v2472
    %2493 = vmatprep.subr.mxu0 0.0
    %2494 = vmatpush1.msra.mxu0 %v2473
    %2495 = vmatprep.subr.mxu0 0.0
    %2496 = vmatpush1.msra.mxu0 %v2474
    %2497 = vmatprep.subr.mxu0 0.0
    %2498 = vmatpush1.msra.mxu0 %v2475
    %2499 = vmatprep.subr.mxu0 0.0
    %2500 = vmatpush1.msra.mxu0 %v2476
    %2501 = vmatprep.subr.mxu0 0.0
    %2502 = vmatpush1.msra.mxu0 %v2477
    %2503 = vmatprep.subr.mxu0 0.0
    %2504 = vmatpush1.msra.mxu0 %v2478
    %2505 = vmatprep.subr.mxu0 0.0
    %2506 = vmatpush1.msra.mxu0 0.0
    %2507 = vmatprep.subr.mxu0 0.0
    %2508 = vmatpush1.msra.mxu0 0.0
    %2509 = vmatprep.subr.mxu0 0.0
    %2510 = vmatpush1.msra.mxu0 0.0
    %2511 = vmatprep.subr.mxu0 0.0
    %2512 = vmatpush1.msra.mxu0 0.0
    %2513 = vmatprep.subr.mxu0 0.0
    %2514 = vmatpush1.msra.mxu0 0.0
    %2515 = vmatprep.subr.mxu0 0.0
    %2516 = vmatpush1.msra.mxu0 0.0
    %2517 = vmatprep.subr.mxu0 0.0
    %2518 = vmatpush1.msra.mxu0 0.0
    %2519 = vmatprep.subr.mxu0 0.0
    %2520 = vmatpush1.msra.mxu0 0.0
    %2521 = vmatprep.subr.mxu0 0.0
    %2522 = vmatpush1.msra.mxu0 0.0
    %2523 = vmatprep.subr.mxu0 0.0
    %2524 = vmatpush1.msra.mxu0 0.0
    %2525 = vmatprep.subr.mxu0 0.0
    %2526 = vmatpush1.msra.mxu0 0.0
    %2527 = vmatprep.subr.mxu0 0.0
    %2528 = vmatpush1.msra.mxu0 0.0
    %2529 = vmatprep.subr.mxu0 0.0
    %2530 = vmatpush1.msra.mxu0 0.0
    %2531 = vmatprep.subr.mxu0 0.0
    %2532 = vmatpush1.msra.mxu0 0.0
    %2533 = vmatprep.subr.mxu0 0.0
    %2534 = vmatpush1.msra.mxu0 0.0
    %2535 = vmatprep.subr.mxu0 0.0
    %2536 = vmatpush1.msra.mxu0 0.0
    %2537 = vmatprep.subr.mxu0 0.0
    %2538 = vmatpush1.msra.mxu0 0.0
    %2539 = vmatprep.subr.mxu0 0.0
    %2540 = vmatpush1.msra.mxu0 0.0
    %2541 = vmatprep.subr.mxu0 0.0
    %2542 = vmatpush1.msra.mxu0 0.0
    %2543 = vmatprep.subr.mxu0 0.0
    %2544 = vmatpush1.msra.mxu0 0.0
    %2545 = vmatprep.subr.mxu0 0.0
    %2546 = vmatpush1.msra.mxu0 0.0
    %2547 = vmatprep.subr.mxu0 0.0
    %2548 = vmatpush1.msra.mxu0 0.0
    %2549 = vmatprep.subr.mxu0 0.0
    %2550 = vmatpush1.msra.mxu0 0.0
    %2551 = vmatprep.subr.mxu0 0.0
    %2552 = vmatpush1.msra.mxu0 0.0
    %2553 = vmatprep.mubr.f32.mxu0 0.0
    %2554 = vmatmul.mubr.f32.gmra.mrb[0].mxu0 %v2487
    %v2555 = vpop.f32.mrb[0].mxu0
    %v2556 = vadd.f32 %v2484, %v2555
    %v2557 = vpop.f32.mrb[0].mxu0
    %2558 = vdwg.mxu0
    %2559 = vst.msk [vmem:[%s11] sm:$0xff] %vm91, %v2556
    %2560 = vst.msk [vmem:[%s12] sm:$0xff] %vm324, %v2277
    %s2561 = scalar_lea.vmem %s12, 8
    %2562 = vst.msk [vmem:[%s2561] sm:$0xff] %vm324, %v2381
    %2564 = vrot.lane.b32.xlu0 %v2271, 64
    %v2565 = vpop.permute.xlu0 %2564
    %s2567 = scalar_lea.vmem %s12, 16
    %2568 = vst.msk [vmem:[%s2567] sm:$0xff] %vm324, %v2565
    %2570 = vrot.lane.b32.xlu0 %v2375, 64
    %v2571 = vpop.permute.xlu0 %2570
    %s2573 = scalar_lea.vmem %s12, 24
    %2574 = vst.msk [vmem:[%s2573] sm:$0xff] %vm324, %v2571
    // Predicated region
    $region54: #{torque_predictor.1} parent=1 // pred_check
      _
    $region55: #{torque_predictor.1} parent=1 // pred_check_branch
      %2576 = sbr.rel (0) target = $region57
    $region56: #{torque_predictor.1} parent=1 // pred_region
      _
    $region57: #{torque_predictor.1} parent=1 // pred_fallthru
      _
    // Predicated region
    $region58: #{torque_predictor.1} parent=1 // pred_check
      _
    $region59: #{torque_predictor.1} parent=1 // pred_check_branch
      %2578 = sbr.rel (0) target = $region61
    $region60: #{torque_predictor.1} parent=1 // pred_region
      _
    $region61: #{torque_predictor.1} parent=1 // pred_fallthru
      _
    // Predicated region
    $region62: #{torque_predictor.1} parent=1 // pred_check
      _
    $region63: #{torque_predictor.1} parent=1 // pred_check_branch
      %2580 = sbr.rel (0) target = $region65
    $region64: #{torque_predictor.1} parent=1 // pred_region
      _
    $region65: #{torque_predictor.1} parent=1 // pred_fallthru
      _
    // Predicated region
    $region66: #{torque_predictor.1} parent=1 // pred_check
      _
    $region67: #{torque_predictor.1} parent=1 // pred_check_branch
      %2582 = sbr.rel (0) target = $region69
    $region68: #{torque_predictor.1} parent=1 // pred_region
      _
    $region69: #{torque_predictor.1} parent=1 // pred_fallthru
      _
    %2583 = vsyncpa [#allocation3], 1
    %2584 = vsyncpa [#allocation5], 1

</llo_original>
